<compile_context>
chip_gen: v5e
topology: v5e:2x2
jax: 0.10.0
libtpu: 0.0.40
codegen_flags: <defaults>
</compile_context>

<pallas_src>
import jax
import jax.numpy as jnp
from jax.experimental import pallas as pl
from jax.experimental.pallas import tpu as pltpu


def cfe_kernel(x_ref, lnw_ref, lnb_ref, win1_ref, win2_ref, wdw_ref, wdwd_ref,
               ws_ref, wc_ref, wout1_ref, wout2_ref, o_ref,
               pad1_ref, pad7_ref):
    # x_ref:    (1, C, HW)   one batch element (channels on sublanes, pixels on lanes)
    # o_ref:    (1, C, HW)   lane-dense output (HW = 256 lanes)
    # pad1_ref: (H+2,  W+2,  C) zero-padded scratch for the 3x3 depthwise conv
    # pad7_ref: (H+14, W+14, C) zero-padded scratch for the dilated(7) depthwise conv
    Hp, Wp, C = pad1_ref.shape
    H, W = Hp - 2, Wp - 2
    HW = H * W

    # Load and go channels-last: (HW, C), f32 working precision.
    x = x_ref[0].astype(jnp.float32).T                      # (HW, C)

    # ---- LayerNorm over channels (per pixel), eps inside the sqrt ----
    u = jnp.mean(x, axis=-1, keepdims=True)
    xc = x - u
    var = jnp.mean(xc * xc, axis=-1, keepdims=True)
    xn = xc * jax.lax.rsqrt(var + 1e-6)
    xn = xn * lnw_ref[...] + lnb_ref[...]                   # (1, C) broadcast

    # ---- pconv_in (1x1, C -> 2C) split into the two chunks ----
    x1 = jnp.dot(xn, win1_ref[...], preferred_element_type=jnp.float32)  # (HW, C)
    x2 = jnp.dot(xn, win2_ref[...], preferred_element_type=jnp.float32)  # (HW, C)

    # ---- x1 branch: depthwise 3x3, pad 1 ----
    pad1_ref[...] = jnp.zeros_like(pad1_ref)
    pad1_ref[1:1 + H, 1:1 + W, :] = x1.reshape(H, W, C)
    t = jnp.zeros((H, W, C), jnp.float32)
    for kh in range(3):
        for kw in range(3):
            tap = wdw_ref[kh * 3 + kw, :].reshape(1, 1, C)
            t = t + pad1_ref[kh:kh + H, kw:kw + W, :] * tap

    # ---- depthwise 3x3, dilation 7, pad 7 ----
    pad7_ref[...] = jnp.zeros_like(pad7_ref)
    pad7_ref[7:7 + H, 7:7 + W, :] = t
    v = jnp.zeros((H, W, C), jnp.float32)
    for kh in range(3):
        for kw in range(3):
            tap = wdwd_ref[kh * 3 + kw, :].reshape(1, 1, C)
            v = v + pad7_ref[kh * 7:kh * 7 + H, kw * 7:kw * 7 + W, :] * tap
    v = v.reshape(HW, C)

    # ---- pconv_s (1x1) then spatial gate by x1 ----
    x1_out = jnp.dot(v, ws_ref[...], preferred_element_type=jnp.float32) * x1

    # ---- x2 branch: global average pool -> 1x1 conv -> channel gate ----
    g = jnp.mean(x2, axis=0, keepdims=True)                               # (1, C)
    c = jnp.dot(g, wc_ref[...], preferred_element_type=jnp.float32)       # (1, C)
    x2_out = x2 * c

    # ---- pconv_out on concat([x1, x2]) == sum of two half matmuls ----
    out = (jnp.dot(x1_out, wout1_ref[...], preferred_element_type=jnp.float32) +
           jnp.dot(x2_out, wout2_ref[...], preferred_element_type=jnp.float32))

    # Fused NHWC->NCHW: store lane-dense (C, HW).
    o_ref[...] = out.T.reshape(1, C, HW).astype(o_ref.dtype)


def cfe_forward(x_nchw, params):
    """x_nchw: (N, C, H, W).  params in PyTorch layouts.  Returns (N, C, H, W)."""
    (ln_w, ln_b, w_in, w_dw, w_dwd, w_s, w_c, w_out) = params
    N, C, H, W = x_nchw.shape
    HW = H * W

    # Tiny one-time weight repacking (matrix form for the MXU, taps last-dim=C).
    win = w_in[:, :, 0, 0].T                                  # (C, 2C)
    win1, win2 = win[:, :C], win[:, C:]                       # (C, C) each
    wdw = w_dw[:, 0].transpose(1, 2, 0).reshape(9, C)         # (9, C)
    wdwd = w_dwd[:, 0].transpose(1, 2, 0).reshape(9, C)       # (9, C)
    ws = w_s[:, :, 0, 0].T                                    # (C, C)
    wc = w_c[:, :, 0, 0].T                                    # (C, C)
    wout = w_out[:, :, 0, 0].T                                # (2C, C)
    wout1, wout2 = wout[:C, :], wout[C:, :]                   # (C, C) each
    lnw = ln_w.reshape(1, C)
    lnb = ln_b.reshape(1, C)

    x_flat = x_nchw.reshape(N, C, HW)                         # free reshape (NCHW order kept)

    rep2 = lambda n: (0, 0)
    out_flat = pl.pallas_call(
        cfe_kernel,
        out_shape=jax.ShapeDtypeStruct((N, C, HW), x_nchw.dtype),
        grid=(N,),
        in_specs=[
            pl.BlockSpec((1, C, HW), lambda n: (n, 0, 0)),    # x
            pl.BlockSpec((1, C), rep2),                       # LayerNorm weight
            pl.BlockSpec((1, C), rep2),                       # LayerNorm bias
            pl.BlockSpec((C, C), rep2),                       # pconv_in (first half)
            pl.BlockSpec((C, C), rep2),                       # pconv_in (second half)
            pl.BlockSpec((9, C), rep2),                       # dwconv taps
            pl.BlockSpec((9, C), rep2),                       # dwdconv taps
            pl.BlockSpec((C, C), rep2),                       # pconv_s
            pl.BlockSpec((C, C), rep2),                       # pconv_c
            pl.BlockSpec((C, C), rep2),                       # pconv_out (x1 half)
            pl.BlockSpec((C, C), rep2),                       # pconv_out (x2 half)
        ],
        out_specs=pl.BlockSpec((1, C, HW), lambda n: (n, 0, 0)),
        scratch_shapes=[
            pltpu.VMEM((H + 2, W + 2, C), jnp.float32),       # pad-1 image
            pltpu.VMEM((H + 14, W + 14, C), jnp.float32),     # pad-7 image
        ],
        compiler_params=pltpu.CompilerParams(
            dimension_semantics=("parallel",)),               # 1 block/core on v7x
    )(x_flat, lnw, lnb, win1, win2, wdw, wdwd, ws, wc, wout1, wout2)

    return out_flat.reshape(N, C, H, W)                       # free reshape


def cfe_reference(x, params):
    """Pure-JAX reference matching the PyTorch CFE module."""
    ln_w, ln_b, w_in, w_dw, w_dwd, w_s, w_c, w_out = params
    C = x.shape[1]
    u = jnp.mean(x, axis=1, keepdims=True)
    s = jnp.mean((x - u) ** 2, axis=1, keepdims=True)
    xn = (x - u) / jnp.sqrt(s + 1e-6)
    xn = ln_w[None, :, None, None] * xn + ln_b[None, :, None, None]

    dn = ("NCHW", "OIHW", "NCHW")
    conv = jax.lax.conv_general_dilated
    x12 = conv(xn, w_in, (1, 1), "VALID", dimension_numbers=dn)
    x1, x2 = jnp.split(x12, 2, axis=1)
    t = conv(x1, w_dw, (1, 1), ((1, 1), (1, 1)), dimension_numbers=dn,
             feature_group_count=C)
    v = conv(t, w_dwd, (1, 1), ((7, 7), (7, 7)), rhs_dilation=(7, 7),
             dimension_numbers=dn, feature_group_count=C)
    x1o = conv(v, w_s, (1, 1), "VALID", dimension_numbers=dn) * x1
    g = jnp.mean(x2, axis=(2, 3), keepdims=True)
    x2o = conv(g, w_c, (1, 1), "VALID", dimension_numbers=dn) * x2
    out = conv(jnp.concatenate([x1o, x2o], axis=1), w_out, (1, 1), "VALID",
               dimension_numbers=dn)
    return out


if __name__ == "__main__":
    key = jax.random.PRNGKey(0)
    N, C, H, W = 2, 64, 16, 16
    keys = jax.random.split(key, 9)

    x = jax.random.normal(keys[0], (N, C, H, W), dtype=jnp.float32)
    ln_w = jnp.ones((C,), jnp.float32) + 0.05 * jax.random.normal(keys[1], (C,), jnp.float32)
    ln_b = 0.05 * jax.random.normal(keys[2], (C,), jnp.float32)
    w_in = 0.1 * jax.random.normal(keys[3], (2 * C, C, 1, 1), jnp.float32)
    w_dw = 0.1 * jax.random.normal(keys[4], (C, 1, 3, 3), jnp.float32)
    w_dwd = 0.1 * jax.random.normal(keys[5], (C, 1, 3, 3), jnp.float32)
    w_s = 0.1 * jax.random.normal(keys[6], (C, C, 1, 1), jnp.float32)
    w_c = 0.1 * jax.random.normal(keys[7], (C, C, 1, 1), jnp.float32)
    w_out = 0.1 * jax.random.normal(keys[8], (C, 2 * C, 1, 1), jnp.float32)
    params = (ln_w, ln_b, w_in, w_dw, w_dwd, w_s, w_c, w_out)

    out = jax.block_until_ready(cfe_forward(x, params))
    ref = cfe_reference(x, params)

    assert out.shape == (N, C, H, W)
    max_err = float(jnp.max(jnp.abs(out - ref)))
    assert jnp.allclose(out, ref, atol=1e-4, rtol=1e-3), max_err

    print("KERNEL_OK")
</pallas_src>

<mosaic_0001>
module attributes {stable_mosaic.version = 11 : i64} {
  func.func @cfe_kernel(%arg0: i32, %arg1: memref<1x64x256xf32, #tpu.memory_space<vmem>>, %arg2: memref<1x64xf32, #tpu.memory_space<vmem>>, %arg3: memref<1x64xf32, #tpu.memory_space<vmem>>, %arg4: memref<64x64xf32, #tpu.memory_space<vmem>>, %arg5: memref<64x64xf32, #tpu.memory_space<vmem>>, %arg6: memref<9x64xf32, #tpu.memory_space<vmem>>, %arg7: memref<9x64xf32, #tpu.memory_space<vmem>>, %arg8: memref<64x64xf32, #tpu.memory_space<vmem>>, %arg9: memref<64x64xf32, #tpu.memory_space<vmem>>, %arg10: memref<64x64xf32, #tpu.memory_space<vmem>>, %arg11: memref<64x64xf32, #tpu.memory_space<vmem>>, %arg12: memref<1x64x256xf32, #tpu.memory_space<vmem>>, %arg13: memref<18x18x64xf32, #tpu.memory_space<vmem>>, %arg14: memref<30x30x64xf32, #tpu.memory_space<vmem>>) attributes {dimension_semantics = [#tpu.dimension_semantics<parallel>], iteration_bounds = array<i64: 2>, scalar_prefetch = 0 : i64, scratch_operands = 2 : i64, tpu.core_type = #tpu.core_type<tc>, window_params = [{transform_indices = @transform_0, window_bounds = array<i64: 1, 64, 256>}, {pipeline_mode = #tpu.pipeline_mode<synchronous>, transform_indices = @transform_1, window_bounds = array<i64: 1, 64>}, {pipeline_mode = #tpu.pipeline_mode<synchronous>, transform_indices = @transform_2, window_bounds = array<i64: 1, 64>}, {pipeline_mode = #tpu.pipeline_mode<synchronous>, transform_indices = @transform_3, window_bounds = array<i64: 64, 64>}, {pipeline_mode = #tpu.pipeline_mode<synchronous>, transform_indices = @transform_4, window_bounds = array<i64: 64, 64>}, {pipeline_mode = #tpu.pipeline_mode<synchronous>, transform_indices = @transform_5, window_bounds = array<i64: 9, 64>}, {pipeline_mode = #tpu.pipeline_mode<synchronous>, transform_indices = @transform_6, window_bounds = array<i64: 9, 64>}, {pipeline_mode = #tpu.pipeline_mode<synchronous>, transform_indices = @transform_7, window_bounds = array<i64: 64, 64>}, {pipeline_mode = #tpu.pipeline_mode<synchronous>, transform_indices = @transform_8, window_bounds = array<i64: 64, 64>}, {pipeline_mode = #tpu.pipeline_mode<synchronous>, transform_indices = @transform_9, window_bounds = array<i64: 64, 64>}, {pipeline_mode = #tpu.pipeline_mode<synchronous>, transform_indices = @transform_10, window_bounds = array<i64: 64, 64>}, {transform_indices = @transform_11, window_bounds = array<i64: 1, 64, 256>}]} {
    %c0 = arith.constant 0 : index
    %c0_0 = arith.constant 0 : index
    %c0_1 = arith.constant 0 : index
    %0 = vector.load %arg1[%c0, %c0_0, %c0_1] : memref<1x64x256xf32, #tpu.memory_space<vmem>>, vector<1x64x256xf32>
    %1 = vector.shape_cast %0 : vector<1x64x256xf32> to vector<64x256xf32>
    %2 = tpu.transpose %1, [1, 0] : vector<64x256xf32> -> vector<256x64xf32>
    %cst = arith.constant dense<0.000000e+00> : vector<256xf32>
    %3 = vector.multi_reduction <add>, %2, %cst [1] : vector<256x64xf32> to vector<256xf32>
    %4 = vector.shape_cast %3 : vector<256xf32> to vector<256x1xf32>
    %cst_2 = arith.constant 6.400000e+01 : f32
    %5 = vector.broadcast %cst_2 : f32 to vector<256x1xf32>
    %6 = arith.divf %4, %5 : vector<256x1xf32>
    %7 = vector.broadcast %6 : vector<256x1xf32> to vector<256x64xf32>
    %8 = arith.subf %2, %7 : vector<256x64xf32>
    %9 = arith.mulf %8, %8 : vector<256x64xf32>
    %cst_3 = arith.constant dense<0.000000e+00> : vector<256xf32>
    %10 = vector.multi_reduction <add>, %9, %cst_3 [1] : vector<256x64xf32> to vector<256xf32>
    %11 = vector.shape_cast %10 : vector<256xf32> to vector<256x1xf32>
    %cst_4 = arith.constant 6.400000e+01 : f32
    %12 = vector.broadcast %cst_4 : f32 to vector<256x1xf32>
    %13 = arith.divf %11, %12 : vector<256x1xf32>
    %cst_5 = arith.constant 9.99999997E-7 : f32
    %14 = vector.broadcast %cst_5 : f32 to vector<256x1xf32>
    %15 = arith.addf %13, %14 : vector<256x1xf32>
    %16 = math.rsqrt %15 : vector<256x1xf32>
    %17 = vector.broadcast %16 : vector<256x1xf32> to vector<256x64xf32>
    %18 = arith.mulf %8, %17 : vector<256x64xf32>
    %c0_6 = arith.constant 0 : index
    %c0_7 = arith.constant 0 : index
    %19 = vector.load %arg2[%c0_6, %c0_7] : memref<1x64xf32, #tpu.memory_space<vmem>>, vector<1x64xf32>
    %20 = vector.broadcast %19 : vector<1x64xf32> to vector<256x64xf32>
    %21 = arith.mulf %18, %20 : vector<256x64xf32>
    %c0_8 = arith.constant 0 : index
    %c0_9 = arith.constant 0 : index
    %22 = vector.load %arg3[%c0_8, %c0_9] : memref<1x64xf32, #tpu.memory_space<vmem>>, vector<1x64xf32>
    %23 = vector.broadcast %22 : vector<1x64xf32> to vector<256x64xf32>
    %24 = arith.addf %21, %23 : vector<256x64xf32>
    %c0_10 = arith.constant 0 : index
    %c0_11 = arith.constant 0 : index
    %25 = vector.load %arg4[%c0_10, %c0_11] : memref<64x64xf32, #tpu.memory_space<vmem>>, vector<64x64xf32>
    %cst_12 = arith.constant dense<0.000000e+00> : vector<256x64xf32>
    %26 = tpu.matmul %24, %25, %cst_12 {dimension_numbers = #tpu.dot_dimension_numbers<[1], [0], [0], [1], [0, 0, 1, 1], [], []>} : vector<256x64xf32>, vector<64x64xf32>, vector<256x64xf32> -> vector<256x64xf32>
    %c0_13 = arith.constant 0 : index
    %c0_14 = arith.constant 0 : index
    %27 = vector.load %arg5[%c0_13, %c0_14] : memref<64x64xf32, #tpu.memory_space<vmem>>, vector<64x64xf32>
    %cst_15 = arith.constant dense<0.000000e+00> : vector<256x64xf32>
    %28 = tpu.matmul %24, %27, %cst_15 {dimension_numbers = #tpu.dot_dimension_numbers<[1], [0], [0], [1], [0, 0, 1, 1], [], []>} : vector<256x64xf32>, vector<64x64xf32>, vector<256x64xf32> -> vector<256x64xf32>
    %cst_16 = arith.constant 0.000000e+00 : f32
    %29 = vector.broadcast %cst_16 : f32 to vector<18x18x64xf32>
    %c0_17 = arith.constant 0 : index
    %c0_18 = arith.constant 0 : index
    %c0_19 = arith.constant 0 : index
    %30 = vector.load %arg13[%c0_17, %c0_18, %c0_19] : memref<18x18x64xf32, #tpu.memory_space<vmem>>, vector<18x18x64xf32>
    tpu.vector_store %arg13[%c0_17, %c0_18, %c0_19], %29 {strides = array<i32>} : memref<18x18x64xf32, #tpu.memory_space<vmem>>, vector<18x18x64xf32>,
    %31 = vector.shape_cast %26 : vector<256x64xf32> to vector<16x16x64xf32>
    %c1 = arith.constant 1 : index
    %c1_20 = arith.constant 1 : index
    %c0_21 = arith.constant 0 : index
    %32 = vector.load %arg13[%c1, %c1_20, %c0_21] : memref<18x18x64xf32, #tpu.memory_space<vmem>>, vector<16x16x64xf32>
    tpu.vector_store %arg13[%c1, %c1_20, %c0_21], %31 {strides = array<i32>} : memref<18x18x64xf32, #tpu.memory_space<vmem>>, vector<16x16x64xf32>,
    %cst_22 = arith.constant 0.000000e+00 : f32
    %33 = vector.broadcast %cst_22 : f32 to vector<16x16x64xf32>
    %c0_23 = arith.constant 0 : index
    %c0_24 = arith.constant 0 : index
    %34 = vector.load %arg6[%c0_23, %c0_24] : memref<9x64xf32, #tpu.memory_space<vmem>>, vector<1x64xf32>
    %35 = vector.shape_cast %34 : vector<1x64xf32> to vector<64xf32>
    %36 = vector.shape_cast %35 : vector<64xf32> to vector<1x1x64xf32>
    %c0_25 = arith.constant 0 : index
    %c0_26 = arith.constant 0 : index
    %c0_27 = arith.constant 0 : index
    %37 = vector.load %arg13[%c0_25, %c0_26, %c0_27] : memref<18x18x64xf32, #tpu.memory_space<vmem>>, vector<16x16x64xf32>
    %38 = vector.broadcast %36 : vector<1x1x64xf32> to vector<16x16x64xf32>
    %39 = arith.mulf %37, %38 : vector<16x16x64xf32>
    %40 = arith.addf %33, %39 : vector<16x16x64xf32>
    %c1_28 = arith.constant 1 : index
    %c0_29 = arith.constant 0 : index
    %41 = vector.load %arg6[%c1_28, %c0_29] : memref<9x64xf32, #tpu.memory_space<vmem>>, vector<1x64xf32>
    %42 = vector.shape_cast %41 : vector<1x64xf32> to vector<64xf32>
    %43 = vector.shape_cast %42 : vector<64xf32> to vector<1x1x64xf32>
    %c0_30 = arith.constant 0 : index
    %c1_31 = arith.constant 1 : index
    %c0_32 = arith.constant 0 : index
    %44 = vector.load %arg13[%c0_30, %c1_31, %c0_32] : memref<18x18x64xf32, #tpu.memory_space<vmem>>, vector<16x16x64xf32>
    %45 = vector.broadcast %43 : vector<1x1x64xf32> to vector<16x16x64xf32>
    %46 = arith.mulf %44, %45 : vector<16x16x64xf32>
    %47 = arith.addf %40, %46 : vector<16x16x64xf32>
    %c2 = arith.constant 2 : index
    %c0_33 = arith.constant 0 : index
    %48 = vector.load %arg6[%c2, %c0_33] : memref<9x64xf32, #tpu.memory_space<vmem>>, vector<1x64xf32>
    %49 = vector.shape_cast %48 : vector<1x64xf32> to vector<64xf32>
    %50 = vector.shape_cast %49 : vector<64xf32> to vector<1x1x64xf32>
    %c0_34 = arith.constant 0 : index
    %c2_35 = arith.constant 2 : index
    %c0_36 = arith.constant 0 : index
    %51 = vector.load %arg13[%c0_34, %c2_35, %c0_36] : memref<18x18x64xf32, #tpu.memory_space<vmem>>, vector<16x16x64xf32>
    %52 = vector.broadcast %50 : vector<1x1x64xf32> to vector<16x16x64xf32>
    %53 = arith.mulf %51, %52 : vector<16x16x64xf32>
    %54 = arith.addf %47, %53 : vector<16x16x64xf32>
    %c3 = arith.constant 3 : index
    %c0_37 = arith.constant 0 : index
    %55 = vector.load %arg6[%c3, %c0_37] : memref<9x64xf32, #tpu.memory_space<vmem>>, vector<1x64xf32>
    %56 = vector.shape_cast %55 : vector<1x64xf32> to vector<64xf32>
    %57 = vector.shape_cast %56 : vector<64xf32> to vector<1x1x64xf32>
    %c1_38 = arith.constant 1 : index
    %c0_39 = arith.constant 0 : index
    %c0_40 = arith.constant 0 : index
    %58 = vector.load %arg13[%c1_38, %c0_39, %c0_40] : memref<18x18x64xf32, #tpu.memory_space<vmem>>, vector<16x16x64xf32>
    %59 = vector.broadcast %57 : vector<1x1x64xf32> to vector<16x16x64xf32>
    %60 = arith.mulf %58, %59 : vector<16x16x64xf32>
    %61 = arith.addf %54, %60 : vector<16x16x64xf32>
    %c4 = arith.constant 4 : index
    %c0_41 = arith.constant 0 : index
    %62 = vector.load %arg6[%c4, %c0_41] : memref<9x64xf32, #tpu.memory_space<vmem>>, vector<1x64xf32>
    %63 = vector.shape_cast %62 : vector<1x64xf32> to vector<64xf32>
    %64 = vector.shape_cast %63 : vector<64xf32> to vector<1x1x64xf32>
    %c1_42 = arith.constant 1 : index
    %c1_43 = arith.constant 1 : index
    %c0_44 = arith.constant 0 : index
    %65 = vector.load %arg13[%c1_42, %c1_43, %c0_44] : memref<18x18x64xf32, #tpu.memory_space<vmem>>, vector<16x16x64xf32>
    %66 = vector.broadcast %64 : vector<1x1x64xf32> to vector<16x16x64xf32>
    %67 = arith.mulf %65, %66 : vector<16x16x64xf32>
    %68 = arith.addf %61, %67 : vector<16x16x64xf32>
    %c5 = arith.constant 5 : index
    %c0_45 = arith.constant 0 : index
    %69 = vector.load %arg6[%c5, %c0_45] : memref<9x64xf32, #tpu.memory_space<vmem>>, vector<1x64xf32>
    %70 = vector.shape_cast %69 : vector<1x64xf32> to vector<64xf32>
    %71 = vector.shape_cast %70 : vector<64xf32> to vector<1x1x64xf32>
    %c1_46 = arith.constant 1 : index
    %c2_47 = arith.constant 2 : index
    %c0_48 = arith.constant 0 : index
    %72 = vector.load %arg13[%c1_46, %c2_47, %c0_48] : memref<18x18x64xf32, #tpu.memory_space<vmem>>, vector<16x16x64xf32>
    %73 = vector.broadcast %71 : vector<1x1x64xf32> to vector<16x16x64xf32>
    %74 = arith.mulf %72, %73 : vector<16x16x64xf32>
    %75 = arith.addf %68, %74 : vector<16x16x64xf32>
    %c6 = arith.constant 6 : index
    %c0_49 = arith.constant 0 : index
    %76 = vector.load %arg6[%c6, %c0_49] : memref<9x64xf32, #tpu.memory_space<vmem>>, vector<1x64xf32>
    %77 = vector.shape_cast %76 : vector<1x64xf32> to vector<64xf32>
    %78 = vector.shape_cast %77 : vector<64xf32> to vector<1x1x64xf32>
    %c2_50 = arith.constant 2 : index
    %c0_51 = arith.constant 0 : index
    %c0_52 = arith.constant 0 : index
    %79 = vector.load %arg13[%c2_50, %c0_51, %c0_52] : memref<18x18x64xf32, #tpu.memory_space<vmem>>, vector<16x16x64xf32>
    %80 = vector.broadcast %78 : vector<1x1x64xf32> to vector<16x16x64xf32>
    %81 = arith.mulf %79, %80 : vector<16x16x64xf32>
    %82 = arith.addf %75, %81 : vector<16x16x64xf32>
    %c7 = arith.constant 7 : index
    %c0_53 = arith.constant 0 : index
    %83 = vector.load %arg6[%c7, %c0_53] : memref<9x64xf32, #tpu.memory_space<vmem>>, vector<1x64xf32>
    %84 = vector.shape_cast %83 : vector<1x64xf32> to vector<64xf32>
    %85 = vector.shape_cast %84 : vector<64xf32> to vector<1x1x64xf32>
    %c2_54 = arith.constant 2 : index
    %c1_55 = arith.constant 1 : index
    %c0_56 = arith.constant 0 : index
    %86 = vector.load %arg13[%c2_54, %c1_55, %c0_56] : memref<18x18x64xf32, #tpu.memory_space<vmem>>, vector<16x16x64xf32>
    %87 = vector.broadcast %85 : vector<1x1x64xf32> to vector<16x16x64xf32>
    %88 = arith.mulf %86, %87 : vector<16x16x64xf32>
    %89 = arith.addf %82, %88 : vector<16x16x64xf32>
    %c8 = arith.constant 8 : index
    %c0_57 = arith.constant 0 : index
    %90 = vector.load %arg6[%c8, %c0_57] : memref<9x64xf32, #tpu.memory_space<vmem>>, vector<1x64xf32>
    %91 = vector.shape_cast %90 : vector<1x64xf32> to vector<64xf32>
    %92 = vector.shape_cast %91 : vector<64xf32> to vector<1x1x64xf32>
    %c2_58 = arith.constant 2 : index
    %c2_59 = arith.constant 2 : index
    %c0_60 = arith.constant 0 : index
    %93 = vector.load %arg13[%c2_58, %c2_59, %c0_60] : memref<18x18x64xf32, #tpu.memory_space<vmem>>, vector<16x16x64xf32>
    %94 = vector.broadcast %92 : vector<1x1x64xf32> to vector<16x16x64xf32>
    %95 = arith.mulf %93, %94 : vector<16x16x64xf32>
    %96 = arith.addf %89, %95 : vector<16x16x64xf32>
    %cst_61 = arith.constant 0.000000e+00 : f32
    %97 = vector.broadcast %cst_61 : f32 to vector<30x30x64xf32>
    %c0_62 = arith.constant 0 : index
    %c0_63 = arith.constant 0 : index
    %c0_64 = arith.constant 0 : index
    %98 = vector.load %arg14[%c0_62, %c0_63, %c0_64] : memref<30x30x64xf32, #tpu.memory_space<vmem>>, vector<30x30x64xf32>
    tpu.vector_store %arg14[%c0_62, %c0_63, %c0_64], %97 {strides = array<i32>} : memref<30x30x64xf32, #tpu.memory_space<vmem>>, vector<30x30x64xf32>,
    %c7_65 = arith.constant 7 : index
    %c7_66 = arith.constant 7 : index
    %c0_67 = arith.constant 0 : index
    %99 = vector.load %arg14[%c7_65, %c7_66, %c0_67] : memref<30x30x64xf32, #tpu.memory_space<vmem>>, vector<16x16x64xf32>
    tpu.vector_store %arg14[%c7_65, %c7_66, %c0_67], %96 {strides = array<i32>} : memref<30x30x64xf32, #tpu.memory_space<vmem>>, vector<16x16x64xf32>,
    %cst_68 = arith.constant 0.000000e+00 : f32
    %100 = vector.broadcast %cst_68 : f32 to vector<16x16x64xf32>
    %c0_69 = arith.constant 0 : index
    %c0_70 = arith.constant 0 : index
    %101 = vector.load %arg7[%c0_69, %c0_70] : memref<9x64xf32, #tpu.memory_space<vmem>>, vector<1x64xf32>
    %102 = vector.shape_cast %101 : vector<1x64xf32> to vector<64xf32>
    %103 = vector.shape_cast %102 : vector<64xf32> to vector<1x1x64xf32>
    %c0_71 = arith.constant 0 : index
    %c0_72 = arith.constant 0 : index
    %c0_73 = arith.constant 0 : index
    %104 = vector.load %arg14[%c0_71, %c0_72, %c0_73] : memref<30x30x64xf32, #tpu.memory_space<vmem>>, vector<16x16x64xf32>
    %105 = vector.broadcast %103 : vector<1x1x64xf32> to vector<16x16x64xf32>
    %106 = arith.mulf %104, %105 : vector<16x16x64xf32>
    %107 = arith.addf %100, %106 : vector<16x16x64xf32>
    %c1_74 = arith.constant 1 : index
    %c0_75 = arith.constant 0 : index
    %108 = vector.load %arg7[%c1_74, %c0_75] : memref<9x64xf32, #tpu.memory_space<vmem>>, vector<1x64xf32>
    %109 = vector.shape_cast %108 : vector<1x64xf32> to vector<64xf32>
    %110 = vector.shape_cast %109 : vector<64xf32> to vector<1x1x64xf32>
    %c0_76 = arith.constant 0 : index
    %c7_77 = arith.constant 7 : index
    %c0_78 = arith.constant 0 : index
    %111 = vector.load %arg14[%c0_76, %c7_77, %c0_78] : memref<30x30x64xf32, #tpu.memory_space<vmem>>, vector<16x16x64xf32>
    %112 = vector.broadcast %110 : vector<1x1x64xf32> to vector<16x16x64xf32>
    %113 = arith.mulf %111, %112 : vector<16x16x64xf32>
    %114 = arith.addf %107, %113 : vector<16x16x64xf32>
    %c2_79 = arith.constant 2 : index
    %c0_80 = arith.constant 0 : index
    %115 = vector.load %arg7[%c2_79, %c0_80] : memref<9x64xf32, #tpu.memory_space<vmem>>, vector<1x64xf32>
    %116 = vector.shape_cast %115 : vector<1x64xf32> to vector<64xf32>
    %117 = vector.shape_cast %116 : vector<64xf32> to vector<1x1x64xf32>
    %c0_81 = arith.constant 0 : index
    %c14 = arith.constant 14 : index
    %c0_82 = arith.constant 0 : index
    %118 = vector.load %arg14[%c0_81, %c14, %c0_82] : memref<30x30x64xf32, #tpu.memory_space<vmem>>, vector<16x16x64xf32>
    %119 = vector.broadcast %117 : vector<1x1x64xf32> to vector<16x16x64xf32>
    %120 = arith.mulf %118, %119 : vector<16x16x64xf32>
    %121 = arith.addf %114, %120 : vector<16x16x64xf32>
    %c3_83 = arith.constant 3 : index
    %c0_84 = arith.constant 0 : index
    %122 = vector.load %arg7[%c3_83, %c0_84] : memref<9x64xf32, #tpu.memory_space<vmem>>, vector<1x64xf32>
    %123 = vector.shape_cast %122 : vector<1x64xf32> to vector<64xf32>
    %124 = vector.shape_cast %123 : vector<64xf32> to vector<1x1x64xf32>
    %c7_85 = arith.constant 7 : index
    %c0_86 = arith.constant 0 : index
    %c0_87 = arith.constant 0 : index
    %125 = vector.load %arg14[%c7_85, %c0_86, %c0_87] : memref<30x30x64xf32, #tpu.memory_space<vmem>>, vector<16x16x64xf32>
    %126 = vector.broadcast %124 : vector<1x1x64xf32> to vector<16x16x64xf32>
    %127 = arith.mulf %125, %126 : vector<16x16x64xf32>
    %128 = arith.addf %121, %127 : vector<16x16x64xf32>
    %c4_88 = arith.constant 4 : index
    %c0_89 = arith.constant 0 : index
    %129 = vector.load %arg7[%c4_88, %c0_89] : memref<9x64xf32, #tpu.memory_space<vmem>>, vector<1x64xf32>
    %130 = vector.shape_cast %129 : vector<1x64xf32> to vector<64xf32>
    %131 = vector.shape_cast %130 : vector<64xf32> to vector<1x1x64xf32>
    %c7_90 = arith.constant 7 : index
    %c7_91 = arith.constant 7 : index
    %c0_92 = arith.constant 0 : index
    %132 = vector.load %arg14[%c7_90, %c7_91, %c0_92] : memref<30x30x64xf32, #tpu.memory_space<vmem>>, vector<16x16x64xf32>
    %133 = vector.broadcast %131 : vector<1x1x64xf32> to vector<16x16x64xf32>
    %134 = arith.mulf %132, %133 : vector<16x16x64xf32>
    %135 = arith.addf %128, %134 : vector<16x16x64xf32>
    %c5_93 = arith.constant 5 : index
    %c0_94 = arith.constant 0 : index
    %136 = vector.load %arg7[%c5_93, %c0_94] : memref<9x64xf32, #tpu.memory_space<vmem>>, vector<1x64xf32>
    %137 = vector.shape_cast %136 : vector<1x64xf32> to vector<64xf32>
    %138 = vector.shape_cast %137 : vector<64xf32> to vector<1x1x64xf32>
    %c7_95 = arith.constant 7 : index
    %c14_96 = arith.constant 14 : index
    %c0_97 = arith.constant 0 : index
    %139 = vector.load %arg14[%c7_95, %c14_96, %c0_97] : memref<30x30x64xf32, #tpu.memory_space<vmem>>, vector<16x16x64xf32>
    %140 = vector.broadcast %138 : vector<1x1x64xf32> to vector<16x16x64xf32>
    %141 = arith.mulf %139, %140 : vector<16x16x64xf32>
    %142 = arith.addf %135, %141 : vector<16x16x64xf32>
    %c6_98 = arith.constant 6 : index
    %c0_99 = arith.constant 0 : index
    %143 = vector.load %arg7[%c6_98, %c0_99] : memref<9x64xf32, #tpu.memory_space<vmem>>, vector<1x64xf32>
    %144 = vector.shape_cast %143 : vector<1x64xf32> to vector<64xf32>
    %145 = vector.shape_cast %144 : vector<64xf32> to vector<1x1x64xf32>
    %c14_100 = arith.constant 14 : index
    %c0_101 = arith.constant 0 : index
    %c0_102 = arith.constant 0 : index
    %146 = vector.load %arg14[%c14_100, %c0_101, %c0_102] : memref<30x30x64xf32, #tpu.memory_space<vmem>>, vector<16x16x64xf32>
    %147 = vector.broadcast %145 : vector<1x1x64xf32> to vector<16x16x64xf32>
    %148 = arith.mulf %146, %147 : vector<16x16x64xf32>
    %149 = arith.addf %142, %148 : vector<16x16x64xf32>
    %c7_103 = arith.constant 7 : index
    %c0_104 = arith.constant 0 : index
    %150 = vector.load %arg7[%c7_103, %c0_104] : memref<9x64xf32, #tpu.memory_space<vmem>>, vector<1x64xf32>
    %151 = vector.shape_cast %150 : vector<1x64xf32> to vector<64xf32>
    %152 = vector.shape_cast %151 : vector<64xf32> to vector<1x1x64xf32>
    %c14_105 = arith.constant 14 : index
    %c7_106 = arith.constant 7 : index
    %c0_107 = arith.constant 0 : index
    %153 = vector.load %arg14[%c14_105, %c7_106, %c0_107] : memref<30x30x64xf32, #tpu.memory_space<vmem>>, vector<16x16x64xf32>
    %154 = vector.broadcast %152 : vector<1x1x64xf32> to vector<16x16x64xf32>
    %155 = arith.mulf %153, %154 : vector<16x16x64xf32>
    %156 = arith.addf %149, %155 : vector<16x16x64xf32>
    %c8_108 = arith.constant 8 : index
    %c0_109 = arith.constant 0 : index
    %157 = vector.load %arg7[%c8_108, %c0_109] : memref<9x64xf32, #tpu.memory_space<vmem>>, vector<1x64xf32>
    %158 = vector.shape_cast %157 : vector<1x64xf32> to vector<64xf32>
    %159 = vector.shape_cast %158 : vector<64xf32> to vector<1x1x64xf32>
    %c14_110 = arith.constant 14 : index
    %c14_111 = arith.constant 14 : index
    %c0_112 = arith.constant 0 : index
    %160 = vector.load %arg14[%c14_110, %c14_111, %c0_112] : memref<30x30x64xf32, #tpu.memory_space<vmem>>, vector<16x16x64xf32>
    %161 = vector.broadcast %159 : vector<1x1x64xf32> to vector<16x16x64xf32>
    %162 = arith.mulf %160, %161 : vector<16x16x64xf32>
    %163 = arith.addf %156, %162 : vector<16x16x64xf32>
    %164 = vector.shape_cast %163 : vector<16x16x64xf32> to vector<256x64xf32>
    %c0_113 = arith.constant 0 : index
    %c0_114 = arith.constant 0 : index
    %165 = vector.load %arg8[%c0_113, %c0_114] : memref<64x64xf32, #tpu.memory_space<vmem>>, vector<64x64xf32>
    %cst_115 = arith.constant dense<0.000000e+00> : vector<256x64xf32>
    %166 = tpu.matmul %164, %165, %cst_115 {dimension_numbers = #tpu.dot_dimension_numbers<[1], [0], [0], [1], [0, 0, 1, 1], [], []>} : vector<256x64xf32>, vector<64x64xf32>, vector<256x64xf32> -> vector<256x64xf32>
    %167 = arith.mulf %166, %26 : vector<256x64xf32>
    %cst_116 = arith.constant dense<0.000000e+00> : vector<64xf32>
    %168 = vector.multi_reduction <add>, %28, %cst_116 [0] : vector<256x64xf32> to vector<64xf32>
    %169 = vector.shape_cast %168 : vector<64xf32> to vector<1x64xf32>
    %cst_117 = arith.constant 2.560000e+02 : f32
    %170 = vector.broadcast %cst_117 : f32 to vector<1x64xf32>
    %171 = arith.divf %169, %170 : vector<1x64xf32>
    %c0_118 = arith.constant 0 : index
    %c0_119 = arith.constant 0 : index
    %172 = vector.load %arg9[%c0_118, %c0_119] : memref<64x64xf32, #tpu.memory_space<vmem>>, vector<64x64xf32>
    %cst_120 = arith.constant dense<0.000000e+00> : vector<1x64xf32>
    %173 = tpu.matmul %171, %172, %cst_120 {dimension_numbers = #tpu.dot_dimension_numbers<[1], [0], [0], [1], [0, 0, 1, 1], [], []>} : vector<1x64xf32>, vector<64x64xf32>, vector<1x64xf32> -> vector<1x64xf32>
    %174 = vector.broadcast %173 : vector<1x64xf32> to vector<256x64xf32>
    %175 = arith.mulf %28, %174 : vector<256x64xf32>
    %c0_121 = arith.constant 0 : index
    %c0_122 = arith.constant 0 : index
    %176 = vector.load %arg10[%c0_121, %c0_122] : memref<64x64xf32, #tpu.memory_space<vmem>>, vector<64x64xf32>
    %cst_123 = arith.constant dense<0.000000e+00> : vector<256x64xf32>
    %177 = tpu.matmul %167, %176, %cst_123 {dimension_numbers = #tpu.dot_dimension_numbers<[1], [0], [0], [1], [0, 0, 1, 1], [], []>} : vector<256x64xf32>, vector<64x64xf32>, vector<256x64xf32> -> vector<256x64xf32>
    %c0_124 = arith.constant 0 : index
    %c0_125 = arith.constant 0 : index
    %178 = vector.load %arg11[%c0_124, %c0_125] : memref<64x64xf32, #tpu.memory_space<vmem>>, vector<64x64xf32>
    %cst_126 = arith.constant dense<0.000000e+00> : vector<256x64xf32>
    %179 = tpu.matmul %175, %178, %cst_126 {dimension_numbers = #tpu.dot_dimension_numbers<[1], [0], [0], [1], [0, 0, 1, 1], [], []>} : vector<256x64xf32>, vector<64x64xf32>, vector<256x64xf32> -> vector<256x64xf32>
    %180 = arith.addf %177, %179 : vector<256x64xf32>
    %181 = tpu.transpose %180, [1, 0] : vector<256x64xf32> -> vector<64x256xf32>
    %182 = vector.shape_cast %181 : vector<64x256xf32> to vector<1x64x256xf32>
    %c0_127 = arith.constant 0 : index
    %c0_128 = arith.constant 0 : index
    %c0_129 = arith.constant 0 : index
    %183 = vector.load %arg12[%c0_127, %c0_128, %c0_129] : memref<1x64x256xf32, #tpu.memory_space<vmem>>, vector<1x64x256xf32>
    tpu.vector_store %arg12[%c0_127, %c0_128, %c0_129], %182 {strides = array<i32>} : memref<1x64x256xf32, #tpu.memory_space<vmem>>, vector<1x64x256xf32>,
    return
  }
  func.func @transform_0(%arg0: i32) -> (i32, i32, i32) {
    %c0_i32 = arith.constant 0 : i32
    %c0_i32_0 = arith.constant 0 : i32
    %c0_i32_1 = arith.constant 0 : i32
    return %arg0, %c0_i32, %c0_i32_0 : i32, i32, i32
  }
  func.func @transform_1(%arg0: i32) -> (i32, i32) {
    %c0_i32 = arith.constant 0 : i32
    %c0_i32_0 = arith.constant 0 : i32
    %c0_i32_1 = arith.constant 0 : i32
    return %c0_i32, %c0_i32_0 : i32, i32
  }
  func.func @transform_2(%arg0: i32) -> (i32, i32) {
    %c0_i32 = arith.constant 0 : i32
    %c0_i32_0 = arith.constant 0 : i32
    %c0_i32_1 = arith.constant 0 : i32
    return %c0_i32, %c0_i32_0 : i32, i32
  }
  func.func @transform_3(%arg0: i32) -> (i32, i32) {
    %c0_i32 = arith.constant 0 : i32
    %c0_i32_0 = arith.constant 0 : i32
    %c0_i32_1 = arith.constant 0 : i32
    return %c0_i32, %c0_i32_0 : i32, i32
  }
  func.func @transform_4(%arg0: i32) -> (i32, i32) {
    %c0_i32 = arith.constant 0 : i32
    %c0_i32_0 = arith.constant 0 : i32
    %c0_i32_1 = arith.constant 0 : i32
    return %c0_i32, %c0_i32_0 : i32, i32
  }
  func.func @transform_5(%arg0: i32) -> (i32, i32) {
    %c0_i32 = arith.constant 0 : i32
    %c0_i32_0 = arith.constant 0 : i32
    %c0_i32_1 = arith.constant 0 : i32
    return %c0_i32, %c0_i32_0 : i32, i32
  }
  func.func @transform_6(%arg0: i32) -> (i32, i32) {
    %c0_i32 = arith.constant 0 : i32
    %c0_i32_0 = arith.constant 0 : i32
    %c0_i32_1 = arith.constant 0 : i32
    return %c0_i32, %c0_i32_0 : i32, i32
  }
  func.func @transform_7(%arg0: i32) -> (i32, i32) {
    %c0_i32 = arith.constant 0 : i32
    %c0_i32_0 = arith.constant 0 : i32
    %c0_i32_1 = arith.constant 0 : i32
    return %c0_i32, %c0_i32_0 : i32, i32
  }
  func.func @transform_8(%arg0: i32) -> (i32, i32) {
    %c0_i32 = arith.constant 0 : i32
    %c0_i32_0 = arith.constant 0 : i32
    %c0_i32_1 = arith.constant 0 : i32
    return %c0_i32, %c0_i32_0 : i32, i32
  }
  func.func @transform_9(%arg0: i32) -> (i32, i32) {
    %c0_i32 = arith.constant 0 : i32
    %c0_i32_0 = arith.constant 0 : i32
    %c0_i32_1 = arith.constant 0 : i32
    return %c0_i32, %c0_i32_0 : i32, i32
  }
  func.func @transform_10(%arg0: i32) -> (i32, i32) {
    %c0_i32 = arith.constant 0 : i32
    %c0_i32_0 = arith.constant 0 : i32
    %c0_i32_1 = arith.constant 0 : i32
    return %c0_i32, %c0_i32_0 : i32, i32
  }
  func.func @transform_11(%arg0: i32) -> (i32, i32, i32) {
    %c0_i32 = arith.constant 0 : i32
    %c0_i32_0 = arith.constant 0 : i32
    %c0_i32_1 = arith.constant 0 : i32
    return %arg0, %c0_i32, %c0_i32_0 : i32, i32, i32
  }
}

</mosaic_0001>

<llo_original>
// kernel: tpu_custom_call.1
$region0: #{tpu_custom_call.1}
  #allocation0 [shape = 'u32[]', space=smem, size = 0x4, offset = 0x4, fixed_abs, tag = 'smem constant byte address 0x4 - core index']
  #allocation1 [shape = 'u32[72,128]{1,0:T(1,128)}', space=vmem, size = 0x9000, scoped, tag = 'internal scratch']
  #allocation2 [shape = 'f32[18,18,64]{2,1,0:T(8,128)}', space=vmem, size = 0x36000, scoped, tag = 'scratch operand']
  #allocation3 [shape = 'f32[30,30,64]{2,1,0:T(8,128)}', space=vmem, size = 0x78000, scoped, tag = 'scratch operand']
  %s0 = inlined_call_operand.hbm [shape: f32[2,64,256], index: 0, kind: input, shape index: {}]
  %s1 = inlined_call_operand.hbm [shape: f32[1,64], index: 1, kind: input, shape index: {}]
  %s2 = inlined_call_operand.vmem [shape: f32[1,64], index: 2, kind: input, shape index: {}]
  %s3 = inlined_call_operand.hbm [shape: f32[64,64], index: 3, kind: input, shape index: {}]
  %s4 = inlined_call_operand.hbm [shape: f32[64,64], index: 4, kind: input, shape index: {}]
  %s5 = inlined_call_operand.hbm [shape: f32[9,64], index: 5, kind: input, shape index: {}]
  %s6 = inlined_call_operand.hbm [shape: f32[9,64], index: 6, kind: input, shape index: {}]
  %s7 = inlined_call_operand.hbm [shape: f32[64,64], index: 7, kind: input, shape index: {}]
  %s8 = inlined_call_operand.hbm [shape: f32[64,64], index: 8, kind: input, shape index: {}]
  %s9 = inlined_call_operand.hbm [shape: f32[64,64], index: 9, kind: input, shape index: {}]
  %s10 = inlined_call_operand.hbm [shape: f32[64,64], index: 10, kind: input, shape index: {}]
  %s11 = inlined_call_operand.hbm [shape: f32[2,64,256], index: 11, kind: output, shape index: {}]
  %s12 = sld [smem:[#allocation0]]
  $region117: #{tpu_custom_call.1} parent=0
    _
  %s14 = ssub.s32 1, %s12
  %s15 = scalar_select 0, %s14, %s12
  $region1: #{tpu_custom_call.1} parent=0
    #allocation4 [shape = 'u8[131072]{0}', space=vmem, size = 0x20000, scoped, tag = 'input window, operand 0']
    #allocation5 [shape = 's32[2]{0}', space=sflag, size = 0x8, scoped, tag = 'scoped memory for tpu_custom_call.1']
    #allocation6 [shape = 's32[2]{0}', space=sflag, size = 0x8, scoped, tag = 'scoped memory for tpu_custom_call.1']
    #allocation7 [shape = 'u8[512]{0}', space=vmem, size = 0x400, scoped, tag = 'input window, operand 1, single buffered']
    #allocation8 [shape = 's32[1]{0}', space=sflag, size = 0x4, scoped, tag = 'scoped memory for tpu_custom_call.1']
    #allocation9 [shape = 'u8[32768]{0}', space=vmem, size = 0x8000, scoped, tag = 'input window, operand 3, single buffered']
    #allocation10 [shape = 'u8[32768]{0}', space=vmem, size = 0x8000, scoped, tag = 'input window, operand 4, single buffered']
    #allocation11 [shape = 's32[1]{0}', space=sflag, size = 0x4, scoped, tag = 'scoped memory for tpu_custom_call.1']
    #allocation12 [shape = 'u8[8192]{0}', space=vmem, size = 0x2000, scoped, tag = 'input window, operand 5, single buffered']
    #allocation13 [shape = 'u8[8192]{0}', space=vmem, size = 0x2000, scoped, tag = 'input window, operand 6, single buffered']
    #allocation14 [shape = 's32[1]{0}', space=sflag, size = 0x4, scoped, tag = 'scoped memory for tpu_custom_call.1']
    #allocation15 [shape = 'u8[32768]{0}', space=vmem, size = 0x8000, scoped, tag = 'input window, operand 7, single buffered']
    #allocation16 [shape = 'u8[32768]{0}', space=vmem, size = 0x8000, scoped, tag = 'input window, operand 8, single buffered']
    #allocation17 [shape = 's32[1]{0}', space=sflag, size = 0x4, scoped, tag = 'scoped memory for tpu_custom_call.1']
    #allocation18 [shape = 'u8[32768]{0}', space=vmem, size = 0x8000, scoped, tag = 'input window, operand 9, single buffered']
    #allocation19 [shape = 'u8[32768]{0}', space=vmem, size = 0x8000, scoped, tag = 'input window, operand 10, single buffered']
    #allocation20 [shape = 's32[1]{0}', space=sflag, size = 0x4, scoped, tag = 'scoped memory for tpu_custom_call.1']
    #allocation21 [shape = 'u8[131072]{0}', space=vmem, size = 0x20000, scoped, tag = 'output window, operand 0']
    %16 = vsyncpa [#allocation5], 0
    %s17 = scalar_lea.sflag [#allocation5], 1
    %18 = vsyncpa %s17, 0
    %19 = vsyncpa [#allocation8], 0
    %20 = vsyncpa [#allocation11], 0
    %21 = vsyncpa [#allocation14], 0
    %22 = vsyncpa [#allocation17], 0
    %23 = vsyncpa [#allocation20], 0
    %24 = vsyncpa [#allocation6], 0
    %s25 = scalar_lea.sflag [#allocation6], 1
    %26 = vsyncpa %s25, 0
    loop: start=0, step=1, limit=4
    $region2: #{tpu_custom_call.1} parent=1 // loop_pre_header
      _
    $region3: #{tpu_custom_call.1} parent=1 // loop_header
      %s28 = sphi 0, %s32
      %p29 = scmp.ge.s32.totalorder %s28, 4
      %s38 = sphi 0, %s40
      %s41 = sphi 0, %s38
      %s42 = sphi 0, %s41
      %s58 = sphi 0, %s42
      %s62 = sphi 0, %s62
      %s64 = sphi 0, %s62
      %s65 = sphi 0, %s64
      %s79 = sphi 0, %s65
      %s83 = sphi 0, %s83
      %s85 = sphi 0, %s83
      %s86 = sphi 0, %s85
      %s100 = sphi 0, %s86
      %s104 = sphi 0, %s104
      %s106 = sphi 0, %s104
      %s107 = sphi 0, %s106
      %s121 = sphi 0, %s107
      %s125 = sphi 0, %s125
      %s127 = sphi 0, %s125
      %s128 = sphi 0, %s127
      %s142 = sphi 0, %s128
      %s146 = sphi 0, %s146
      %s148 = sphi 0, %s146
      %s149 = sphi 0, %s148
      %s163 = sphi 0, %s149
      %s167 = sphi 0, %s167
      %s169 = sphi 0, %s167
      %s170 = sphi 0, %s169
      %s184 = sphi 0, %s170
      %s188 = sphi 0, %s188
      %s190 = sphi 0, %s188
      %s191 = sphi 0, %s190
      %s205 = sphi 0, %s191
      %s209 = sphi 0, %s209
      %s211 = sphi 0, %s209
      %s212 = sphi 0, %s211
      %s226 = sphi 0, %s212
      %s230 = sphi 0, %s230
      %s232 = sphi 0, %s230
      %s233 = sphi 0, %s232
      %s247 = sphi 0, %s233
      %s251 = sphi 0, %s251
      %s253 = sphi 0, %s251
      %s254 = sphi 0, %s253
      %s268 = sphi 0, %s254
      %s274 = sphi 0, %s276
      %s277 = sphi 0, %s274
      %s278 = sphi 0, %s277
      %s294 = sphi 0, %s278
    $region4: #{tpu_custom_call.1} parent=1 // loop_header_branch
      %31 = sbr.rel (%p29) target = $region8
    $region5: #{tpu_custom_call.1} parent=1 // loop_body
      %s33 = ssub.s32 %s28, 1
      %s34 = ssub.s32 %s28, 2
      %s35 = sadd.s32 %s28, 1
      %s36 = ssub.s32 %s28, %s35
      %p37 = scmp.eq.s32.totalorder %s36, 0
      %s39 = sadd.s32 %s38, 1
      %s40 = scalar_select %p37, %s38, %s39
      %p43 = pneg %p37
      %p44 = scmp.eq.s32.totalorder %s28, 1
      %p45 = por %p43, %p44
      %p46 = scmp.ne.s32.totalorder %s38, %s41
      %p47 = scmp.eq.s32.totalorder %s28, 0
      %p48 = por %p46, %p47
      %p49 = scmp.ne.s32.totalorder %s38, %s41
      %p50 = scmp.eq.s32.totalorder %s33, 1
      %p51 = por %p49, %p50
      %p52 = scmp.ne.s32.totalorder %s41, %s42
      %p53 = scmp.eq.s32.totalorder %s33, 0
      %p54 = por %p52, %p53
      %p55 = scmp.ne.s32.totalorder %s41, %s42
      %p56 = scmp.eq.s32.totalorder %s34, 1
      %p57 = por %p55, %p56
      %p59 = scmp.ne.s32.totalorder %s42, %s58
      %p60 = scmp.eq.s32.totalorder %s34, 0
      %p61 = por %p59, %p60
      %s63 = sadd.s32 %s62, 1
      %p66 = scmp.eq.s32.totalorder %s28, 1
      %p67 = scmp.ne.s32.totalorder %s62, %s64
      %p68 = scmp.eq.s32.totalorder %s28, 0
      %p69 = por %p67, %p68
      %p70 = scmp.ne.s32.totalorder %s62, %s64
      %p71 = scmp.eq.s32.totalorder %s33, 1
      %p72 = por %p70, %p71
      %p73 = scmp.ne.s32.totalorder %s64, %s65
      %p74 = scmp.eq.s32.totalorder %s33, 0
      %p75 = por %p73, %p74
      %p76 = scmp.ne.s32.totalorder %s64, %s65
      %p77 = scmp.eq.s32.totalorder %s34, 1
      %p78 = por %p76, %p77
      %p80 = scmp.ne.s32.totalorder %s65, %s79
      %p81 = scmp.eq.s32.totalorder %s34, 0
      %p82 = por %p80, %p81
      %s84 = sadd.s32 %s83, 1
      %p87 = scmp.eq.s32.totalorder %s28, 1
      %p88 = scmp.ne.s32.totalorder %s83, %s85
      %p89 = scmp.eq.s32.totalorder %s28, 0
      %p90 = por %p88, %p89
      %p91 = scmp.ne.s32.totalorder %s83, %s85
      %p92 = scmp.eq.s32.totalorder %s33, 1
      %p93 = por %p91, %p92
      %p94 = scmp.ne.s32.totalorder %s85, %s86
      %p95 = scmp.eq.s32.totalorder %s33, 0
      %p96 = por %p94, %p95
      %p97 = scmp.ne.s32.totalorder %s85, %s86
      %p98 = scmp.eq.s32.totalorder %s34, 1
      %p99 = por %p97, %p98
      %p101 = scmp.ne.s32.totalorder %s86, %s100
      %p102 = scmp.eq.s32.totalorder %s34, 0
      %p103 = por %p101, %p102
      %s105 = sadd.s32 %s104, 1
      %p108 = scmp.eq.s32.totalorder %s28, 1
      %p109 = scmp.ne.s32.totalorder %s104, %s106
      %p110 = scmp.eq.s32.totalorder %s28, 0
      %p111 = por %p109, %p110
      %p112 = scmp.ne.s32.totalorder %s104, %s106
      %p113 = scmp.eq.s32.totalorder %s33, 1
      %p114 = por %p112, %p113
      %p115 = scmp.ne.s32.totalorder %s106, %s107
      %p116 = scmp.eq.s32.totalorder %s33, 0
      %p117 = por %p115, %p116
      %p118 = scmp.ne.s32.totalorder %s106, %s107
      %p119 = scmp.eq.s32.totalorder %s34, 1
      %p120 = por %p118, %p119
      %p122 = scmp.ne.s32.totalorder %s107, %s121
      %p123 = scmp.eq.s32.totalorder %s34, 0
      %p124 = por %p122, %p123
      %s126 = sadd.s32 %s125, 1
      %p129 = scmp.eq.s32.totalorder %s28, 1
      %p130 = scmp.ne.s32.totalorder %s125, %s127
      %p131 = scmp.eq.s32.totalorder %s28, 0
      %p132 = por %p130, %p131
      %p133 = scmp.ne.s32.totalorder %s125, %s127
      %p134 = scmp.eq.s32.totalorder %s33, 1
      %p135 = por %p133, %p134
      %p136 = scmp.ne.s32.totalorder %s127, %s128
      %p137 = scmp.eq.s32.totalorder %s33, 0
      %p138 = por %p136, %p137
      %p139 = scmp.ne.s32.totalorder %s127, %s128
      %p140 = scmp.eq.s32.totalorder %s34, 1
      %p141 = por %p139, %p140
      %p143 = scmp.ne.s32.totalorder %s128, %s142
      %p144 = scmp.eq.s32.totalorder %s34, 0
      %p145 = por %p143, %p144
      %s147 = sadd.s32 %s146, 1
      %p150 = scmp.eq.s32.totalorder %s28, 1
      %p151 = scmp.ne.s32.totalorder %s146, %s148
      %p152 = scmp.eq.s32.totalorder %s28, 0
      %p153 = por %p151, %p152
      %p154 = scmp.ne.s32.totalorder %s146, %s148
      %p155 = scmp.eq.s32.totalorder %s33, 1
      %p156 = por %p154, %p155
      %p157 = scmp.ne.s32.totalorder %s148, %s149
      %p158 = scmp.eq.s32.totalorder %s33, 0
      %p159 = por %p157, %p158
      %p160 = scmp.ne.s32.totalorder %s148, %s149
      %p161 = scmp.eq.s32.totalorder %s34, 1
      %p162 = por %p160, %p161
      %p164 = scmp.ne.s32.totalorder %s149, %s163
      %p165 = scmp.eq.s32.totalorder %s34, 0
      %p166 = por %p164, %p165
      %s168 = sadd.s32 %s167, 1
      %p171 = scmp.eq.s32.totalorder %s28, 1
      %p172 = scmp.ne.s32.totalorder %s167, %s169
      %p173 = scmp.eq.s32.totalorder %s28, 0
      %p174 = por %p172, %p173
      %p175 = scmp.ne.s32.totalorder %s167, %s169
      %p176 = scmp.eq.s32.totalorder %s33, 1
      %p177 = por %p175, %p176
      %p178 = scmp.ne.s32.totalorder %s169, %s170
      %p179 = scmp.eq.s32.totalorder %s33, 0
      %p180 = por %p178, %p179
      %p181 = scmp.ne.s32.totalorder %s169, %s170
      %p182 = scmp.eq.s32.totalorder %s34, 1
      %p183 = por %p181, %p182
      %p185 = scmp.ne.s32.totalorder %s170, %s184
      %p186 = scmp.eq.s32.totalorder %s34, 0
      %p187 = por %p185, %p186
      %s189 = sadd.s32 %s188, 1
      %p192 = scmp.eq.s32.totalorder %s28, 1
      %p193 = scmp.ne.s32.totalorder %s188, %s190
      %p194 = scmp.eq.s32.totalorder %s28, 0
      %p195 = por %p193, %p194
      %p196 = scmp.ne.s32.totalorder %s188, %s190
      %p197 = scmp.eq.s32.totalorder %s33, 1
      %p198 = por %p196, %p197
      %p199 = scmp.ne.s32.totalorder %s190, %s191
      %p200 = scmp.eq.s32.totalorder %s33, 0
      %p201 = por %p199, %p200
      %p202 = scmp.ne.s32.totalorder %s190, %s191
      %p203 = scmp.eq.s32.totalorder %s34, 1
      %p204 = por %p202, %p203
      %p206 = scmp.ne.s32.totalorder %s191, %s205
      %p207 = scmp.eq.s32.totalorder %s34, 0
      %p208 = por %p206, %p207
      %s210 = sadd.s32 %s209, 1
      %p213 = scmp.eq.s32.totalorder %s28, 1
      %p214 = scmp.ne.s32.totalorder %s209, %s211
      %p215 = scmp.eq.s32.totalorder %s28, 0
      %p216 = por %p214, %p215
      %p217 = scmp.ne.s32.totalorder %s209, %s211
      %p218 = scmp.eq.s32.totalorder %s33, 1
      %p219 = por %p217, %p218
      %p220 = scmp.ne.s32.totalorder %s211, %s212
      %p221 = scmp.eq.s32.totalorder %s33, 0
      %p222 = por %p220, %p221
      %p223 = scmp.ne.s32.totalorder %s211, %s212
      %p224 = scmp.eq.s32.totalorder %s34, 1
      %p225 = por %p223, %p224
      %p227 = scmp.ne.s32.totalorder %s212, %s226
      %p228 = scmp.eq.s32.totalorder %s34, 0
      %p229 = por %p227, %p228
      %s231 = sadd.s32 %s230, 1
      %p234 = scmp.eq.s32.totalorder %s28, 1
      %p235 = scmp.ne.s32.totalorder %s230, %s232
      %p236 = scmp.eq.s32.totalorder %s28, 0
      %p237 = por %p235, %p236
      %p238 = scmp.ne.s32.totalorder %s230, %s232
      %p239 = scmp.eq.s32.totalorder %s33, 1
      %p240 = por %p238, %p239
      %p241 = scmp.ne.s32.totalorder %s232, %s233
      %p242 = scmp.eq.s32.totalorder %s33, 0
      %p243 = por %p241, %p242
      %p244 = scmp.ne.s32.totalorder %s232, %s233
      %p245 = scmp.eq.s32.totalorder %s34, 1
      %p246 = por %p244, %p245
      %p248 = scmp.ne.s32.totalorder %s233, %s247
      %p249 = scmp.eq.s32.totalorder %s34, 0
      %p250 = por %p248, %p249
      %s252 = sadd.s32 %s251, 1
      %p255 = scmp.eq.s32.totalorder %s28, 1
      %p256 = scmp.ne.s32.totalorder %s251, %s253
      %p257 = scmp.eq.s32.totalorder %s28, 0
      %p258 = por %p256, %p257
      %p259 = scmp.ne.s32.totalorder %s251, %s253
      %p260 = scmp.eq.s32.totalorder %s33, 1
      %p261 = por %p259, %p260
      %p262 = scmp.ne.s32.totalorder %s253, %s254
      %p263 = scmp.eq.s32.totalorder %s33, 0
      %p264 = por %p262, %p263
      %p265 = scmp.ne.s32.totalorder %s253, %s254
      %p266 = scmp.eq.s32.totalorder %s34, 1
      %p267 = por %p265, %p266
      %p269 = scmp.ne.s32.totalorder %s254, %s268
      %p270 = scmp.eq.s32.totalorder %s34, 0
      %p271 = por %p269, %p270
      %s272 = ssub.s32 %s28, %s35
      %p273 = scmp.eq.s32.totalorder %s272, 0
      %s275 = sadd.s32 %s274, 1
      %s276 = scalar_select %p273, %s274, %s275
      %p279 = pneg %p273
      %p280 = scmp.eq.s32.totalorder %s28, 1
      %p281 = por %p279, %p280
      %p282 = scmp.ne.s32.totalorder %s274, %s277
      %p283 = scmp.eq.s32.totalorder %s28, 0
      %p284 = por %p282, %p283
      %p285 = scmp.ne.s32.totalorder %s274, %s277
      %p286 = scmp.eq.s32.totalorder %s33, 1
      %p287 = por %p285, %p286
      %p288 = scmp.ne.s32.totalorder %s277, %s278
      %p289 = scmp.eq.s32.totalorder %s33, 0
      %p290 = por %p288, %p289
      %p291 = scmp.ne.s32.totalorder %s277, %s278
      %p292 = scmp.eq.s32.totalorder %s34, 1
      %p293 = por %p291, %p292
      %p295 = scmp.ne.s32.totalorder %s278, %s294
      %p296 = scmp.eq.s32.totalorder %s34, 0
      %p297 = por %p295, %p296
      %p298 = scmp.le.s32.totalorder 1, %s28
      %p299 = scmp.lt.s32.totalorder %s28, 3
      %p300 = pnand %p298, %p299
      %p301 = pneg %p300
      // Predicated region
      $region9: #{tpu_custom_call.1} parent=5 // pred_check
        _
      $region10: #{tpu_custom_call.1} parent=5 // pred_check_branch
        %303 = sbr.rel (%p300) target = $region12
      $region11: #{tpu_custom_call.1} parent=5 // pred_region
        %s304 = ssub.s32 %s28, 1
        // Predicated region
        $region13: #{tpu_custom_call.1} parent=11 // pred_check
          %p305 = pneg %p75
        $region14: #{tpu_custom_call.1} parent=11 // pred_check_branch
          %307 = sbr.rel (%p305) target = $region16
        $region15: #{tpu_custom_call.1} parent=11 // pred_region
          %309 = vsyncadd [#allocation8], 0
          %s311 = sshll.u32 %s1, 4
          %s312 = int_to_ptr.hbm [resolvable:$true] %s311
          %s313 = sshll.u32 [#allocation7], 4
          %s314 = int_to_ptr.vmem [resolvable:$true] %s313
          %316 = dma.hbm_to_vmem [thread:$0]  %s312, 16, %s314, [#allocation8]
        $region16: #{tpu_custom_call.1} parent=11 // pred_fallthru
          _
        // Predicated region
        $region17: #{tpu_custom_call.1} parent=11 // pred_check
          %p317 = pneg %p96
        $region18: #{tpu_custom_call.1} parent=11 // pred_check_branch
          %319 = sbr.rel (%p317) target = $region20
        $region19: #{tpu_custom_call.1} parent=11 // pred_region
          _
        $region20: #{tpu_custom_call.1} parent=11 // pred_fallthru
          _
        // Predicated region
        $region21: #{tpu_custom_call.1} parent=11 // pred_check
          %p320 = pneg %p117
        $region22: #{tpu_custom_call.1} parent=11 // pred_check_branch
          %322 = sbr.rel (%p320) target = $region24
        $region23: #{tpu_custom_call.1} parent=11 // pred_region
          %324 = vsyncadd [#allocation8], 0
          %s325 = sshll.u32 %s3, 4
          %s326 = int_to_ptr.hbm [resolvable:$true] %s325
          %s327 = sshll.u32 [#allocation9], 4
          %s328 = int_to_ptr.vmem [resolvable:$true] %s327
          %333 = dma.hbm_to_vmem [thread:$0]  %s326, 1024, %s328, [#allocation8], 128, 128, 8
        $region24: #{tpu_custom_call.1} parent=11 // pred_fallthru
          _
        // Predicated region
        $region25: #{tpu_custom_call.1} parent=11 // pred_check
          %p334 = pneg %p138
        $region26: #{tpu_custom_call.1} parent=11 // pred_check_branch
          %336 = sbr.rel (%p334) target = $region28
        $region27: #{tpu_custom_call.1} parent=11 // pred_region
          %338 = vsyncadd [#allocation11], 0
          %s339 = sshll.u32 %s4, 4
          %s340 = int_to_ptr.hbm [resolvable:$true] %s339
          %s341 = sshll.u32 [#allocation10], 4
          %s342 = int_to_ptr.vmem [resolvable:$true] %s341
          %347 = dma.hbm_to_vmem [thread:$0]  %s340, 1024, %s342, [#allocation11], 128, 128, 8
        $region28: #{tpu_custom_call.1} parent=11 // pred_fallthru
          _
        // Predicated region
        $region29: #{tpu_custom_call.1} parent=11 // pred_check
          %p348 = pneg %p159
        $region30: #{tpu_custom_call.1} parent=11 // pred_check_branch
          %350 = sbr.rel (%p348) target = $region32
        $region31: #{tpu_custom_call.1} parent=11 // pred_region
          %352 = vsyncadd [#allocation11], 0
          %s353 = sshll.u32 %s5, 4
          %s354 = int_to_ptr.hbm [resolvable:$true] %s353
          %s355 = sshll.u32 [#allocation12], 4
          %s356 = int_to_ptr.vmem [resolvable:$true] %s355
          %361 = dma.hbm_to_vmem [thread:$0]  %s354, 256, %s356, [#allocation11], 128, 128, 8
        $region32: #{tpu_custom_call.1} parent=11 // pred_fallthru
          _
        // Predicated region
        $region33: #{tpu_custom_call.1} parent=11 // pred_check
          %p362 = pneg %p180
        $region34: #{tpu_custom_call.1} parent=11 // pred_check_branch
          %364 = sbr.rel (%p362) target = $region36
        $region35: #{tpu_custom_call.1} parent=11 // pred_region
          %366 = vsyncadd [#allocation14], 0
          %s367 = sshll.u32 %s6, 4
          %s368 = int_to_ptr.hbm [resolvable:$true] %s367
          %s369 = sshll.u32 [#allocation13], 4
          %s370 = int_to_ptr.vmem [resolvable:$true] %s369
          %375 = dma.hbm_to_vmem [thread:$0]  %s368, 256, %s370, [#allocation14], 128, 128, 8
        $region36: #{tpu_custom_call.1} parent=11 // pred_fallthru
          _
        // Predicated region
        $region37: #{tpu_custom_call.1} parent=11 // pred_check
          %p376 = pneg %p201
        $region38: #{tpu_custom_call.1} parent=11 // pred_check_branch
          %378 = sbr.rel (%p376) target = $region40
        $region39: #{tpu_custom_call.1} parent=11 // pred_region
          %380 = vsyncadd [#allocation14], 0
          %s381 = sshll.u32 %s7, 4
          %s382 = int_to_ptr.hbm [resolvable:$true] %s381
          %s383 = sshll.u32 [#allocation15], 4
          %s384 = int_to_ptr.vmem [resolvable:$true] %s383
          %389 = dma.hbm_to_vmem [thread:$0]  %s382, 1024, %s384, [#allocation14], 128, 128, 8
        $region40: #{tpu_custom_call.1} parent=11 // pred_fallthru
          _
        // Predicated region
        $region41: #{tpu_custom_call.1} parent=11 // pred_check
          %p390 = pneg %p222
        $region42: #{tpu_custom_call.1} parent=11 // pred_check_branch
          %392 = sbr.rel (%p390) target = $region44
        $region43: #{tpu_custom_call.1} parent=11 // pred_region
          %394 = vsyncadd [#allocation17], 0
          %s395 = sshll.u32 %s8, 4
          %s396 = int_to_ptr.hbm [resolvable:$true] %s395
          %s397 = sshll.u32 [#allocation16], 4
          %s398 = int_to_ptr.vmem [resolvable:$true] %s397
          %403 = dma.hbm_to_vmem [thread:$0]  %s396, 1024, %s398, [#allocation17], 128, 128, 8
        $region44: #{tpu_custom_call.1} parent=11 // pred_fallthru
          _
        // Predicated region
        $region45: #{tpu_custom_call.1} parent=11 // pred_check
          %p404 = pneg %p243
        $region46: #{tpu_custom_call.1} parent=11 // pred_check_branch
          %406 = sbr.rel (%p404) target = $region48
        $region47: #{tpu_custom_call.1} parent=11 // pred_region
          %408 = vsyncadd [#allocation17], 0
          %s409 = sshll.u32 %s9, 4
          %s410 = int_to_ptr.hbm [resolvable:$true] %s409
          %s411 = sshll.u32 [#allocation18], 4
          %s412 = int_to_ptr.vmem [resolvable:$true] %s411
          %417 = dma.hbm_to_vmem [thread:$0]  %s410, 1024, %s412, [#allocation17], 128, 128, 8
        $region48: #{tpu_custom_call.1} parent=11 // pred_fallthru
          _
        // Predicated region
        $region49: #{tpu_custom_call.1} parent=11 // pred_check
          %p418 = pneg %p264
        $region50: #{tpu_custom_call.1} parent=11 // pred_check_branch
          %420 = sbr.rel (%p418) target = $region52
        $region51: #{tpu_custom_call.1} parent=11 // pred_region
          %422 = vsyncadd [#allocation20], 0
          %s423 = sshll.u32 %s10, 4
          %s424 = int_to_ptr.hbm [resolvable:$true] %s423
          %s425 = sshll.u32 [#allocation19], 4
          %s426 = int_to_ptr.vmem [resolvable:$true] %s425
          %431 = dma.hbm_to_vmem [thread:$0]  %s424, 1024, %s426, [#allocation20], 128, 128, 8
        $region52: #{tpu_custom_call.1} parent=11 // pred_fallthru
          _
      $region12: #{tpu_custom_call.1} parent=5 // pred_fallthru
        _
      %p432 = scmp.lt.s32.totalorder %s28, 2
      // Predicated region
      $region53: #{tpu_custom_call.1} parent=5 // pred_check
        %p433 = pneg %p432
      $region54: #{tpu_custom_call.1} parent=5 // pred_check_branch
        %435 = sbr.rel (%p433) target = $region56
      $region55: #{tpu_custom_call.1} parent=5 // pred_region
        // Predicated region
        $region57: #{tpu_custom_call.1} parent=55 // pred_check
          %p436 = pneg %p48
        $region58: #{tpu_custom_call.1} parent=55 // pred_check_branch
          %438 = sbr.rel (%p436) target = $region60
        $region59: #{tpu_custom_call.1} parent=55 // pred_region
          %s439 = sand.u32 %s38, 1
          %s440 = scalar_lea.sflag [#allocation5], %s439
          %s441 = sand.u32 %s38, 1
          %s442 = smul.addr %s441, 128
          %s443 = scalar_lea.vmem [#allocation4], %s442
          %445 = vsyncadd %s440, 0
          %s446 = smul.addr %s28, 16
          %s447 = smul.addr %s446, 8
          %s448 = scalar_lea.hbm %s0, %s447
          %s449 = sshll.u32 %s448, 4
          %s450 = int_to_ptr.hbm [resolvable:$true] %s449
          %s451 = sshll.u32 %s443, 4
          %s452 = int_to_ptr.vmem [resolvable:$true] %s451
          %457 = dma.hbm_to_vmem [thread:$0]  %s450, 2048, %s452, %s440, 256, 256, 16
        $region60: #{tpu_custom_call.1} parent=55 // pred_fallthru
          _
      $region56: #{tpu_custom_call.1} parent=5 // pred_fallthru
        _
      %p458 = scmp.le.s32.totalorder 1, %s28
      %p459 = scmp.lt.s32.totalorder %s28, 3
      %p460 = pnand %p458, %p459
      %p461 = pneg %p460
      // Predicated region
      $region61: #{tpu_custom_call.1} parent=5 // pred_check
        _
      $region62: #{tpu_custom_call.1} parent=5 // pred_check_branch
        %463 = sbr.rel (%p460) target = $region64
      $region63: #{tpu_custom_call.1} parent=5 // pred_region
        %s464 = ssub.s32 %s28, 1
        %s465 = sand.u32 %s41, 1
        %s466 = scalar_lea.sflag [#allocation5], %s465
        %s467 = sand.u32 %s41, 1
        %s468 = smul.addr %s467, 128
        %s469 = scalar_lea.vmem [#allocation4], %s468
        // Predicated region
        $region65: #{tpu_custom_call.1} parent=63 // pred_check
          %p470 = pneg %p54
        $region66: #{tpu_custom_call.1} parent=63 // pred_check_branch
          %472 = sbr.rel (%p470) target = $region68
        $region67: #{tpu_custom_call.1} parent=63 // pred_region
          %474 = dma.done %s466, 2048
        $region68: #{tpu_custom_call.1} parent=63 // pred_fallthru
          _
        // Predicated region
        $region69: #{tpu_custom_call.1} parent=63 // pred_check
          %p475 = pneg %p75
        $region70: #{tpu_custom_call.1} parent=63 // pred_check_branch
          %477 = sbr.rel (%p475) target = $region72
        $region71: #{tpu_custom_call.1} parent=63 // pred_region
          %479 = dma.done [#allocation8], 16
        $region72: #{tpu_custom_call.1} parent=63 // pred_fallthru
          _
        // Predicated region
        $region73: #{tpu_custom_call.1} parent=63 // pred_check
          %p480 = pneg %p117
        $region74: #{tpu_custom_call.1} parent=63 // pred_check_branch
          %482 = sbr.rel (%p480) target = $region76
        $region75: #{tpu_custom_call.1} parent=63 // pred_region
          %484 = dma.done [#allocation8], 1024
        $region76: #{tpu_custom_call.1} parent=63 // pred_fallthru
          _
        // Predicated region
        $region77: #{tpu_custom_call.1} parent=63 // pred_check
          %p485 = pneg %p138
        $region78: #{tpu_custom_call.1} parent=63 // pred_check_branch
          %487 = sbr.rel (%p485) target = $region80
        $region79: #{tpu_custom_call.1} parent=63 // pred_region
          %489 = dma.done [#allocation11], 1024
        $region80: #{tpu_custom_call.1} parent=63 // pred_fallthru
          _
        // Predicated region
        $region81: #{tpu_custom_call.1} parent=63 // pred_check
          %p490 = pneg %p159
        $region82: #{tpu_custom_call.1} parent=63 // pred_check_branch
          %492 = sbr.rel (%p490) target = $region84
        $region83: #{tpu_custom_call.1} parent=63 // pred_region
          %494 = dma.done [#allocation11], 256
        $region84: #{tpu_custom_call.1} parent=63 // pred_fallthru
          _
        // Predicated region
        $region85: #{tpu_custom_call.1} parent=63 // pred_check
          %p495 = pneg %p180
        $region86: #{tpu_custom_call.1} parent=63 // pred_check_branch
          %497 = sbr.rel (%p495) target = $region88
        $region87: #{tpu_custom_call.1} parent=63 // pred_region
          %499 = dma.done [#allocation14], 256
        $region88: #{tpu_custom_call.1} parent=63 // pred_fallthru
          _
        // Predicated region
        $region89: #{tpu_custom_call.1} parent=63 // pred_check
          %p500 = pneg %p201
        $region90: #{tpu_custom_call.1} parent=63 // pred_check_branch
          %502 = sbr.rel (%p500) target = $region92
        $region91: #{tpu_custom_call.1} parent=63 // pred_region
          %504 = dma.done [#allocation14], 1024
        $region92: #{tpu_custom_call.1} parent=63 // pred_fallthru
          _
        // Predicated region
        $region93: #{tpu_custom_call.1} parent=63 // pred_check
          %p505 = pneg %p222
        $region94: #{tpu_custom_call.1} parent=63 // pred_check_branch
          %507 = sbr.rel (%p505) target = $region96
        $region95: #{tpu_custom_call.1} parent=63 // pred_region
          %509 = dma.done [#allocation17], 1024
        $region96: #{tpu_custom_call.1} parent=63 // pred_fallthru
          _
        // Predicated region
        $region97: #{tpu_custom_call.1} parent=63 // pred_check
          %p510 = pneg %p243
        $region98: #{tpu_custom_call.1} parent=63 // pred_check_branch
          %512 = sbr.rel (%p510) target = $region100
        $region99: #{tpu_custom_call.1} parent=63 // pred_region
          %514 = dma.done [#allocation17], 1024
        $region100: #{tpu_custom_call.1} parent=63 // pred_fallthru
          _
        // Predicated region
        $region101: #{tpu_custom_call.1} parent=63 // pred_check
          %p515 = pneg %p264
        $region102: #{tpu_custom_call.1} parent=63 // pred_check_branch
          %517 = sbr.rel (%p515) target = $region104
        $region103: #{tpu_custom_call.1} parent=63 // pred_region
          %519 = dma.done [#allocation20], 1024
        $region104: #{tpu_custom_call.1} parent=63 // pred_fallthru
          _
        %s520 = sand.u32 %s41, 1
        %s521 = scalar_lea.sflag [#allocation5], %s520
        %s522 = sand.u32 %s41, 1
        %s523 = smul.addr %s522, 128
        %s524 = scalar_lea.vmem [#allocation4], %s523
        %p525 = pneg %p54
        %p526 = pneg %p51
        %p527 = pneg %p75
        %p528 = pneg %p72
        %p529 = pneg %p96
        %p530 = pneg %p93
        %p531 = pneg %p117
        %p532 = pneg %p114
        %p533 = pneg %p138
        %p534 = pneg %p135
        %p535 = pneg %p159
        %p536 = pneg %p156
        %p537 = pneg %p180
        %p538 = pneg %p177
        %p539 = pneg %p201
        %p540 = pneg %p198
        %p541 = pneg %p222
        %p542 = pneg %p219
        %p543 = pneg %p243
        %p544 = pneg %p240
        %p545 = pneg %p264
        %p546 = pneg %p261
        %p547 = pneg %p290
        %p548 = pneg %p287
        %s549 = sand.u32 %s277, 1
        %s550 = scalar_lea.sflag [#allocation6], %s549
        %s551 = sand.u32 %s277, 1
        %s552 = smul.addr %s551, 128
        %s553 = scalar_lea.vmem [#allocation21], %s552
        %v554 = vld [vmem:[%s469] sm:$0xff]
        %v555 = vld [vmem:[%s469 + $0x8] sm:$0xff]
        %v556 = vld [vmem:[%s469 + $0x10] sm:$0xff]
        %v557 = vld [vmem:[%s469 + $0x18] sm:$0xff]
        %v558 = vld [vmem:[%s469 + $0x20] sm:$0xff]
        %v559 = vld [vmem:[%s469 + $0x28] sm:$0xff]
        %v560 = vld [vmem:[%s469 + $0x30] sm:$0xff]
        %v561 = vld [vmem:[%s469 + $0x38] sm:$0xff]
        %v562 = vld [vmem:[%s469 + $0x40] sm:$0xff]
        %v563 = vld [vmem:[%s469 + $0x48] sm:$0xff]
        %v564 = vld [vmem:[%s469 + $0x50] sm:$0xff]
        %v565 = vld [vmem:[%s469 + $0x58] sm:$0xff]
        %v566 = vld [vmem:[%s469 + $0x60] sm:$0xff]
        %v567 = vld [vmem:[%s469 + $0x68] sm:$0xff]
        %v568 = vld [vmem:[%s469 + $0x70] sm:$0xff]
        %v569 = vld [vmem:[%s469 + $0x78] sm:$0xff]
        %570 = vxpose.xlu0.b32.start [1/16] %v554, 128
        %571 = vxpose.xlu0.b32.cont [2/16] %v556, 128
        %572 = vxpose.xlu0.b32.cont [3/16] %v558, 128
        %573 = vxpose.xlu0.b32.cont [4/16] %v560, 128
        %574 = vxpose.xlu0.b32.cont [5/16] %v562, 128
        %575 = vxpose.xlu0.b32.cont [6/16] %v564, 128
        %576 = vxpose.xlu0.b32.cont [7/16] %v566, 128
        %577 = vxpose.xlu0.b32.cont [8/16] %v568, 128
        %578 = vxpose.xlu0.b32.cont [9/16] 0.0, 128
        %579 = vxpose.xlu0.b32.cont [10/16] 0.0, 128
        %580 = vxpose.xlu0.b32.cont [11/16] 0.0, 128
        %581 = vxpose.xlu0.b32.cont [12/16] 0.0, 128
        %582 = vxpose.xlu0.b32.cont [13/16] 0.0, 128
        %583 = vxpose.xlu0.b32.cont [14/16] 0.0, 128
        %584 = vxpose.xlu0.b32.cont [15/16] 0.0, 128
        %585 = vxpose.xlu0.b32.end [16/16] 0.0, 128
        %v586 = vpop.trf.xlu0
        %v587 = vpop.trf.xlu0
        %v588 = vpop.trf.xlu0
        %v589 = vpop.trf.xlu0
        %v590 = vpop.trf.xlu0
        %v591 = vpop.trf.xlu0
        %v592 = vpop.trf.xlu0
        %v593 = vpop.trf.xlu0
        %v594 = vpop.trf.xlu0
        %v595 = vpop.trf.xlu0
        %v596 = vpop.trf.xlu0
        %v597 = vpop.trf.xlu0
        %v598 = vpop.trf.xlu0
        %v599 = vpop.trf.xlu0
        %v600 = vpop.trf.xlu0
        %v601 = vpop.trf.xlu0
        %602 = vxpose.xlu0.b32.start [1/16] %v555, 128
        %603 = vxpose.xlu0.b32.cont [2/16] %v557, 128
        %604 = vxpose.xlu0.b32.cont [3/16] %v559, 128
        %605 = vxpose.xlu0.b32.cont [4/16] %v561, 128
        %606 = vxpose.xlu0.b32.cont [5/16] %v563, 128
        %607 = vxpose.xlu0.b32.cont [6/16] %v565, 128
        %608 = vxpose.xlu0.b32.cont [7/16] %v567, 128
        %609 = vxpose.xlu0.b32.cont [8/16] %v569, 128
        %610 = vxpose.xlu0.b32.cont [9/16] 0.0, 128
        %611 = vxpose.xlu0.b32.cont [10/16] 0.0, 128
        %612 = vxpose.xlu0.b32.cont [11/16] 0.0, 128
        %613 = vxpose.xlu0.b32.cont [12/16] 0.0, 128
        %614 = vxpose.xlu0.b32.cont [13/16] 0.0, 128
        %615 = vxpose.xlu0.b32.cont [14/16] 0.0, 128
        %616 = vxpose.xlu0.b32.cont [15/16] 0.0, 128
        %617 = vxpose.xlu0.b32.end [16/16] 0.0, 128
        %v618 = vpop.trf.xlu0
        %v619 = vpop.trf.xlu0
        %v620 = vpop.trf.xlu0
        %v621 = vpop.trf.xlu0
        %v622 = vpop.trf.xlu0
        %v623 = vpop.trf.xlu0
        %v624 = vpop.trf.xlu0
        %v625 = vpop.trf.xlu0
        %v626 = vpop.trf.xlu0
        %v627 = vpop.trf.xlu0
        %v628 = vpop.trf.xlu0
        %v629 = vpop.trf.xlu0
        %v630 = vpop.trf.xlu0
        %v631 = vpop.trf.xlu0
        %v632 = vpop.trf.xlu0
        %v633 = vpop.trf.xlu0
        %vm634 = vcmask 523264
        %v635 = vsel %vm634, %v586, 0.0
        %636 = vadd.xlane.f32.xlu0 %v635
        %v637 = vpop.xlane.xlu0 %636
        %v638 = vsel %vm634, %v587, 0.0
        %639 = vadd.xlane.f32.xlu0 %v638
        %v640 = vpop.xlane.xlu0 %639
        %v641 = vsel %vm634, %v588, 0.0
        %642 = vadd.xlane.f32.xlu0 %v641
        %v643 = vpop.xlane.xlu0 %642
        %v644 = vsel %vm634, %v589, 0.0
        %645 = vadd.xlane.f32.xlu0 %v644
        %v646 = vpop.xlane.xlu0 %645
        %v647 = vsel %vm634, %v590, 0.0
        %648 = vadd.xlane.f32.xlu0 %v647
        %v649 = vpop.xlane.xlu0 %648
        %v650 = vsel %vm634, %v591, 0.0
        %651 = vadd.xlane.f32.xlu0 %v650
        %v652 = vpop.xlane.xlu0 %651
        %v653 = vsel %vm634, %v592, 0.0
        %654 = vadd.xlane.f32.xlu0 %v653
        %v655 = vpop.xlane.xlu0 %654
        %v656 = vsel %vm634, %v593, 0.0
        %657 = vadd.xlane.f32.xlu0 %v656
        %v658 = vpop.xlane.xlu0 %657
        %v659 = vsel %vm634, %v594, 0.0
        %660 = vadd.xlane.f32.xlu0 %v659
        %v661 = vpop.xlane.xlu0 %660
        %v662 = vsel %vm634, %v595, 0.0
        %663 = vadd.xlane.f32.xlu0 %v662
        %v664 = vpop.xlane.xlu0 %663
        %v665 = vsel %vm634, %v596, 0.0
        %666 = vadd.xlane.f32.xlu0 %v665
        %v667 = vpop.xlane.xlu0 %666
        %v668 = vsel %vm634, %v597, 0.0
        %669 = vadd.xlane.f32.xlu0 %v668
        %v670 = vpop.xlane.xlu0 %669
        %v671 = vsel %vm634, %v598, 0.0
        %672 = vadd.xlane.f32.xlu0 %v671
        %v673 = vpop.xlane.xlu0 %672
        %v674 = vsel %vm634, %v599, 0.0
        %675 = vadd.xlane.f32.xlu0 %v674
        %v676 = vpop.xlane.xlu0 %675
        %v677 = vsel %vm634, %v600, 0.0
        %678 = vadd.xlane.f32.xlu0 %v677
        %v679 = vpop.xlane.xlu0 %678
        %v680 = vsel %vm634, %v601, 0.0
        %681 = vadd.xlane.f32.xlu0 %v680
        %v682 = vpop.xlane.xlu0 %681
        %v683 = vsel %vm634, %v618, 0.0
        %684 = vadd.xlane.f32.xlu0 %v683
        %v685 = vpop.xlane.xlu0 %684
        %v686 = vsel %vm634, %v619, 0.0
        %687 = vadd.xlane.f32.xlu0 %v686
        %v688 = vpop.xlane.xlu0 %687
        %v689 = vsel %vm634, %v620, 0.0
        %690 = vadd.xlane.f32.xlu0 %v689
        %v691 = vpop.xlane.xlu0 %690
        %v692 = vsel %vm634, %v621, 0.0
        %693 = vadd.xlane.f32.xlu0 %v692
        %v694 = vpop.xlane.xlu0 %693
        %v695 = vsel %vm634, %v622, 0.0
        %696 = vadd.xlane.f32.xlu0 %v695
        %v697 = vpop.xlane.xlu0 %696
        %v698 = vsel %vm634, %v623, 0.0
        %699 = vadd.xlane.f32.xlu0 %v698
        %v700 = vpop.xlane.xlu0 %699
        %v701 = vsel %vm634, %v624, 0.0
        %702 = vadd.xlane.f32.xlu0 %v701
        %v703 = vpop.xlane.xlu0 %702
        %v704 = vsel %vm634, %v625, 0.0
        %705 = vadd.xlane.f32.xlu0 %v704
        %v706 = vpop.xlane.xlu0 %705
        %v707 = vsel %vm634, %v626, 0.0
        %708 = vadd.xlane.f32.xlu0 %v707
        %v709 = vpop.xlane.xlu0 %708
        %v710 = vsel %vm634, %v627, 0.0
        %711 = vadd.xlane.f32.xlu0 %v710
        %v712 = vpop.xlane.xlu0 %711
        %v713 = vsel %vm634, %v628, 0.0
        %714 = vadd.xlane.f32.xlu0 %v713
        %v715 = vpop.xlane.xlu0 %714
        %v716 = vsel %vm634, %v629, 0.0
        %717 = vadd.xlane.f32.xlu0 %v716
        %v718 = vpop.xlane.xlu0 %717
        %v719 = vsel %vm634, %v630, 0.0
        %720 = vadd.xlane.f32.xlu0 %v719
        %v721 = vpop.xlane.xlu0 %720
        %v722 = vsel %vm634, %v631, 0.0
        %723 = vadd.xlane.f32.xlu0 %v722
        %v724 = vpop.xlane.xlu0 %723
        %v725 = vsel %vm634, %v632, 0.0
        %726 = vadd.xlane.f32.xlu0 %v725
        %v727 = vpop.xlane.xlu0 %726
        %v728 = vsel %vm634, %v633, 0.0
        %729 = vadd.xlane.f32.xlu0 %v728
        %v730 = vpop.xlane.xlu0 %729
        %v731 = vrcp.pop 64.0
        %v732 = vmul.f32 64.0, %v731
        %v733 = vsub.f32 1.0, %v732
        %v734 = vmul.f32 %v731, %v733
        %v735 = vadd.f32 %v731, %v734
        %vm736 = vweird.f32 %v731
        %v737 = vsel %vm736, %v731, %v735
        %v738 = vmul.f32 %v637, %v737
        %v739 = vmul.f32 %v640, %v737
        %v740 = vmul.f32 %v643, %v737
        %v741 = vmul.f32 %v646, %v737
        %v742 = vmul.f32 %v649, %v737
        %v743 = vmul.f32 %v652, %v737
        %v744 = vmul.f32 %v655, %v737
        %v745 = vmul.f32 %v658, %v737
        %v746 = vmul.f32 %v661, %v737
        %v747 = vmul.f32 %v664, %v737
        %v748 = vmul.f32 %v667, %v737
        %v749 = vmul.f32 %v670, %v737
        %v750 = vmul.f32 %v673, %v737
        %v751 = vmul.f32 %v676, %v737
        %v752 = vmul.f32 %v679, %v737
        %v753 = vmul.f32 %v682, %v737
        %v754 = vmul.f32 %v685, %v737
        %v755 = vmul.f32 %v688, %v737
        %v756 = vmul.f32 %v691, %v737
        %v757 = vmul.f32 %v694, %v737
        %v758 = vmul.f32 %v697, %v737
        %v759 = vmul.f32 %v700, %v737
        %v760 = vmul.f32 %v703, %v737
        %v761 = vmul.f32 %v706, %v737
        %v762 = vmul.f32 %v709, %v737
        %v763 = vmul.f32 %v712, %v737
        %v764 = vmul.f32 %v715, %v737
        %v765 = vmul.f32 %v718, %v737
        %v766 = vmul.f32 %v721, %v737
        %v767 = vmul.f32 %v724, %v737
        %v768 = vmul.f32 %v727, %v737
        %v769 = vmul.f32 %v730, %v737
        %v770 = vsub.f32 %v586, %v738
        %v771 = vsub.f32 %v587, %v739
        %v772 = vsub.f32 %v588, %v740
        %v773 = vsub.f32 %v589, %v741
        %v774 = vsub.f32 %v590, %v742
        %v775 = vsub.f32 %v591, %v743
        %v776 = vsub.f32 %v592, %v744
        %v777 = vsub.f32 %v593, %v745
        %v778 = vsub.f32 %v594, %v746
        %v779 = vsub.f32 %v595, %v747
        %v780 = vsub.f32 %v596, %v748
        %v781 = vsub.f32 %v597, %v749
        %v782 = vsub.f32 %v598, %v750
        %v783 = vsub.f32 %v599, %v751
        %v784 = vsub.f32 %v600, %v752
        %v785 = vsub.f32 %v601, %v753
        %v786 = vsub.f32 %v618, %v754
        %v787 = vsub.f32 %v619, %v755
        %v788 = vsub.f32 %v620, %v756
        %v789 = vsub.f32 %v621, %v757
        %v790 = vsub.f32 %v622, %v758
        %v791 = vsub.f32 %v623, %v759
        %v792 = vsub.f32 %v624, %v760
        %v793 = vsub.f32 %v625, %v761
        %v794 = vsub.f32 %v626, %v762
        %v795 = vsub.f32 %v627, %v763
        %v796 = vsub.f32 %v628, %v764
        %v797 = vsub.f32 %v629, %v765
        %v798 = vsub.f32 %v630, %v766
        %v799 = vsub.f32 %v631, %v767
        %v800 = vsub.f32 %v632, %v768
        %v801 = vsub.f32 %v633, %v769
        %v802 = vmul.f32 %v770, %v770
        %v803 = vmul.f32 %v771, %v771
        %v804 = vmul.f32 %v772, %v772
        %v805 = vmul.f32 %v773, %v773
        %v806 = vmul.f32 %v774, %v774
        %v807 = vmul.f32 %v775, %v775
        %v808 = vmul.f32 %v776, %v776
        %v809 = vmul.f32 %v777, %v777
        %v810 = vmul.f32 %v778, %v778
        %v811 = vmul.f32 %v779, %v779
        %v812 = vmul.f32 %v780, %v780
        %v813 = vmul.f32 %v781, %v781
        %v814 = vmul.f32 %v782, %v782
        %v815 = vmul.f32 %v783, %v783
        %v816 = vmul.f32 %v784, %v784
        %v817 = vmul.f32 %v785, %v785
        %v818 = vmul.f32 %v786, %v786
        %v819 = vmul.f32 %v787, %v787
        %v820 = vmul.f32 %v788, %v788
        %v821 = vmul.f32 %v789, %v789
        %v822 = vmul.f32 %v790, %v790
        %v823 = vmul.f32 %v791, %v791
        %v824 = vmul.f32 %v792, %v792
        %v825 = vmul.f32 %v793, %v793
        %v826 = vmul.f32 %v794, %v794
        %v827 = vmul.f32 %v795, %v795
        %v828 = vmul.f32 %v796, %v796
        %v829 = vmul.f32 %v797, %v797
        %v830 = vmul.f32 %v798, %v798
        %v831 = vmul.f32 %v799, %v799
        %v832 = vmul.f32 %v800, %v800
        %v833 = vmul.f32 %v801, %v801
        %v834 = vsel %vm634, %v802, 0.0
        %835 = vadd.xlane.f32.xlu0 %v834
        %v836 = vpop.xlane.xlu0 %835
        %v837 = vsel %vm634, %v803, 0.0
        %838 = vadd.xlane.f32.xlu0 %v837
        %v839 = vpop.xlane.xlu0 %838
        %v840 = vsel %vm634, %v804, 0.0
        %841 = vadd.xlane.f32.xlu0 %v840
        %v842 = vpop.xlane.xlu0 %841
        %v843 = vsel %vm634, %v805, 0.0
        %844 = vadd.xlane.f32.xlu0 %v843
        %v845 = vpop.xlane.xlu0 %844
        %v846 = vsel %vm634, %v806, 0.0
        %847 = vadd.xlane.f32.xlu0 %v846
        %v848 = vpop.xlane.xlu0 %847
        %v849 = vsel %vm634, %v807, 0.0
        %850 = vadd.xlane.f32.xlu0 %v849
        %v851 = vpop.xlane.xlu0 %850
        %v852 = vsel %vm634, %v808, 0.0
        %853 = vadd.xlane.f32.xlu0 %v852
        %v854 = vpop.xlane.xlu0 %853
        %v855 = vsel %vm634, %v809, 0.0
        %856 = vadd.xlane.f32.xlu0 %v855
        %v857 = vpop.xlane.xlu0 %856
        %v858 = vsel %vm634, %v810, 0.0
        %859 = vadd.xlane.f32.xlu0 %v858
        %v860 = vpop.xlane.xlu0 %859
        %v861 = vsel %vm634, %v811, 0.0
        %862 = vadd.xlane.f32.xlu0 %v861
        %v863 = vpop.xlane.xlu0 %862
        %v864 = vsel %vm634, %v812, 0.0
        %865 = vadd.xlane.f32.xlu0 %v864
        %v866 = vpop.xlane.xlu0 %865
        %v867 = vsel %vm634, %v813, 0.0
        %868 = vadd.xlane.f32.xlu0 %v867
        %v869 = vpop.xlane.xlu0 %868
        %v870 = vsel %vm634, %v814, 0.0
        %871 = vadd.xlane.f32.xlu0 %v870
        %v872 = vpop.xlane.xlu0 %871
        %v873 = vsel %vm634, %v815, 0.0
        %874 = vadd.xlane.f32.xlu0 %v873
        %v875 = vpop.xlane.xlu0 %874
        %v876 = vsel %vm634, %v816, 0.0
        %877 = vadd.xlane.f32.xlu0 %v876
        %v878 = vpop.xlane.xlu0 %877
        %v879 = vsel %vm634, %v817, 0.0
        %880 = vadd.xlane.f32.xlu0 %v879
        %v881 = vpop.xlane.xlu0 %880
        %v882 = vsel %vm634, %v818, 0.0
        %883 = vadd.xlane.f32.xlu0 %v882
        %v884 = vpop.xlane.xlu0 %883
        %v885 = vsel %vm634, %v819, 0.0
        %886 = vadd.xlane.f32.xlu0 %v885
        %v887 = vpop.xlane.xlu0 %886
        %v888 = vsel %vm634, %v820, 0.0
        %889 = vadd.xlane.f32.xlu0 %v888
        %v890 = vpop.xlane.xlu0 %889
        %v891 = vsel %vm634, %v821, 0.0
        %892 = vadd.xlane.f32.xlu0 %v891
        %v893 = vpop.xlane.xlu0 %892
        %v894 = vsel %vm634, %v822, 0.0
        %895 = vadd.xlane.f32.xlu0 %v894
        %v896 = vpop.xlane.xlu0 %895
        %v897 = vsel %vm634, %v823, 0.0
        %898 = vadd.xlane.f32.xlu0 %v897
        %v899 = vpop.xlane.xlu0 %898
        %v900 = vsel %vm634, %v824, 0.0
        %901 = vadd.xlane.f32.xlu0 %v900
        %v902 = vpop.xlane.xlu0 %901
        %v903 = vsel %vm634, %v825, 0.0
        %904 = vadd.xlane.f32.xlu0 %v903
        %v905 = vpop.xlane.xlu0 %904
        %v906 = vsel %vm634, %v826, 0.0
        %907 = vadd.xlane.f32.xlu0 %v906
        %v908 = vpop.xlane.xlu0 %907
        %v909 = vsel %vm634, %v827, 0.0
        %910 = vadd.xlane.f32.xlu0 %v909
        %v911 = vpop.xlane.xlu0 %910
        %v912 = vsel %vm634, %v828, 0.0
        %913 = vadd.xlane.f32.xlu0 %v912
        %v914 = vpop.xlane.xlu0 %913
        %v915 = vsel %vm634, %v829, 0.0
        %916 = vadd.xlane.f32.xlu0 %v915
        %v917 = vpop.xlane.xlu0 %916
        %v918 = vsel %vm634, %v830, 0.0
        %919 = vadd.xlane.f32.xlu0 %v918
        %v920 = vpop.xlane.xlu0 %919
        %v921 = vsel %vm634, %v831, 0.0
        %922 = vadd.xlane.f32.xlu0 %v921
        %v923 = vpop.xlane.xlu0 %922
        %v924 = vsel %vm634, %v832, 0.0
        %925 = vadd.xlane.f32.xlu0 %v924
        %v926 = vpop.xlane.xlu0 %925
        %v927 = vsel %vm634, %v833, 0.0
        %928 = vadd.xlane.f32.xlu0 %v927
        %v929 = vpop.xlane.xlu0 %928
        %v930 = vmul.f32 %v836, %v737
        %v931 = vmul.f32 %v839, %v737
        %v932 = vmul.f32 %v842, %v737
        %v933 = vmul.f32 %v845, %v737
        %v934 = vmul.f32 %v848, %v737
        %v935 = vmul.f32 %v851, %v737
        %v936 = vmul.f32 %v854, %v737
        %v937 = vmul.f32 %v857, %v737
        %v938 = vmul.f32 %v860, %v737
        %v939 = vmul.f32 %v863, %v737
        %v940 = vmul.f32 %v866, %v737
        %v941 = vmul.f32 %v869, %v737
        %v942 = vmul.f32 %v872, %v737
        %v943 = vmul.f32 %v875, %v737
        %v944 = vmul.f32 %v878, %v737
        %v945 = vmul.f32 %v881, %v737
        %v946 = vmul.f32 %v884, %v737
        %v947 = vmul.f32 %v887, %v737
        %v948 = vmul.f32 %v890, %v737
        %v949 = vmul.f32 %v893, %v737
        %v950 = vmul.f32 %v896, %v737
        %v951 = vmul.f32 %v899, %v737
        %v952 = vmul.f32 %v902, %v737
        %v953 = vmul.f32 %v905, %v737
        %v954 = vmul.f32 %v908, %v737
        %v955 = vmul.f32 %v911, %v737
        %v956 = vmul.f32 %v914, %v737
        %v957 = vmul.f32 %v917, %v737
        %v958 = vmul.f32 %v920, %v737
        %v959 = vmul.f32 %v923, %v737
        %v960 = vmul.f32 %v926, %v737
        %v961 = vmul.f32 %v929, %v737
        %v962 = vadd.f32 %v930, 1e-06
        %v963 = vadd.f32 %v931, 1e-06
        %v964 = vadd.f32 %v932, 1e-06
        %v965 = vadd.f32 %v933, 1e-06
        %v966 = vadd.f32 %v934, 1e-06
        %v967 = vadd.f32 %v935, 1e-06
        %v968 = vadd.f32 %v936, 1e-06
        %v969 = vadd.f32 %v937, 1e-06
        %v970 = vadd.f32 %v938, 1e-06
        %v971 = vadd.f32 %v939, 1e-06
        %v972 = vadd.f32 %v940, 1e-06
        %v973 = vadd.f32 %v941, 1e-06
        %v974 = vadd.f32 %v942, 1e-06
        %v975 = vadd.f32 %v943, 1e-06
        %v976 = vadd.f32 %v944, 1e-06
        %v977 = vadd.f32 %v945, 1e-06
        %v978 = vadd.f32 %v946, 1e-06
        %v979 = vadd.f32 %v947, 1e-06
        %v980 = vadd.f32 %v948, 1e-06
        %v981 = vadd.f32 %v949, 1e-06
        %v982 = vadd.f32 %v950, 1e-06
        %v983 = vadd.f32 %v951, 1e-06
        %v984 = vadd.f32 %v952, 1e-06
        %v985 = vadd.f32 %v953, 1e-06
        %v986 = vadd.f32 %v954, 1e-06
        %v987 = vadd.f32 %v955, 1e-06
        %v988 = vadd.f32 %v956, 1e-06
        %v989 = vadd.f32 %v957, 1e-06
        %v990 = vadd.f32 %v958, 1e-06
        %v991 = vadd.f32 %v959, 1e-06
        %v992 = vadd.f32 %v960, 1e-06
        %v993 = vadd.f32 %v961, 1e-06
        %v994 = vrsqrt.pop %v962
        %v995 = vmul.f32 %v994, %v962
        %v996 = vmul.f32 %v995, %v994
        %v997 = vmul.f32 0.5, %v996
        %v998 = vsub.f32 1.5, %v997
        %v999 = vmul.f32 %v994, %v998
        %vm1000 = vweird.f32 %v962
        %vm1001 = vweird.f32 %v994
        %vm1002 = vmor %vm1000, %vm1001
        %v1003 = vsel %vm1002, %v994, %v999
        %v1004 = vrsqrt.pop %v963
        %v1005 = vmul.f32 %v1004, %v963
        %v1006 = vmul.f32 %v1005, %v1004
        %v1007 = vmul.f32 0.5, %v1006
        %v1008 = vsub.f32 1.5, %v1007
        %v1009 = vmul.f32 %v1004, %v1008
        %vm1010 = vweird.f32 %v963
        %vm1011 = vweird.f32 %v1004
        %vm1012 = vmor %vm1010, %vm1011
        %v1013 = vsel %vm1012, %v1004, %v1009
        %v1014 = vrsqrt.pop %v964
        %v1015 = vmul.f32 %v1014, %v964
        %v1016 = vmul.f32 %v1015, %v1014
        %v1017 = vmul.f32 0.5, %v1016
        %v1018 = vsub.f32 1.5, %v1017
        %v1019 = vmul.f32 %v1014, %v1018
        %vm1020 = vweird.f32 %v964
        %vm1021 = vweird.f32 %v1014
        %vm1022 = vmor %vm1020, %vm1021
        %v1023 = vsel %vm1022, %v1014, %v1019
        %v1024 = vrsqrt.pop %v965
        %v1025 = vmul.f32 %v1024, %v965
        %v1026 = vmul.f32 %v1025, %v1024
        %v1027 = vmul.f32 0.5, %v1026
        %v1028 = vsub.f32 1.5, %v1027
        %v1029 = vmul.f32 %v1024, %v1028
        %vm1030 = vweird.f32 %v965
        %vm1031 = vweird.f32 %v1024
        %vm1032 = vmor %vm1030, %vm1031
        %v1033 = vsel %vm1032, %v1024, %v1029
        %v1034 = vrsqrt.pop %v966
        %v1035 = vmul.f32 %v1034, %v966
        %v1036 = vmul.f32 %v1035, %v1034
        %v1037 = vmul.f32 0.5, %v1036
        %v1038 = vsub.f32 1.5, %v1037
        %v1039 = vmul.f32 %v1034, %v1038
        %vm1040 = vweird.f32 %v966
        %vm1041 = vweird.f32 %v1034
        %vm1042 = vmor %vm1040, %vm1041
        %v1043 = vsel %vm1042, %v1034, %v1039
        %v1044 = vrsqrt.pop %v967
        %v1045 = vmul.f32 %v1044, %v967
        %v1046 = vmul.f32 %v1045, %v1044
        %v1047 = vmul.f32 0.5, %v1046
        %v1048 = vsub.f32 1.5, %v1047
        %v1049 = vmul.f32 %v1044, %v1048
        %vm1050 = vweird.f32 %v967
        %vm1051 = vweird.f32 %v1044
        %vm1052 = vmor %vm1050, %vm1051
        %v1053 = vsel %vm1052, %v1044, %v1049
        %v1054 = vrsqrt.pop %v968
        %v1055 = vmul.f32 %v1054, %v968
        %v1056 = vmul.f32 %v1055, %v1054
        %v1057 = vmul.f32 0.5, %v1056
        %v1058 = vsub.f32 1.5, %v1057
        %v1059 = vmul.f32 %v1054, %v1058
        %vm1060 = vweird.f32 %v968
        %vm1061 = vweird.f32 %v1054
        %vm1062 = vmor %vm1060, %vm1061
        %v1063 = vsel %vm1062, %v1054, %v1059
        %v1064 = vrsqrt.pop %v969
        %v1065 = vmul.f32 %v1064, %v969
        %v1066 = vmul.f32 %v1065, %v1064
        %v1067 = vmul.f32 0.5, %v1066
        %v1068 = vsub.f32 1.5, %v1067
        %v1069 = vmul.f32 %v1064, %v1068
        %vm1070 = vweird.f32 %v969
        %vm1071 = vweird.f32 %v1064
        %vm1072 = vmor %vm1070, %vm1071
        %v1073 = vsel %vm1072, %v1064, %v1069
        %v1074 = vrsqrt.pop %v970
        %v1075 = vmul.f32 %v1074, %v970
        %v1076 = vmul.f32 %v1075, %v1074
        %v1077 = vmul.f32 0.5, %v1076
        %v1078 = vsub.f32 1.5, %v1077
        %v1079 = vmul.f32 %v1074, %v1078
        %vm1080 = vweird.f32 %v970
        %vm1081 = vweird.f32 %v1074
        %vm1082 = vmor %vm1080, %vm1081
        %v1083 = vsel %vm1082, %v1074, %v1079
        %v1084 = vrsqrt.pop %v971
        %v1085 = vmul.f32 %v1084, %v971
        %v1086 = vmul.f32 %v1085, %v1084
        %v1087 = vmul.f32 0.5, %v1086
        %v1088 = vsub.f32 1.5, %v1087
        %v1089 = vmul.f32 %v1084, %v1088
        %vm1090 = vweird.f32 %v971
        %vm1091 = vweird.f32 %v1084
        %vm1092 = vmor %vm1090, %vm1091
        %v1093 = vsel %vm1092, %v1084, %v1089
        %v1094 = vrsqrt.pop %v972
        %v1095 = vmul.f32 %v1094, %v972
        %v1096 = vmul.f32 %v1095, %v1094
        %v1097 = vmul.f32 0.5, %v1096
        %v1098 = vsub.f32 1.5, %v1097
        %v1099 = vmul.f32 %v1094, %v1098
        %vm1100 = vweird.f32 %v972
        %vm1101 = vweird.f32 %v1094
        %vm1102 = vmor %vm1100, %vm1101
        %v1103 = vsel %vm1102, %v1094, %v1099
        %v1104 = vrsqrt.pop %v973
        %v1105 = vmul.f32 %v1104, %v973
        %v1106 = vmul.f32 %v1105, %v1104
        %v1107 = vmul.f32 0.5, %v1106
        %v1108 = vsub.f32 1.5, %v1107
        %v1109 = vmul.f32 %v1104, %v1108
        %vm1110 = vweird.f32 %v973
        %vm1111 = vweird.f32 %v1104
        %vm1112 = vmor %vm1110, %vm1111
        %v1113 = vsel %vm1112, %v1104, %v1109
        %v1114 = vrsqrt.pop %v974
        %v1115 = vmul.f32 %v1114, %v974
        %v1116 = vmul.f32 %v1115, %v1114
        %v1117 = vmul.f32 0.5, %v1116
        %v1118 = vsub.f32 1.5, %v1117
        %v1119 = vmul.f32 %v1114, %v1118
        %vm1120 = vweird.f32 %v974
        %vm1121 = vweird.f32 %v1114
        %vm1122 = vmor %vm1120, %vm1121
        %v1123 = vsel %vm1122, %v1114, %v1119
        %v1124 = vrsqrt.pop %v975
        %v1125 = vmul.f32 %v1124, %v975
        %v1126 = vmul.f32 %v1125, %v1124
        %v1127 = vmul.f32 0.5, %v1126
        %v1128 = vsub.f32 1.5, %v1127
        %v1129 = vmul.f32 %v1124, %v1128
        %vm1130 = vweird.f32 %v975
        %vm1131 = vweird.f32 %v1124
        %vm1132 = vmor %vm1130, %vm1131
        %v1133 = vsel %vm1132, %v1124, %v1129
        %v1134 = vrsqrt.pop %v976
        %v1135 = vmul.f32 %v1134, %v976
        %v1136 = vmul.f32 %v1135, %v1134
        %v1137 = vmul.f32 0.5, %v1136
        %v1138 = vsub.f32 1.5, %v1137
        %v1139 = vmul.f32 %v1134, %v1138
        %vm1140 = vweird.f32 %v976
        %vm1141 = vweird.f32 %v1134
        %vm1142 = vmor %vm1140, %vm1141
        %v1143 = vsel %vm1142, %v1134, %v1139
        %v1144 = vrsqrt.pop %v977
        %v1145 = vmul.f32 %v1144, %v977
        %v1146 = vmul.f32 %v1145, %v1144
        %v1147 = vmul.f32 0.5, %v1146
        %v1148 = vsub.f32 1.5, %v1147
        %v1149 = vmul.f32 %v1144, %v1148
        %vm1150 = vweird.f32 %v977
        %vm1151 = vweird.f32 %v1144
        %vm1152 = vmor %vm1150, %vm1151
        %v1153 = vsel %vm1152, %v1144, %v1149
        %v1154 = vrsqrt.pop %v978
        %v1155 = vmul.f32 %v1154, %v978
        %v1156 = vmul.f32 %v1155, %v1154
        %v1157 = vmul.f32 0.5, %v1156
        %v1158 = vsub.f32 1.5, %v1157
        %v1159 = vmul.f32 %v1154, %v1158
        %vm1160 = vweird.f32 %v978
        %vm1161 = vweird.f32 %v1154
        %vm1162 = vmor %vm1160, %vm1161
        %v1163 = vsel %vm1162, %v1154, %v1159
        %v1164 = vrsqrt.pop %v979
        %v1165 = vmul.f32 %v1164, %v979
        %v1166 = vmul.f32 %v1165, %v1164
        %v1167 = vmul.f32 0.5, %v1166
        %v1168 = vsub.f32 1.5, %v1167
        %v1169 = vmul.f32 %v1164, %v1168
        %vm1170 = vweird.f32 %v979
        %vm1171 = vweird.f32 %v1164
        %vm1172 = vmor %vm1170, %vm1171
        %v1173 = vsel %vm1172, %v1164, %v1169
        %v1174 = vrsqrt.pop %v980
        %v1175 = vmul.f32 %v1174, %v980
        %v1176 = vmul.f32 %v1175, %v1174
        %v1177 = vmul.f32 0.5, %v1176
        %v1178 = vsub.f32 1.5, %v1177
        %v1179 = vmul.f32 %v1174, %v1178
        %vm1180 = vweird.f32 %v980
        %vm1181 = vweird.f32 %v1174
        %vm1182 = vmor %vm1180, %vm1181
        %v1183 = vsel %vm1182, %v1174, %v1179
        %v1184 = vrsqrt.pop %v981
        %v1185 = vmul.f32 %v1184, %v981
        %v1186 = vmul.f32 %v1185, %v1184
        %v1187 = vmul.f32 0.5, %v1186
        %v1188 = vsub.f32 1.5, %v1187
        %v1189 = vmul.f32 %v1184, %v1188
        %vm1190 = vweird.f32 %v981
        %vm1191 = vweird.f32 %v1184
        %vm1192 = vmor %vm1190, %vm1191
        %v1193 = vsel %vm1192, %v1184, %v1189
        %v1194 = vrsqrt.pop %v982
        %v1195 = vmul.f32 %v1194, %v982
        %v1196 = vmul.f32 %v1195, %v1194
        %v1197 = vmul.f32 0.5, %v1196
        %v1198 = vsub.f32 1.5, %v1197
        %v1199 = vmul.f32 %v1194, %v1198
        %vm1200 = vweird.f32 %v982
        %vm1201 = vweird.f32 %v1194
        %vm1202 = vmor %vm1200, %vm1201
        %v1203 = vsel %vm1202, %v1194, %v1199
        %v1204 = vrsqrt.pop %v983
        %v1205 = vmul.f32 %v1204, %v983
        %v1206 = vmul.f32 %v1205, %v1204
        %v1207 = vmul.f32 0.5, %v1206
        %v1208 = vsub.f32 1.5, %v1207
        %v1209 = vmul.f32 %v1204, %v1208
        %vm1210 = vweird.f32 %v983
        %vm1211 = vweird.f32 %v1204
        %vm1212 = vmor %vm1210, %vm1211
        %v1213 = vsel %vm1212, %v1204, %v1209
        %v1214 = vrsqrt.pop %v984
        %v1215 = vmul.f32 %v1214, %v984
        %v1216 = vmul.f32 %v1215, %v1214
        %v1217 = vmul.f32 0.5, %v1216
        %v1218 = vsub.f32 1.5, %v1217
        %v1219 = vmul.f32 %v1214, %v1218
        %vm1220 = vweird.f32 %v984
        %vm1221 = vweird.f32 %v1214
        %vm1222 = vmor %vm1220, %vm1221
        %v1223 = vsel %vm1222, %v1214, %v1219
        %v1224 = vrsqrt.pop %v985
        %v1225 = vmul.f32 %v1224, %v985
        %v1226 = vmul.f32 %v1225, %v1224
        %v1227 = vmul.f32 0.5, %v1226
        %v1228 = vsub.f32 1.5, %v1227
        %v1229 = vmul.f32 %v1224, %v1228
        %vm1230 = vweird.f32 %v985
        %vm1231 = vweird.f32 %v1224
        %vm1232 = vmor %vm1230, %vm1231
        %v1233 = vsel %vm1232, %v1224, %v1229
        %v1234 = vrsqrt.pop %v986
        %v1235 = vmul.f32 %v1234, %v986
        %v1236 = vmul.f32 %v1235, %v1234
        %v1237 = vmul.f32 0.5, %v1236
        %v1238 = vsub.f32 1.5, %v1237
        %v1239 = vmul.f32 %v1234, %v1238
        %vm1240 = vweird.f32 %v986
        %vm1241 = vweird.f32 %v1234
        %vm1242 = vmor %vm1240, %vm1241
        %v1243 = vsel %vm1242, %v1234, %v1239
        %v1244 = vrsqrt.pop %v987
        %v1245 = vmul.f32 %v1244, %v987
        %v1246 = vmul.f32 %v1245, %v1244
        %v1247 = vmul.f32 0.5, %v1246
        %v1248 = vsub.f32 1.5, %v1247
        %v1249 = vmul.f32 %v1244, %v1248
        %vm1250 = vweird.f32 %v987
        %vm1251 = vweird.f32 %v1244
        %vm1252 = vmor %vm1250, %vm1251
        %v1253 = vsel %vm1252, %v1244, %v1249
        %v1254 = vrsqrt.pop %v988
        %v1255 = vmul.f32 %v1254, %v988
        %v1256 = vmul.f32 %v1255, %v1254
        %v1257 = vmul.f32 0.5, %v1256
        %v1258 = vsub.f32 1.5, %v1257
        %v1259 = vmul.f32 %v1254, %v1258
        %vm1260 = vweird.f32 %v988
        %vm1261 = vweird.f32 %v1254
        %vm1262 = vmor %vm1260, %vm1261
        %v1263 = vsel %vm1262, %v1254, %v1259
        %v1264 = vrsqrt.pop %v989
        %v1265 = vmul.f32 %v1264, %v989
        %v1266 = vmul.f32 %v1265, %v1264
        %v1267 = vmul.f32 0.5, %v1266
        %v1268 = vsub.f32 1.5, %v1267
        %v1269 = vmul.f32 %v1264, %v1268
        %vm1270 = vweird.f32 %v989
        %vm1271 = vweird.f32 %v1264
        %vm1272 = vmor %vm1270, %vm1271
        %v1273 = vsel %vm1272, %v1264, %v1269
        %v1274 = vrsqrt.pop %v990
        %v1275 = vmul.f32 %v1274, %v990
        %v1276 = vmul.f32 %v1275, %v1274
        %v1277 = vmul.f32 0.5, %v1276
        %v1278 = vsub.f32 1.5, %v1277
        %v1279 = vmul.f32 %v1274, %v1278
        %vm1280 = vweird.f32 %v990
        %vm1281 = vweird.f32 %v1274
        %vm1282 = vmor %vm1280, %vm1281
        %v1283 = vsel %vm1282, %v1274, %v1279
        %v1284 = vrsqrt.pop %v991
        %v1285 = vmul.f32 %v1284, %v991
        %v1286 = vmul.f32 %v1285, %v1284
        %v1287 = vmul.f32 0.5, %v1286
        %v1288 = vsub.f32 1.5, %v1287
        %v1289 = vmul.f32 %v1284, %v1288
        %vm1290 = vweird.f32 %v991
        %vm1291 = vweird.f32 %v1284
        %vm1292 = vmor %vm1290, %vm1291
        %v1293 = vsel %vm1292, %v1284, %v1289
        %v1294 = vrsqrt.pop %v992
        %v1295 = vmul.f32 %v1294, %v992
        %v1296 = vmul.f32 %v1295, %v1294
        %v1297 = vmul.f32 0.5, %v1296
        %v1298 = vsub.f32 1.5, %v1297
        %v1299 = vmul.f32 %v1294, %v1298
        %vm1300 = vweird.f32 %v992
        %vm1301 = vweird.f32 %v1294
        %vm1302 = vmor %vm1300, %vm1301
        %v1303 = vsel %vm1302, %v1294, %v1299
        %v1304 = vrsqrt.pop %v993
        %v1305 = vmul.f32 %v1304, %v993
        %v1306 = vmul.f32 %v1305, %v1304
        %v1307 = vmul.f32 0.5, %v1306
        %v1308 = vsub.f32 1.5, %v1307
        %v1309 = vmul.f32 %v1304, %v1308
        %vm1310 = vweird.f32 %v993
        %vm1311 = vweird.f32 %v1304
        %vm1312 = vmor %vm1310, %vm1311
        %v1313 = vsel %vm1312, %v1304, %v1309
        %v1314 = vmul.f32 %v770, %v1003
        %v1315 = vmul.f32 %v771, %v1013
        %v1316 = vmul.f32 %v772, %v1023
        %v1317 = vmul.f32 %v773, %v1033
        %v1318 = vmul.f32 %v774, %v1043
        %v1319 = vmul.f32 %v775, %v1053
        %v1320 = vmul.f32 %v776, %v1063
        %v1321 = vmul.f32 %v777, %v1073
        %v1322 = vmul.f32 %v778, %v1083
        %v1323 = vmul.f32 %v779, %v1093
        %v1324 = vmul.f32 %v780, %v1103
        %v1325 = vmul.f32 %v781, %v1113
        %v1326 = vmul.f32 %v782, %v1123
        %v1327 = vmul.f32 %v783, %v1133
        %v1328 = vmul.f32 %v784, %v1143
        %v1329 = vmul.f32 %v785, %v1153
        %v1330 = vmul.f32 %v786, %v1163
        %v1331 = vmul.f32 %v787, %v1173
        %v1332 = vmul.f32 %v788, %v1183
        %v1333 = vmul.f32 %v789, %v1193
        %v1334 = vmul.f32 %v790, %v1203
        %v1335 = vmul.f32 %v791, %v1213
        %v1336 = vmul.f32 %v792, %v1223
        %v1337 = vmul.f32 %v793, %v1233
        %v1338 = vmul.f32 %v794, %v1243
        %v1339 = vmul.f32 %v795, %v1253
        %v1340 = vmul.f32 %v796, %v1263
        %v1341 = vmul.f32 %v797, %v1273
        %v1342 = vmul.f32 %v798, %v1283
        %v1343 = vmul.f32 %v799, %v1293
        %v1344 = vmul.f32 %v800, %v1303
        %v1345 = vmul.f32 %v801, %v1313
        %v1346 = vld [vmem:[#allocation7] sm:$0x1]
        %v1348 = vperm.slane %v1346, 0
        %v1350 = vmul.f32 %v1314, %v1348
        %v1351 = vmul.f32 %v1315, %v1348
        %v1352 = vmul.f32 %v1316, %v1348
        %v1353 = vmul.f32 %v1317, %v1348
        %v1354 = vmul.f32 %v1318, %v1348
        %v1355 = vmul.f32 %v1319, %v1348
        %v1356 = vmul.f32 %v1320, %v1348
        %v1357 = vmul.f32 %v1321, %v1348
        %v1358 = vmul.f32 %v1322, %v1348
        %v1359 = vmul.f32 %v1323, %v1348
        %v1360 = vmul.f32 %v1324, %v1348
        %v1361 = vmul.f32 %v1325, %v1348
        %v1362 = vmul.f32 %v1326, %v1348
        %v1363 = vmul.f32 %v1327, %v1348
        %v1364 = vmul.f32 %v1328, %v1348
        %v1365 = vmul.f32 %v1329, %v1348
        %v1366 = vmul.f32 %v1330, %v1348
        %v1367 = vmul.f32 %v1331, %v1348
        %v1368 = vmul.f32 %v1332, %v1348
        %v1369 = vmul.f32 %v1333, %v1348
        %v1370 = vmul.f32 %v1334, %v1348
        %v1371 = vmul.f32 %v1335, %v1348
        %v1372 = vmul.f32 %v1336, %v1348
        %v1373 = vmul.f32 %v1337, %v1348
        %v1374 = vmul.f32 %v1338, %v1348
        %v1375 = vmul.f32 %v1339, %v1348
        %v1376 = vmul.f32 %v1340, %v1348
        %v1377 = vmul.f32 %v1341, %v1348
        %v1378 = vmul.f32 %v1342, %v1348
        %v1379 = vmul.f32 %v1343, %v1348
        %v1380 = vmul.f32 %v1344, %v1348
        %v1381 = vmul.f32 %v1345, %v1348
        %v1382 = vld [vmem:[%s2] sm:$0x1]
        %v1384 = vperm.slane %v1382, 0
        %v1386 = vadd.f32 %v1350, %v1384
        %v1387 = vadd.f32 %v1351, %v1384
        %v1388 = vadd.f32 %v1352, %v1384
        %v1389 = vadd.f32 %v1353, %v1384
        %v1390 = vadd.f32 %v1354, %v1384
        %v1391 = vadd.f32 %v1355, %v1384
        %v1392 = vadd.f32 %v1356, %v1384
        %v1393 = vadd.f32 %v1357, %v1384
        %v1394 = vadd.f32 %v1358, %v1384
        %v1395 = vadd.f32 %v1359, %v1384
        %v1396 = vadd.f32 %v1360, %v1384
        %v1397 = vadd.f32 %v1361, %v1384
        %v1398 = vadd.f32 %v1362, %v1384
        %v1399 = vadd.f32 %v1363, %v1384
        %v1400 = vadd.f32 %v1364, %v1384
        %v1401 = vadd.f32 %v1365, %v1384
        %v1402 = vadd.f32 %v1366, %v1384
        %v1403 = vadd.f32 %v1367, %v1384
        %v1404 = vadd.f32 %v1368, %v1384
        %v1405 = vadd.f32 %v1369, %v1384
        %v1406 = vadd.f32 %v1370, %v1384
        %v1407 = vadd.f32 %v1371, %v1384
        %v1408 = vadd.f32 %v1372, %v1384
        %v1409 = vadd.f32 %v1373, %v1384
        %v1410 = vadd.f32 %v1374, %v1384
        %v1411 = vadd.f32 %v1375, %v1384
        %v1412 = vadd.f32 %v1376, %v1384
        %v1413 = vadd.f32 %v1377, %v1384
        %v1414 = vadd.f32 %v1378, %v1384
        %v1415 = vadd.f32 %v1379, %v1384
        %v1416 = vadd.f32 %v1380, %v1384
        %v1417 = vadd.f32 %v1381, %v1384
        %v1418 = vld [vmem:[#allocation9] sm:$0xff]
        %v1419 = vld [vmem:[#allocation9 + $0x8] sm:$0xff]
        %v1420 = vld [vmem:[#allocation9 + $0x10] sm:$0xff]
        %v1421 = vld [vmem:[#allocation9 + $0x18] sm:$0xff]
        %v1422 = vld [vmem:[#allocation9 + $0x20] sm:$0xff]
        %v1423 = vld [vmem:[#allocation9 + $0x28] sm:$0xff]
        %v1424 = vld [vmem:[#allocation9 + $0x30] sm:$0xff]
        %v1425 = vld [vmem:[#allocation9 + $0x38] sm:$0xff]
        %v1427 = vsel %vm634, %v1386, 0
        %v1430 = vsel %vm634, %v1387, 0
        %v1433 = vsel %vm634, %v1388, 0
        %v1436 = vsel %vm634, %v1389, 0
        %v1439 = vsel %vm634, %v1390, 0
        %v1442 = vsel %vm634, %v1391, 0
        %v1445 = vsel %vm634, %v1392, 0
        %v1448 = vsel %vm634, %v1393, 0
        %v1451 = vsel %vm634, %v1394, 0
        %v1454 = vsel %vm634, %v1395, 0
        %v1457 = vsel %vm634, %v1396, 0
        %v1460 = vsel %vm634, %v1397, 0
        %v1463 = vsel %vm634, %v1398, 0
        %v1466 = vsel %vm634, %v1399, 0
        %v1469 = vsel %vm634, %v1400, 0
        %v1472 = vsel %vm634, %v1401, 0
        %v1475 = vsel %vm634, %v1402, 0
        %v1478 = vsel %vm634, %v1403, 0
        %v1481 = vsel %vm634, %v1404, 0
        %v1484 = vsel %vm634, %v1405, 0
        %v1487 = vsel %vm634, %v1406, 0
        %v1490 = vsel %vm634, %v1407, 0
        %v1493 = vsel %vm634, %v1408, 0
        %v1496 = vsel %vm634, %v1409, 0
        %v1499 = vsel %vm634, %v1410, 0
        %v1502 = vsel %vm634, %v1411, 0
        %v1505 = vsel %vm634, %v1412, 0
        %v1508 = vsel %vm634, %v1413, 0
        %v1511 = vsel %vm634, %v1414, 0
        %v1514 = vsel %vm634, %v1415, 0
        %v1517 = vsel %vm634, %v1416, 0
        %v1520 = vsel %vm634, %v1417, 0
        %1522 = vmatpush.msra.mxu0 0.0
        %1523 = vmatpush.msra.mxu0 0.0
        %1524 = vmatpush.msra.mxu0 0.0
        %1525 = vmatpush.msra.mxu0 0.0
        %1526 = vmatpush.msra.mxu0 0.0
        %1527 = vmatpush.msra.mxu0 0.0
        %1528 = vmatpush.msra.mxu0 0.0
        %1529 = vmatpush.msra.mxu0 0.0
        %1530 = vmatpush.msra.mxu0 %v1425
        %1531 = vmatpush.msra.mxu0 %v1424
        %1532 = vmatpush.msra.mxu0 %v1423
        %1533 = vmatpush.msra.mxu0 %v1422
        %1534 = vmatpush.msra.mxu0 %v1421
        %1535 = vmatpush.msra.mxu0 %v1420
        %1536 = vmatpush.msra.mxu0 %v1419
        %1537 = vmatpush.msra.mxu0 %v1418
        %1538 = vmatmul.f32.gmra.mxu0 %v1427
        %v1539 = vpop.f32.mrf.mxu0
        %v1540 = vadd.f32 0.0, %v1539
        %1541 = vmatmul.f32.gmra.mxu0 %v1430
        %v1542 = vpop.f32.mrf.mxu0
        %v1543 = vadd.f32 0.0, %v1542
        %1544 = vmatmul.f32.gmra.mxu0 %v1433
        %v1545 = vpop.f32.mrf.mxu0
        %v1546 = vadd.f32 0.0, %v1545
        %1547 = vmatmul.f32.gmra.mxu0 %v1436
        %v1548 = vpop.f32.mrf.mxu0
        %v1549 = vadd.f32 0.0, %v1548
        %1550 = vmatmul.f32.gmra.mxu0 %v1439
        %v1551 = vpop.f32.mrf.mxu0
        %v1552 = vadd.f32 0.0, %v1551
        %1553 = vmatmul.f32.gmra.mxu0 %v1442
        %v1554 = vpop.f32.mrf.mxu0
        %v1555 = vadd.f32 0.0, %v1554
        %1556 = vmatmul.f32.gmra.mxu0 %v1445
        %v1557 = vpop.f32.mrf.mxu0
        %v1558 = vadd.f32 0.0, %v1557
        %1559 = vmatmul.f32.gmra.mxu0 %v1448
        %v1560 = vpop.f32.mrf.mxu0
        %v1561 = vadd.f32 0.0, %v1560
        %1562 = vmatmul.f32.gmra.mxu0 %v1451
        %v1563 = vpop.f32.mrf.mxu0
        %v1564 = vadd.f32 0.0, %v1563
        %1565 = vmatmul.f32.gmra.mxu0 %v1454
        %v1566 = vpop.f32.mrf.mxu0
        %v1567 = vadd.f32 0.0, %v1566
        %1568 = vmatmul.f32.gmra.mxu0 %v1457
        %v1569 = vpop.f32.mrf.mxu0
        %v1570 = vadd.f32 0.0, %v1569
        %1571 = vmatmul.f32.gmra.mxu0 %v1460
        %v1572 = vpop.f32.mrf.mxu0
        %v1573 = vadd.f32 0.0, %v1572
        %1574 = vmatmul.f32.gmra.mxu0 %v1463
        %v1575 = vpop.f32.mrf.mxu0
        %v1576 = vadd.f32 0.0, %v1575
        %1577 = vmatmul.f32.gmra.mxu0 %v1466
        %v1578 = vpop.f32.mrf.mxu0
        %v1579 = vadd.f32 0.0, %v1578
        %1580 = vmatmul.f32.gmra.mxu0 %v1469
        %v1581 = vpop.f32.mrf.mxu0
        %v1582 = vadd.f32 0.0, %v1581
        %1583 = vmatmul.f32.gmra.mxu0 %v1472
        %v1584 = vpop.f32.mrf.mxu0
        %v1585 = vadd.f32 0.0, %v1584
        %1586 = vmatmul.f32.gmra.mxu0 %v1475
        %v1587 = vpop.f32.mrf.mxu0
        %v1588 = vadd.f32 0.0, %v1587
        %1589 = vmatmul.f32.gmra.mxu0 %v1478
        %v1590 = vpop.f32.mrf.mxu0
        %v1591 = vadd.f32 0.0, %v1590
        %1592 = vmatmul.f32.gmra.mxu0 %v1481
        %v1593 = vpop.f32.mrf.mxu0
        %v1594 = vadd.f32 0.0, %v1593
        %1595 = vmatmul.f32.gmra.mxu0 %v1484
        %v1596 = vpop.f32.mrf.mxu0
        %v1597 = vadd.f32 0.0, %v1596
        %1598 = vmatmul.f32.gmra.mxu0 %v1487
        %v1599 = vpop.f32.mrf.mxu0
        %v1600 = vadd.f32 0.0, %v1599
        %1601 = vmatmul.f32.gmra.mxu0 %v1490
        %v1602 = vpop.f32.mrf.mxu0
        %v1603 = vadd.f32 0.0, %v1602
        %1604 = vmatmul.f32.gmra.mxu0 %v1493
        %v1605 = vpop.f32.mrf.mxu0
        %v1606 = vadd.f32 0.0, %v1605
        %1607 = vmatmul.f32.gmra.mxu0 %v1496
        %v1608 = vpop.f32.mrf.mxu0
        %v1609 = vadd.f32 0.0, %v1608
        %1610 = vmatmul.f32.gmra.mxu0 %v1499
        %v1611 = vpop.f32.mrf.mxu0
        %v1612 = vadd.f32 0.0, %v1611
        %1613 = vmatmul.f32.gmra.mxu0 %v1502
        %v1614 = vpop.f32.mrf.mxu0
        %v1615 = vadd.f32 0.0, %v1614
        %1616 = vmatmul.f32.gmra.mxu0 %v1505
        %v1617 = vpop.f32.mrf.mxu0
        %v1618 = vadd.f32 0.0, %v1617
        %1619 = vmatmul.f32.gmra.mxu0 %v1508
        %v1620 = vpop.f32.mrf.mxu0
        %v1621 = vadd.f32 0.0, %v1620
        %1622 = vmatmul.f32.gmra.mxu0 %v1511
        %v1623 = vpop.f32.mrf.mxu0
        %v1624 = vadd.f32 0.0, %v1623
        %1625 = vmatmul.f32.gmra.mxu0 %v1514
        %v1626 = vpop.f32.mrf.mxu0
        %v1627 = vadd.f32 0.0, %v1626
        %1628 = vmatmul.f32.gmra.mxu0 %v1517
        %v1629 = vpop.f32.mrf.mxu0
        %v1630 = vadd.f32 0.0, %v1629
        %1631 = vmatmul.f32.gmra.mxu0 %v1520
        %v1632 = vpop.f32.mrf.mxu0
        %v1633 = vadd.f32 0.0, %v1632
        %1634 = vdwg.mxu0
        %v1635 = vld [vmem:[#allocation10] sm:$0xff]
        %v1636 = vld [vmem:[#allocation10 + $0x8] sm:$0xff]
        %v1637 = vld [vmem:[#allocation10 + $0x10] sm:$0xff]
        %v1638 = vld [vmem:[#allocation10 + $0x18] sm:$0xff]
        %v1639 = vld [vmem:[#allocation10 + $0x20] sm:$0xff]
        %v1640 = vld [vmem:[#allocation10 + $0x28] sm:$0xff]
        %v1641 = vld [vmem:[#allocation10 + $0x30] sm:$0xff]
        %v1642 = vld [vmem:[#allocation10 + $0x38] sm:$0xff]
        %1643 = vmatpush.msra.mxu0 0.0
        %1644 = vmatpush.msra.mxu0 0.0
        %1645 = vmatpush.msra.mxu0 0.0
        %1646 = vmatpush.msra.mxu0 0.0
        %1647 = vmatpush.msra.mxu0 0.0
        %1648 = vmatpush.msra.mxu0 0.0
        %1649 = vmatpush.msra.mxu0 0.0
        %1650 = vmatpush.msra.mxu0 0.0
        %1651 = vmatpush.msra.mxu0 %v1642
        %1652 = vmatpush.msra.mxu0 %v1641
        %1653 = vmatpush.msra.mxu0 %v1640
        %1654 = vmatpush.msra.mxu0 %v1639
        %1655 = vmatpush.msra.mxu0 %v1638
        %1656 = vmatpush.msra.mxu0 %v1637
        %1657 = vmatpush.msra.mxu0 %v1636
        %1658 = vmatpush.msra.mxu0 %v1635
        %1659 = vmatmul.f32.gmra.mxu0 %v1427
        %v1660 = vpop.f32.mrf.mxu0
        %v1661 = vadd.f32 0.0, %v1660
        %1662 = vmatmul.f32.gmra.mxu0 %v1430
        %v1663 = vpop.f32.mrf.mxu0
        %v1664 = vadd.f32 0.0, %v1663
        %1665 = vmatmul.f32.gmra.mxu0 %v1433
        %v1666 = vpop.f32.mrf.mxu0
        %v1667 = vadd.f32 0.0, %v1666
        %1668 = vmatmul.f32.gmra.mxu0 %v1436
        %v1669 = vpop.f32.mrf.mxu0
        %v1670 = vadd.f32 0.0, %v1669
        %1671 = vmatmul.f32.gmra.mxu0 %v1439
        %v1672 = vpop.f32.mrf.mxu0
        %v1673 = vadd.f32 0.0, %v1672
        %1674 = vmatmul.f32.gmra.mxu0 %v1442
        %v1675 = vpop.f32.mrf.mxu0
        %v1676 = vadd.f32 0.0, %v1675
        %1677 = vmatmul.f32.gmra.mxu0 %v1445
        %v1678 = vpop.f32.mrf.mxu0
        %v1679 = vadd.f32 0.0, %v1678
        %1680 = vmatmul.f32.gmra.mxu0 %v1448
        %v1681 = vpop.f32.mrf.mxu0
        %v1682 = vadd.f32 0.0, %v1681
        %1683 = vmatmul.f32.gmra.mxu0 %v1451
        %v1684 = vpop.f32.mrf.mxu0
        %v1685 = vadd.f32 0.0, %v1684
        %1686 = vmatmul.f32.gmra.mxu0 %v1454
        %v1687 = vpop.f32.mrf.mxu0
        %v1688 = vadd.f32 0.0, %v1687
        %1689 = vmatmul.f32.gmra.mxu0 %v1457
        %v1690 = vpop.f32.mrf.mxu0
        %v1691 = vadd.f32 0.0, %v1690
        %1692 = vmatmul.f32.gmra.mxu0 %v1460
        %v1693 = vpop.f32.mrf.mxu0
        %v1694 = vadd.f32 0.0, %v1693
        %1695 = vmatmul.f32.gmra.mxu0 %v1463
        %v1696 = vpop.f32.mrf.mxu0
        %v1697 = vadd.f32 0.0, %v1696
        %1698 = vmatmul.f32.gmra.mxu0 %v1466
        %v1699 = vpop.f32.mrf.mxu0
        %v1700 = vadd.f32 0.0, %v1699
        %1701 = vmatmul.f32.gmra.mxu0 %v1469
        %v1702 = vpop.f32.mrf.mxu0
        %v1703 = vadd.f32 0.0, %v1702
        %1704 = vmatmul.f32.gmra.mxu0 %v1472
        %v1705 = vpop.f32.mrf.mxu0
        %v1706 = vadd.f32 0.0, %v1705
        %1707 = vmatmul.f32.gmra.mxu0 %v1475
        %v1708 = vpop.f32.mrf.mxu0
        %v1709 = vadd.f32 0.0, %v1708
        %1710 = vmatmul.f32.gmra.mxu0 %v1478
        %v1711 = vpop.f32.mrf.mxu0
        %v1712 = vadd.f32 0.0, %v1711
        %1713 = vmatmul.f32.gmra.mxu0 %v1481
        %v1714 = vpop.f32.mrf.mxu0
        %v1715 = vadd.f32 0.0, %v1714
        %1716 = vmatmul.f32.gmra.mxu0 %v1484
        %v1717 = vpop.f32.mrf.mxu0
        %v1718 = vadd.f32 0.0, %v1717
        %1719 = vmatmul.f32.gmra.mxu0 %v1487
        %v1720 = vpop.f32.mrf.mxu0
        %v1721 = vadd.f32 0.0, %v1720
        %1722 = vmatmul.f32.gmra.mxu0 %v1490
        %v1723 = vpop.f32.mrf.mxu0
        %v1724 = vadd.f32 0.0, %v1723
        %1725 = vmatmul.f32.gmra.mxu0 %v1493
        %v1726 = vpop.f32.mrf.mxu0
        %v1727 = vadd.f32 0.0, %v1726
        %1728 = vmatmul.f32.gmra.mxu0 %v1496
        %v1729 = vpop.f32.mrf.mxu0
        %v1730 = vadd.f32 0.0, %v1729
        %1731 = vmatmul.f32.gmra.mxu0 %v1499
        %v1732 = vpop.f32.mrf.mxu0
        %v1733 = vadd.f32 0.0, %v1732
        %1734 = vmatmul.f32.gmra.mxu0 %v1502
        %v1735 = vpop.f32.mrf.mxu0
        %v1736 = vadd.f32 0.0, %v1735
        %1737 = vmatmul.f32.gmra.mxu0 %v1505
        %v1738 = vpop.f32.mrf.mxu0
        %v1739 = vadd.f32 0.0, %v1738
        %1740 = vmatmul.f32.gmra.mxu0 %v1508
        %v1741 = vpop.f32.mrf.mxu0
        %v1742 = vadd.f32 0.0, %v1741
        %1743 = vmatmul.f32.gmra.mxu0 %v1511
        %v1744 = vpop.f32.mrf.mxu0
        %v1745 = vadd.f32 0.0, %v1744
        %1746 = vmatmul.f32.gmra.mxu0 %v1514
        %v1747 = vpop.f32.mrf.mxu0
        %v1748 = vadd.f32 0.0, %v1747
        %1749 = vmatmul.f32.gmra.mxu0 %v1517
        %v1750 = vpop.f32.mrf.mxu0
        %v1751 = vadd.f32 0.0, %v1750
        %1752 = vmatmul.f32.gmra.mxu0 %v1520
        %v1753 = vpop.f32.mrf.mxu0
        %v1754 = vadd.f32 0.0, %v1753
        %1755 = vdwg.mxu0
        %1756 = vst.msk [vmem:[#allocation2] sm:$0xff] %vm634, 0.0
        %1757 = vst.msk [vmem:[#allocation2 + $0x8] sm:$0xff] %vm634, 0.0
        %vm1758 = vcmask 517120
        %1759 = vst.msk [vmem:[#allocation2 + $0x10] sm:$0x3] %vm1758, 0.0
        %1760 = vst.msk [vmem:[#allocation2 + $0x18] sm:$0xff] %vm634, 0.0
        %1761 = vst.msk [vmem:[#allocation2 + $0x20] sm:$0xff] %vm634, 0.0
        %1762 = vst.msk [vmem:[#allocation2 + $0x28] sm:$0x3] %vm1758, 0.0
        %1763 = vst.msk [vmem:[#allocation2 + $0x30] sm:$0xff] %vm634, 0.0
        %1764 = vst.msk [vmem:[#allocation2 + $0x38] sm:$0xff] %vm634, 0.0
        %1765 = vst.msk [vmem:[#allocation2 + $0x40] sm:$0x3] %vm1758, 0.0
        %1766 = vst.msk [vmem:[#allocation2 + $0x48] sm:$0xff] %vm634, 0.0
        %1767 = vst.msk [vmem:[#allocation2 + $0x50] sm:$0xff] %vm634, 0.0
        %1768 = vst.msk [vmem:[#allocation2 + $0x58] sm:$0x3] %vm1758, 0.0
        %1769 = vst.msk [vmem:[#allocation2 + $0x60] sm:$0xff] %vm634, 0.0
        %1770 = vst.msk [vmem:[#allocation2 + $0x68] sm:$0xff] %vm634, 0.0
        %1771 = vst.msk [vmem:[#allocation2 + $0x70] sm:$0x3] %vm1758, 0.0
        %1772 = vst.msk [vmem:[#allocation2 + $0x78] sm:$0xff] %vm634, 0.0
        %1773 = vst.msk [vmem:[#allocation2 + $0x80] sm:$0xff] %vm634, 0.0
        %1774 = vst.msk [vmem:[#allocation2 + $0x88] sm:$0x3] %vm1758, 0.0
        %1775 = vst.msk [vmem:[#allocation2 + $0x90] sm:$0xff] %vm634, 0.0
        %1776 = vst.msk [vmem:[#allocation2 + $0x98] sm:$0xff] %vm634, 0.0
        %1777 = vst.msk [vmem:[#allocation2 + $0xa0] sm:$0x3] %vm1758, 0.0
        %1778 = vst.msk [vmem:[#allocation2 + $0xa8] sm:$0xff] %vm634, 0.0
        %1779 = vst.msk [vmem:[#allocation2 + $0xb0] sm:$0xff] %vm634, 0.0
        %1780 = vst.msk [vmem:[#allocation2 + $0xb8] sm:$0x3] %vm1758, 0.0
        %1781 = vst.msk [vmem:[#allocation2 + $0xc0] sm:$0xff] %vm634, 0.0
        %1782 = vst.msk [vmem:[#allocation2 + $0xc8] sm:$0xff] %vm634, 0.0
        %1783 = vst.msk [vmem:[#allocation2 + $0xd0] sm:$0x3] %vm1758, 0.0
        %1784 = vst.msk [vmem:[#allocation2 + $0xd8] sm:$0xff] %vm634, 0.0
        %1785 = vst.msk [vmem:[#allocation2 + $0xe0] sm:$0xff] %vm634, 0.0
        %1786 = vst.msk [vmem:[#allocation2 + $0xe8] sm:$0x3] %vm1758, 0.0
        %1787 = vst.msk [vmem:[#allocation2 + $0xf0] sm:$0xff] %vm634, 0.0
        %1788 = vst.msk [vmem:[#allocation2 + $0xf8] sm:$0xff] %vm634, 0.0
        %1789 = vst.msk [vmem:[#allocation2 + $0x100] sm:$0x3] %vm1758, 0.0
        %1790 = vst.msk [vmem:[#allocation2 + $0x108] sm:$0xff] %vm634, 0.0
        %1791 = vst.msk [vmem:[#allocation2 + $0x110] sm:$0xff] %vm634, 0.0
        %1792 = vst.msk [vmem:[#allocation2 + $0x118] sm:$0x3] %vm1758, 0.0
        %1793 = vst.msk [vmem:[#allocation2 + $0x120] sm:$0xff] %vm634, 0.0
        %1794 = vst.msk [vmem:[#allocation2 + $0x128] sm:$0xff] %vm634, 0.0
        %1795 = vst.msk [vmem:[#allocation2 + $0x130] sm:$0x3] %vm1758, 0.0
        %1796 = vst.msk [vmem:[#allocation2 + $0x138] sm:$0xff] %vm634, 0.0
        %1797 = vst.msk [vmem:[#allocation2 + $0x140] sm:$0xff] %vm634, 0.0
        %1798 = vst.msk [vmem:[#allocation2 + $0x148] sm:$0x3] %vm1758, 0.0
        %1799 = vst.msk [vmem:[#allocation2 + $0x150] sm:$0xff] %vm634, 0.0
        %1800 = vst.msk [vmem:[#allocation2 + $0x158] sm:$0xff] %vm634, 0.0
        %1801 = vst.msk [vmem:[#allocation2 + $0x160] sm:$0x3] %vm1758, 0.0
        %1802 = vst.msk [vmem:[#allocation2 + $0x168] sm:$0xff] %vm634, 0.0
        %1803 = vst.msk [vmem:[#allocation2 + $0x170] sm:$0xff] %vm634, 0.0
        %1804 = vst.msk [vmem:[#allocation2 + $0x178] sm:$0x3] %vm1758, 0.0
        %1805 = vst.msk [vmem:[#allocation2 + $0x180] sm:$0xff] %vm634, 0.0
        %1806 = vst.msk [vmem:[#allocation2 + $0x188] sm:$0xff] %vm634, 0.0
        %1807 = vst.msk [vmem:[#allocation2 + $0x190] sm:$0x3] %vm1758, 0.0
        %1808 = vst.msk [vmem:[#allocation2 + $0x198] sm:$0xff] %vm634, 0.0
        %1809 = vst.msk [vmem:[#allocation2 + $0x1a0] sm:$0xff] %vm634, 0.0
        %1810 = vst.msk [vmem:[#allocation2 + $0x1a8] sm:$0x3] %vm1758, 0.0
        %s1811 = scalar_lea.vmem [#allocation2], 24
        %1812 = vst.msk [vmem:[%s1811 + $0x1] sm:$0xff] %vm634, %v1540
        %1813 = vst.msk [vmem:[%s1811 + $0x9] sm:$0xff] %vm634, %v1543
        %1814 = vst.msk [vmem:[%s1811 + $0x19] sm:$0xff] %vm634, %v1546
        %1815 = vst.msk [vmem:[%s1811 + $0x21] sm:$0xff] %vm634, %v1549
        %1816 = vst.msk [vmem:[%s1811 + $0x31] sm:$0xff] %vm634, %v1552
        %1817 = vst.msk [vmem:[%s1811 + $0x39] sm:$0xff] %vm634, %v1555
        %1818 = vst.msk [vmem:[%s1811 + $0x49] sm:$0xff] %vm634, %v1558
        %1819 = vst.msk [vmem:[%s1811 + $0x51] sm:$0xff] %vm634, %v1561
        %1820 = vst.msk [vmem:[%s1811 + $0x61] sm:$0xff] %vm634, %v1564
        %1821 = vst.msk [vmem:[%s1811 + $0x69] sm:$0xff] %vm634, %v1567
        %1822 = vst.msk [vmem:[%s1811 + $0x79] sm:$0xff] %vm634, %v1570
        %1823 = vst.msk [vmem:[%s1811 + $0x81] sm:$0xff] %vm634, %v1573
        %1824 = vst.msk [vmem:[%s1811 + $0x91] sm:$0xff] %vm634, %v1576
        %1825 = vst.msk [vmem:[%s1811 + $0x99] sm:$0xff] %vm634, %v1579
        %1826 = vst.msk [vmem:[%s1811 + $0xa9] sm:$0xff] %vm634, %v1582
        %1827 = vst.msk [vmem:[%s1811 + $0xb1] sm:$0xff] %vm634, %v1585
        %1828 = vst.msk [vmem:[%s1811 + $0xc1] sm:$0xff] %vm634, %v1588
        %1829 = vst.msk [vmem:[%s1811 + $0xc9] sm:$0xff] %vm634, %v1591
        %1830 = vst.msk [vmem:[%s1811 + $0xd9] sm:$0xff] %vm634, %v1594
        %1831 = vst.msk [vmem:[%s1811 + $0xe1] sm:$0xff] %vm634, %v1597
        %1832 = vst.msk [vmem:[%s1811 + $0xf1] sm:$0xff] %vm634, %v1600
        %1833 = vst.msk [vmem:[%s1811 + $0xf9] sm:$0xff] %vm634, %v1603
        %1834 = vst.msk [vmem:[%s1811 + $0x109] sm:$0xff] %vm634, %v1606
        %1835 = vst.msk [vmem:[%s1811 + $0x111] sm:$0xff] %vm634, %v1609
        %1836 = vst.msk [vmem:[%s1811 + $0x121] sm:$0xff] %vm634, %v1612
        %1837 = vst.msk [vmem:[%s1811 + $0x129] sm:$0xff] %vm634, %v1615
        %1838 = vst.msk [vmem:[%s1811 + $0x139] sm:$0xff] %vm634, %v1618
        %1839 = vst.msk [vmem:[%s1811 + $0x141] sm:$0xff] %vm634, %v1621
        %1840 = vst.msk [vmem:[%s1811 + $0x151] sm:$0xff] %vm634, %v1624
        %1841 = vst.msk [vmem:[%s1811 + $0x159] sm:$0xff] %vm634, %v1627
        %1842 = vst.msk [vmem:[%s1811 + $0x169] sm:$0xff] %vm634, %v1630
        %1843 = vst.msk [vmem:[%s1811 + $0x171] sm:$0xff] %vm634, %v1633
        %v1844 = vld [vmem:[#allocation12] sm:$0x1]
        %v1845 = vld [vmem:[#allocation2] sm:$0xff]
        %v1846 = vld [vmem:[#allocation2 + $0x8] sm:$0xff]
        %v1847 = vld [vmem:[#allocation2 + $0x18] sm:$0xff]
        %v1848 = vld [vmem:[#allocation2 + $0x20] sm:$0xff]
        %v1849 = vld [vmem:[#allocation2 + $0x30] sm:$0xff]
        %v1850 = vld [vmem:[#allocation2 + $0x38] sm:$0xff]
        %v1851 = vld [vmem:[#allocation2 + $0x48] sm:$0xff]
        %v1852 = vld [vmem:[#allocation2 + $0x50] sm:$0xff]
        %v1853 = vld [vmem:[#allocation2 + $0x60] sm:$0xff]
        %v1854 = vld [vmem:[#allocation2 + $0x68] sm:$0xff]
        %v1855 = vld [vmem:[#allocation2 + $0x78] sm:$0xff]
        %v1856 = vld [vmem:[#allocation2 + $0x80] sm:$0xff]
        %v1857 = vld [vmem:[#allocation2 + $0x90] sm:$0xff]
        %v1858 = vld [vmem:[#allocation2 + $0x98] sm:$0xff]
        %v1859 = vld [vmem:[#allocation2 + $0xa8] sm:$0xff]
        %v1860 = vld [vmem:[#allocation2 + $0xb0] sm:$0xff]
        %v1861 = vld [vmem:[#allocation2 + $0xc0] sm:$0xff]
        %v1862 = vld [vmem:[#allocation2 + $0xc8] sm:$0xff]
        %v1863 = vld [vmem:[#allocation2 + $0xd8] sm:$0xff]
        %v1864 = vld [vmem:[#allocation2 + $0xe0] sm:$0xff]
        %v1865 = vld [vmem:[#allocation2 + $0xf0] sm:$0xff]
        %v1866 = vld [vmem:[#allocation2 + $0xf8] sm:$0xff]
        %v1867 = vld [vmem:[#allocation2 + $0x108] sm:$0xff]
        %v1868 = vld [vmem:[#allocation2 + $0x110] sm:$0xff]
        %v1869 = vld [vmem:[#allocation2 + $0x120] sm:$0xff]
        %v1870 = vld [vmem:[#allocation2 + $0x128] sm:$0xff]
        %v1871 = vld [vmem:[#allocation2 + $0x138] sm:$0xff]
        %v1872 = vld [vmem:[#allocation2 + $0x140] sm:$0xff]
        %v1873 = vld [vmem:[#allocation2 + $0x150] sm:$0xff]
        %v1874 = vld [vmem:[#allocation2 + $0x158] sm:$0xff]
        %v1875 = vld [vmem:[#allocation2 + $0x168] sm:$0xff]
        %v1876 = vld [vmem:[#allocation2 + $0x170] sm:$0xff]
        %v1877 = vperm.slane %v1844, 0
        %v1878 = vmul.f32 %v1845, %v1877
        %v1879 = vmul.f32 %v1846, %v1877
        %v1880 = vmul.f32 %v1847, %v1877
        %v1881 = vmul.f32 %v1848, %v1877
        %v1882 = vmul.f32 %v1849, %v1877
        %v1883 = vmul.f32 %v1850, %v1877
        %v1884 = vmul.f32 %v1851, %v1877
        %v1885 = vmul.f32 %v1852, %v1877
        %v1886 = vmul.f32 %v1853, %v1877
        %v1887 = vmul.f32 %v1854, %v1877
        %v1888 = vmul.f32 %v1855, %v1877
        %v1889 = vmul.f32 %v1856, %v1877
        %v1890 = vmul.f32 %v1857, %v1877
        %v1891 = vmul.f32 %v1858, %v1877
        %v1892 = vmul.f32 %v1859, %v1877
        %v1893 = vmul.f32 %v1860, %v1877
        %v1894 = vmul.f32 %v1861, %v1877
        %v1895 = vmul.f32 %v1862, %v1877
        %v1896 = vmul.f32 %v1863, %v1877
        %v1897 = vmul.f32 %v1864, %v1877
        %v1898 = vmul.f32 %v1865, %v1877
        %v1899 = vmul.f32 %v1866, %v1877
        %v1900 = vmul.f32 %v1867, %v1877
        %v1901 = vmul.f32 %v1868, %v1877
        %v1902 = vmul.f32 %v1869, %v1877
        %v1903 = vmul.f32 %v1870, %v1877
        %v1904 = vmul.f32 %v1871, %v1877
        %v1905 = vmul.f32 %v1872, %v1877
        %v1906 = vmul.f32 %v1873, %v1877
        %v1907 = vmul.f32 %v1874, %v1877
        %v1908 = vmul.f32 %v1875, %v1877
        %v1909 = vmul.f32 %v1876, %v1877
        %v1910 = vadd.f32 %v1878, 0.0
        %v1911 = vadd.f32 %v1879, 0.0
        %v1912 = vadd.f32 %v1880, 0.0
        %v1913 = vadd.f32 %v1881, 0.0
        %v1914 = vadd.f32 %v1882, 0.0
        %v1915 = vadd.f32 %v1883, 0.0
        %v1916 = vadd.f32 %v1884, 0.0
        %v1917 = vadd.f32 %v1885, 0.0
        %v1918 = vadd.f32 %v1886, 0.0
        %v1919 = vadd.f32 %v1887, 0.0
        %v1920 = vadd.f32 %v1888, 0.0
        %v1921 = vadd.f32 %v1889, 0.0
        %v1922 = vadd.f32 %v1890, 0.0
        %v1923 = vadd.f32 %v1891, 0.0
        %v1924 = vadd.f32 %v1892, 0.0
        %v1925 = vadd.f32 %v1893, 0.0
        %v1926 = vadd.f32 %v1894, 0.0
        %v1927 = vadd.f32 %v1895, 0.0
        %v1928 = vadd.f32 %v1896, 0.0
        %v1929 = vadd.f32 %v1897, 0.0
        %v1930 = vadd.f32 %v1898, 0.0
        %v1931 = vadd.f32 %v1899, 0.0
        %v1932 = vadd.f32 %v1900, 0.0
        %v1933 = vadd.f32 %v1901, 0.0
        %v1934 = vadd.f32 %v1902, 0.0
        %v1935 = vadd.f32 %v1903, 0.0
        %v1936 = vadd.f32 %v1904, 0.0
        %v1937 = vadd.f32 %v1905, 0.0
        %v1938 = vadd.f32 %v1906, 0.0
        %v1939 = vadd.f32 %v1907, 0.0
        %v1940 = vadd.f32 %v1908, 0.0
        %v1941 = vadd.f32 %v1909, 0.0
        %v1942 = vld [vmem:[#allocation12 + $0x1] sm:$0x1]
        %v1943 = vld [vmem:[#allocation2 + $0x1] sm:$0xff]
        %v1944 = vld [vmem:[#allocation2 + $0x9] sm:$0xff]
        %v1945 = vld [vmem:[#allocation2 + $0x19] sm:$0xff]
        %v1946 = vld [vmem:[#allocation2 + $0x21] sm:$0xff]
        %v1947 = vld [vmem:[#allocation2 + $0x31] sm:$0xff]
        %v1948 = vld [vmem:[#allocation2 + $0x39] sm:$0xff]
        %v1949 = vld [vmem:[#allocation2 + $0x49] sm:$0xff]
        %v1950 = vld [vmem:[#allocation2 + $0x51] sm:$0xff]
        %v1951 = vld [vmem:[#allocation2 + $0x61] sm:$0xff]
        %v1952 = vld [vmem:[#allocation2 + $0x69] sm:$0xff]
        %v1953 = vld [vmem:[#allocation2 + $0x79] sm:$0xff]
        %v1954 = vld [vmem:[#allocation2 + $0x81] sm:$0xff]
        %v1955 = vld [vmem:[#allocation2 + $0x91] sm:$0xff]
        %v1956 = vld [vmem:[#allocation2 + $0x99] sm:$0xff]
        %v1957 = vld [vmem:[#allocation2 + $0xa9] sm:$0xff]
        %v1958 = vld [vmem:[#allocation2 + $0xb1] sm:$0xff]
        %v1959 = vld [vmem:[#allocation2 + $0xc1] sm:$0xff]
        %v1960 = vld [vmem:[#allocation2 + $0xc9] sm:$0xff]
        %v1961 = vld [vmem:[#allocation2 + $0xd9] sm:$0xff]
        %v1962 = vld [vmem:[#allocation2 + $0xe1] sm:$0xff]
        %v1963 = vld [vmem:[#allocation2 + $0xf1] sm:$0xff]
        %v1964 = vld [vmem:[#allocation2 + $0xf9] sm:$0xff]
        %v1965 = vld [vmem:[#allocation2 + $0x109] sm:$0xff]
        %v1966 = vld [vmem:[#allocation2 + $0x111] sm:$0xff]
        %v1967 = vld [vmem:[#allocation2 + $0x121] sm:$0xff]
        %v1968 = vld [vmem:[#allocation2 + $0x129] sm:$0xff]
        %v1969 = vld [vmem:[#allocation2 + $0x139] sm:$0xff]
        %v1970 = vld [vmem:[#allocation2 + $0x141] sm:$0xff]
        %v1971 = vld [vmem:[#allocation2 + $0x151] sm:$0xff]
        %v1972 = vld [vmem:[#allocation2 + $0x159] sm:$0xff]
        %v1973 = vld [vmem:[#allocation2 + $0x169] sm:$0xff]
        %v1974 = vld [vmem:[#allocation2 + $0x171] sm:$0xff]
        %v1975 = vperm.slane %v1942, 0
        %v1976 = vmul.f32 %v1943, %v1975
        %v1977 = vmul.f32 %v1944, %v1975
        %v1978 = vmul.f32 %v1945, %v1975
        %v1979 = vmul.f32 %v1946, %v1975
        %v1980 = vmul.f32 %v1947, %v1975
        %v1981 = vmul.f32 %v1948, %v1975
        %v1982 = vmul.f32 %v1949, %v1975
        %v1983 = vmul.f32 %v1950, %v1975
        %v1984 = vmul.f32 %v1951, %v1975
        %v1985 = vmul.f32 %v1952, %v1975
        %v1986 = vmul.f32 %v1953, %v1975
        %v1987 = vmul.f32 %v1954, %v1975
        %v1988 = vmul.f32 %v1955, %v1975
        %v1989 = vmul.f32 %v1956, %v1975
        %v1990 = vmul.f32 %v1957, %v1975
        %v1991 = vmul.f32 %v1958, %v1975
        %v1992 = vmul.f32 %v1959, %v1975
        %v1993 = vmul.f32 %v1960, %v1975
        %v1994 = vmul.f32 %v1961, %v1975
        %v1995 = vmul.f32 %v1962, %v1975
        %v1996 = vmul.f32 %v1963, %v1975
        %v1997 = vmul.f32 %v1964, %v1975
        %v1998 = vmul.f32 %v1965, %v1975
        %v1999 = vmul.f32 %v1966, %v1975
        %v2000 = vmul.f32 %v1967, %v1975
        %v2001 = vmul.f32 %v1968, %v1975
        %v2002 = vmul.f32 %v1969, %v1975
        %v2003 = vmul.f32 %v1970, %v1975
        %v2004 = vmul.f32 %v1971, %v1975
        %v2005 = vmul.f32 %v1972, %v1975
        %v2006 = vmul.f32 %v1973, %v1975
        %v2007 = vmul.f32 %v1974, %v1975
        %v2008 = vadd.f32 %v1910, %v1976
        %v2009 = vadd.f32 %v1911, %v1977
        %v2010 = vadd.f32 %v1912, %v1978
        %v2011 = vadd.f32 %v1913, %v1979
        %v2012 = vadd.f32 %v1914, %v1980
        %v2013 = vadd.f32 %v1915, %v1981
        %v2014 = vadd.f32 %v1916, %v1982
        %v2015 = vadd.f32 %v1917, %v1983
        %v2016 = vadd.f32 %v1918, %v1984
        %v2017 = vadd.f32 %v1919, %v1985
        %v2018 = vadd.f32 %v1920, %v1986
        %v2019 = vadd.f32 %v1921, %v1987
        %v2020 = vadd.f32 %v1922, %v1988
        %v2021 = vadd.f32 %v1923, %v1989
        %v2022 = vadd.f32 %v1924, %v1990
        %v2023 = vadd.f32 %v1925, %v1991
        %v2024 = vadd.f32 %v1926, %v1992
        %v2025 = vadd.f32 %v1927, %v1993
        %v2026 = vadd.f32 %v1928, %v1994
        %v2027 = vadd.f32 %v1929, %v1995
        %v2028 = vadd.f32 %v1930, %v1996
        %v2029 = vadd.f32 %v1931, %v1997
        %v2030 = vadd.f32 %v1932, %v1998
        %v2031 = vadd.f32 %v1933, %v1999
        %v2032 = vadd.f32 %v1934, %v2000
        %v2033 = vadd.f32 %v1935, %v2001
        %v2034 = vadd.f32 %v1936, %v2002
        %v2035 = vadd.f32 %v1937, %v2003
        %v2036 = vadd.f32 %v1938, %v2004
        %v2037 = vadd.f32 %v1939, %v2005
        %v2038 = vadd.f32 %v1940, %v2006
        %v2039 = vadd.f32 %v1941, %v2007
        %v2040 = vld [vmem:[#allocation12 + $0x2] sm:$0x1]
        %v2041 = vld [vmem:[#allocation2 + $0x2] sm:$0xff]
        %v2042 = vld [vmem:[#allocation2 + $0xa] sm:$0xff]
        %v2043 = vld [vmem:[#allocation2 + $0x1a] sm:$0xff]
        %v2044 = vld [vmem:[#allocation2 + $0x22] sm:$0xff]
        %v2045 = vld [vmem:[#allocation2 + $0x32] sm:$0xff]
        %v2046 = vld [vmem:[#allocation2 + $0x3a] sm:$0xff]
        %v2047 = vld [vmem:[#allocation2 + $0x4a] sm:$0xff]
        %v2048 = vld [vmem:[#allocation2 + $0x52] sm:$0xff]
        %v2049 = vld [vmem:[#allocation2 + $0x62] sm:$0xff]
        %v2050 = vld [vmem:[#allocation2 + $0x6a] sm:$0xff]
        %v2051 = vld [vmem:[#allocation2 + $0x7a] sm:$0xff]
        %v2052 = vld [vmem:[#allocation2 + $0x82] sm:$0xff]
        %v2053 = vld [vmem:[#allocation2 + $0x92] sm:$0xff]
        %v2054 = vld [vmem:[#allocation2 + $0x9a] sm:$0xff]
        %v2055 = vld [vmem:[#allocation2 + $0xaa] sm:$0xff]
        %v2056 = vld [vmem:[#allocation2 + $0xb2] sm:$0xff]
        %v2057 = vld [vmem:[#allocation2 + $0xc2] sm:$0xff]
        %v2058 = vld [vmem:[#allocation2 + $0xca] sm:$0xff]
        %v2059 = vld [vmem:[#allocation2 + $0xda] sm:$0xff]
        %v2060 = vld [vmem:[#allocation2 + $0xe2] sm:$0xff]
        %v2061 = vld [vmem:[#allocation2 + $0xf2] sm:$0xff]
        %v2062 = vld [vmem:[#allocation2 + $0xfa] sm:$0xff]
        %v2063 = vld [vmem:[#allocation2 + $0x10a] sm:$0xff]
        %v2064 = vld [vmem:[#allocation2 + $0x112] sm:$0xff]
        %v2065 = vld [vmem:[#allocation2 + $0x122] sm:$0xff]
        %v2066 = vld [vmem:[#allocation2 + $0x12a] sm:$0xff]
        %v2067 = vld [vmem:[#allocation2 + $0x13a] sm:$0xff]
        %v2068 = vld [vmem:[#allocation2 + $0x142] sm:$0xff]
        %v2069 = vld [vmem:[#allocation2 + $0x152] sm:$0xff]
        %v2070 = vld [vmem:[#allocation2 + $0x15a] sm:$0xff]
        %v2071 = vld [vmem:[#allocation2 + $0x16a] sm:$0xff]
        %v2072 = vld [vmem:[#allocation2 + $0x172] sm:$0xff]
        %v2073 = vperm.slane %v2040, 0
        %v2074 = vmul.f32 %v2041, %v2073
        %v2075 = vmul.f32 %v2042, %v2073
        %v2076 = vmul.f32 %v2043, %v2073
        %v2077 = vmul.f32 %v2044, %v2073
        %v2078 = vmul.f32 %v2045, %v2073
        %v2079 = vmul.f32 %v2046, %v2073
        %v2080 = vmul.f32 %v2047, %v2073
        %v2081 = vmul.f32 %v2048, %v2073
        %v2082 = vmul.f32 %v2049, %v2073
        %v2083 = vmul.f32 %v2050, %v2073
        %v2084 = vmul.f32 %v2051, %v2073
        %v2085 = vmul.f32 %v2052, %v2073
        %v2086 = vmul.f32 %v2053, %v2073
        %v2087 = vmul.f32 %v2054, %v2073
        %v2088 = vmul.f32 %v2055, %v2073
        %v2089 = vmul.f32 %v2056, %v2073
        %v2090 = vmul.f32 %v2057, %v2073
        %v2091 = vmul.f32 %v2058, %v2073
        %v2092 = vmul.f32 %v2059, %v2073
        %v2093 = vmul.f32 %v2060, %v2073
        %v2094 = vmul.f32 %v2061, %v2073
        %v2095 = vmul.f32 %v2062, %v2073
        %v2096 = vmul.f32 %v2063, %v2073
        %v2097 = vmul.f32 %v2064, %v2073
        %v2098 = vmul.f32 %v2065, %v2073
        %v2099 = vmul.f32 %v2066, %v2073
        %v2100 = vmul.f32 %v2067, %v2073
        %v2101 = vmul.f32 %v2068, %v2073
        %v2102 = vmul.f32 %v2069, %v2073
        %v2103 = vmul.f32 %v2070, %v2073
        %v2104 = vmul.f32 %v2071, %v2073
        %v2105 = vmul.f32 %v2072, %v2073
        %v2106 = vadd.f32 %v2008, %v2074
        %v2107 = vadd.f32 %v2009, %v2075
        %v2108 = vadd.f32 %v2010, %v2076
        %v2109 = vadd.f32 %v2011, %v2077
        %v2110 = vadd.f32 %v2012, %v2078
        %v2111 = vadd.f32 %v2013, %v2079
        %v2112 = vadd.f32 %v2014, %v2080
        %v2113 = vadd.f32 %v2015, %v2081
        %v2114 = vadd.f32 %v2016, %v2082
        %v2115 = vadd.f32 %v2017, %v2083
        %v2116 = vadd.f32 %v2018, %v2084
        %v2117 = vadd.f32 %v2019, %v2085
        %v2118 = vadd.f32 %v2020, %v2086
        %v2119 = vadd.f32 %v2021, %v2087
        %v2120 = vadd.f32 %v2022, %v2088
        %v2121 = vadd.f32 %v2023, %v2089
        %v2122 = vadd.f32 %v2024, %v2090
        %v2123 = vadd.f32 %v2025, %v2091
        %v2124 = vadd.f32 %v2026, %v2092
        %v2125 = vadd.f32 %v2027, %v2093
        %v2126 = vadd.f32 %v2028, %v2094
        %v2127 = vadd.f32 %v2029, %v2095
        %v2128 = vadd.f32 %v2030, %v2096
        %v2129 = vadd.f32 %v2031, %v2097
        %v2130 = vadd.f32 %v2032, %v2098
        %v2131 = vadd.f32 %v2033, %v2099
        %v2132 = vadd.f32 %v2034, %v2100
        %v2133 = vadd.f32 %v2035, %v2101
        %v2134 = vadd.f32 %v2036, %v2102
        %v2135 = vadd.f32 %v2037, %v2103
        %v2136 = vadd.f32 %v2038, %v2104
        %v2137 = vadd.f32 %v2039, %v2105
        %v2138 = vld [vmem:[#allocation12 + $0x3] sm:$0x1]
        %v2139 = vld [vmem:[%s1811] sm:$0xff]
        %v2140 = vld [vmem:[%s1811 + $0x8] sm:$0xff]
        %v2141 = vld [vmem:[%s1811 + $0x18] sm:$0xff]
        %v2142 = vld [vmem:[%s1811 + $0x20] sm:$0xff]
        %v2143 = vld [vmem:[%s1811 + $0x30] sm:$0xff]
        %v2144 = vld [vmem:[%s1811 + $0x38] sm:$0xff]
        %v2145 = vld [vmem:[%s1811 + $0x48] sm:$0xff]
        %v2146 = vld [vmem:[%s1811 + $0x50] sm:$0xff]
        %v2147 = vld [vmem:[%s1811 + $0x60] sm:$0xff]
        %v2148 = vld [vmem:[%s1811 + $0x68] sm:$0xff]
        %v2149 = vld [vmem:[%s1811 + $0x78] sm:$0xff]
        %v2150 = vld [vmem:[%s1811 + $0x80] sm:$0xff]
        %v2151 = vld [vmem:[%s1811 + $0x90] sm:$0xff]
        %v2152 = vld [vmem:[%s1811 + $0x98] sm:$0xff]
        %v2153 = vld [vmem:[%s1811 + $0xa8] sm:$0xff]
        %v2154 = vld [vmem:[%s1811 + $0xb0] sm:$0xff]
        %v2155 = vld [vmem:[%s1811 + $0xc0] sm:$0xff]
        %v2156 = vld [vmem:[%s1811 + $0xc8] sm:$0xff]
        %v2157 = vld [vmem:[%s1811 + $0xd8] sm:$0xff]
        %v2158 = vld [vmem:[%s1811 + $0xe0] sm:$0xff]
        %v2159 = vld [vmem:[%s1811 + $0xf0] sm:$0xff]
        %v2160 = vld [vmem:[%s1811 + $0xf8] sm:$0xff]
        %v2161 = vld [vmem:[%s1811 + $0x108] sm:$0xff]
        %v2162 = vld [vmem:[%s1811 + $0x110] sm:$0xff]
        %v2163 = vld [vmem:[%s1811 + $0x120] sm:$0xff]
        %v2164 = vld [vmem:[%s1811 + $0x128] sm:$0xff]
        %v2165 = vld [vmem:[%s1811 + $0x138] sm:$0xff]
        %v2166 = vld [vmem:[%s1811 + $0x140] sm:$0xff]
        %v2167 = vld [vmem:[%s1811 + $0x150] sm:$0xff]
        %v2168 = vld [vmem:[%s1811 + $0x158] sm:$0xff]
        %v2169 = vld [vmem:[%s1811 + $0x168] sm:$0xff]
        %v2170 = vld [vmem:[%s1811 + $0x170] sm:$0xff]
        %v2171 = vperm.slane %v2138, 0
        %v2172 = vmul.f32 %v2139, %v2171
        %v2173 = vmul.f32 %v2140, %v2171
        %v2174 = vmul.f32 %v2141, %v2171
        %v2175 = vmul.f32 %v2142, %v2171
        %v2176 = vmul.f32 %v2143, %v2171
        %v2177 = vmul.f32 %v2144, %v2171
        %v2178 = vmul.f32 %v2145, %v2171
        %v2179 = vmul.f32 %v2146, %v2171
        %v2180 = vmul.f32 %v2147, %v2171
        %v2181 = vmul.f32 %v2148, %v2171
        %v2182 = vmul.f32 %v2149, %v2171
        %v2183 = vmul.f32 %v2150, %v2171
        %v2184 = vmul.f32 %v2151, %v2171
        %v2185 = vmul.f32 %v2152, %v2171
        %v2186 = vmul.f32 %v2153, %v2171
        %v2187 = vmul.f32 %v2154, %v2171
        %v2188 = vmul.f32 %v2155, %v2171
        %v2189 = vmul.f32 %v2156, %v2171
        %v2190 = vmul.f32 %v2157, %v2171
        %v2191 = vmul.f32 %v2158, %v2171
        %v2192 = vmul.f32 %v2159, %v2171
        %v2193 = vmul.f32 %v2160, %v2171
        %v2194 = vmul.f32 %v2161, %v2171
        %v2195 = vmul.f32 %v2162, %v2171
        %v2196 = vmul.f32 %v2163, %v2171
        %v2197 = vmul.f32 %v2164, %v2171
        %v2198 = vmul.f32 %v2165, %v2171
        %v2199 = vmul.f32 %v2166, %v2171
        %v2200 = vmul.f32 %v2167, %v2171
        %v2201 = vmul.f32 %v2168, %v2171
        %v2202 = vmul.f32 %v2169, %v2171
        %v2203 = vmul.f32 %v2170, %v2171
        %v2204 = vadd.f32 %v2106, %v2172
        %v2205 = vadd.f32 %v2107, %v2173
        %v2206 = vadd.f32 %v2108, %v2174
        %v2207 = vadd.f32 %v2109, %v2175
        %v2208 = vadd.f32 %v2110, %v2176
        %v2209 = vadd.f32 %v2111, %v2177
        %v2210 = vadd.f32 %v2112, %v2178
        %v2211 = vadd.f32 %v2113, %v2179
        %v2212 = vadd.f32 %v2114, %v2180
        %v2213 = vadd.f32 %v2115, %v2181
        %v2214 = vadd.f32 %v2116, %v2182
        %v2215 = vadd.f32 %v2117, %v2183
        %v2216 = vadd.f32 %v2118, %v2184
        %v2217 = vadd.f32 %v2119, %v2185
        %v2218 = vadd.f32 %v2120, %v2186
        %v2219 = vadd.f32 %v2121, %v2187
        %v2220 = vadd.f32 %v2122, %v2188
        %v2221 = vadd.f32 %v2123, %v2189
        %v2222 = vadd.f32 %v2124, %v2190
        %v2223 = vadd.f32 %v2125, %v2191
        %v2224 = vadd.f32 %v2126, %v2192
        %v2225 = vadd.f32 %v2127, %v2193
        %v2226 = vadd.f32 %v2128, %v2194
        %v2227 = vadd.f32 %v2129, %v2195
        %v2228 = vadd.f32 %v2130, %v2196
        %v2229 = vadd.f32 %v2131, %v2197
        %v2230 = vadd.f32 %v2132, %v2198
        %v2231 = vadd.f32 %v2133, %v2199
        %v2232 = vadd.f32 %v2134, %v2200
        %v2233 = vadd.f32 %v2135, %v2201
        %v2234 = vadd.f32 %v2136, %v2202
        %v2235 = vadd.f32 %v2137, %v2203
        %v2236 = vld [vmem:[#allocation12 + $0x4] sm:$0x1]
        %v2237 = vld [vmem:[%s1811 + $0x1] sm:$0xff]
        %v2238 = vld [vmem:[%s1811 + $0x9] sm:$0xff]
        %v2239 = vld [vmem:[%s1811 + $0x19] sm:$0xff]
        %v2240 = vld [vmem:[%s1811 + $0x21] sm:$0xff]
        %v2241 = vld [vmem:[%s1811 + $0x31] sm:$0xff]
        %v2242 = vld [vmem:[%s1811 + $0x39] sm:$0xff]
        %v2243 = vld [vmem:[%s1811 + $0x49] sm:$0xff]
        %v2244 = vld [vmem:[%s1811 + $0x51] sm:$0xff]
        %v2245 = vld [vmem:[%s1811 + $0x61] sm:$0xff]
        %v2246 = vld [vmem:[%s1811 + $0x69] sm:$0xff]
        %v2247 = vld [vmem:[%s1811 + $0x79] sm:$0xff]
        %v2248 = vld [vmem:[%s1811 + $0x81] sm:$0xff]
        %v2249 = vld [vmem:[%s1811 + $0x91] sm:$0xff]
        %v2250 = vld [vmem:[%s1811 + $0x99] sm:$0xff]
        %v2251 = vld [vmem:[%s1811 + $0xa9] sm:$0xff]
        %v2252 = vld [vmem:[%s1811 + $0xb1] sm:$0xff]
        %v2253 = vld [vmem:[%s1811 + $0xc1] sm:$0xff]
        %v2254 = vld [vmem:[%s1811 + $0xc9] sm:$0xff]
        %v2255 = vld [vmem:[%s1811 + $0xd9] sm:$0xff]
        %v2256 = vld [vmem:[%s1811 + $0xe1] sm:$0xff]
        %v2257 = vld [vmem:[%s1811 + $0xf1] sm:$0xff]
        %v2258 = vld [vmem:[%s1811 + $0xf9] sm:$0xff]
        %v2259 = vld [vmem:[%s1811 + $0x109] sm:$0xff]
        %v2260 = vld [vmem:[%s1811 + $0x111] sm:$0xff]
        %v2261 = vld [vmem:[%s1811 + $0x121] sm:$0xff]
        %v2262 = vld [vmem:[%s1811 + $0x129] sm:$0xff]
        %v2263 = vld [vmem:[%s1811 + $0x139] sm:$0xff]
        %v2264 = vld [vmem:[%s1811 + $0x141] sm:$0xff]
        %v2265 = vld [vmem:[%s1811 + $0x151] sm:$0xff]
        %v2266 = vld [vmem:[%s1811 + $0x159] sm:$0xff]
        %v2267 = vld [vmem:[%s1811 + $0x169] sm:$0xff]
        %v2268 = vld [vmem:[%s1811 + $0x171] sm:$0xff]
        %v2269 = vperm.slane %v2236, 0
        %v2270 = vmul.f32 %v2237, %v2269
        %v2271 = vmul.f32 %v2238, %v2269
        %v2272 = vmul.f32 %v2239, %v2269
        %v2273 = vmul.f32 %v2240, %v2269
        %v2274 = vmul.f32 %v2241, %v2269
        %v2275 = vmul.f32 %v2242, %v2269
        %v2276 = vmul.f32 %v2243, %v2269
        %v2277 = vmul.f32 %v2244, %v2269
        %v2278 = vmul.f32 %v2245, %v2269
        %v2279 = vmul.f32 %v2246, %v2269
        %v2280 = vmul.f32 %v2247, %v2269
        %v2281 = vmul.f32 %v2248, %v2269
        %v2282 = vmul.f32 %v2249, %v2269
        %v2283 = vmul.f32 %v2250, %v2269
        %v2284 = vmul.f32 %v2251, %v2269
        %v2285 = vmul.f32 %v2252, %v2269
        %v2286 = vmul.f32 %v2253, %v2269
        %v2287 = vmul.f32 %v2254, %v2269
        %v2288 = vmul.f32 %v2255, %v2269
        %v2289 = vmul.f32 %v2256, %v2269
        %v2290 = vmul.f32 %v2257, %v2269
        %v2291 = vmul.f32 %v2258, %v2269
        %v2292 = vmul.f32 %v2259, %v2269
        %v2293 = vmul.f32 %v2260, %v2269
        %v2294 = vmul.f32 %v2261, %v2269
        %v2295 = vmul.f32 %v2262, %v2269
        %v2296 = vmul.f32 %v2263, %v2269
        %v2297 = vmul.f32 %v2264, %v2269
        %v2298 = vmul.f32 %v2265, %v2269
        %v2299 = vmul.f32 %v2266, %v2269
        %v2300 = vmul.f32 %v2267, %v2269
        %v2301 = vmul.f32 %v2268, %v2269
        %v2302 = vadd.f32 %v2204, %v2270
        %v2303 = vadd.f32 %v2205, %v2271
        %v2304 = vadd.f32 %v2206, %v2272
        %v2305 = vadd.f32 %v2207, %v2273
        %v2306 = vadd.f32 %v2208, %v2274
        %v2307 = vadd.f32 %v2209, %v2275
        %v2308 = vadd.f32 %v2210, %v2276
        %v2309 = vadd.f32 %v2211, %v2277
        %v2310 = vadd.f32 %v2212, %v2278
        %v2311 = vadd.f32 %v2213, %v2279
        %v2312 = vadd.f32 %v2214, %v2280
        %v2313 = vadd.f32 %v2215, %v2281
        %v2314 = vadd.f32 %v2216, %v2282
        %v2315 = vadd.f32 %v2217, %v2283
        %v2316 = vadd.f32 %v2218, %v2284
        %v2317 = vadd.f32 %v2219, %v2285
        %v2318 = vadd.f32 %v2220, %v2286
        %v2319 = vadd.f32 %v2221, %v2287
        %v2320 = vadd.f32 %v2222, %v2288
        %v2321 = vadd.f32 %v2223, %v2289
        %v2322 = vadd.f32 %v2224, %v2290
        %v2323 = vadd.f32 %v2225, %v2291
        %v2324 = vadd.f32 %v2226, %v2292
        %v2325 = vadd.f32 %v2227, %v2293
        %v2326 = vadd.f32 %v2228, %v2294
        %v2327 = vadd.f32 %v2229, %v2295
        %v2328 = vadd.f32 %v2230, %v2296
        %v2329 = vadd.f32 %v2231, %v2297
        %v2330 = vadd.f32 %v2232, %v2298
        %v2331 = vadd.f32 %v2233, %v2299
        %v2332 = vadd.f32 %v2234, %v2300
        %v2333 = vadd.f32 %v2235, %v2301
        %v2334 = vld [vmem:[#allocation12 + $0x5] sm:$0x1]
        %v2335 = vld [vmem:[%s1811 + $0x2] sm:$0xff]
        %v2336 = vld [vmem:[%s1811 + $0xa] sm:$0xff]
        %v2337 = vld [vmem:[%s1811 + $0x1a] sm:$0xff]
        %v2338 = vld [vmem:[%s1811 + $0x22] sm:$0xff]
        %v2339 = vld [vmem:[%s1811 + $0x32] sm:$0xff]
        %v2340 = vld [vmem:[%s1811 + $0x3a] sm:$0xff]
        %v2341 = vld [vmem:[%s1811 + $0x4a] sm:$0xff]
        %v2342 = vld [vmem:[%s1811 + $0x52] sm:$0xff]
        %v2343 = vld [vmem:[%s1811 + $0x62] sm:$0xff]
        %v2344 = vld [vmem:[%s1811 + $0x6a] sm:$0xff]
        %v2345 = vld [vmem:[%s1811 + $0x7a] sm:$0xff]
        %v2346 = vld [vmem:[%s1811 + $0x82] sm:$0xff]
        %v2347 = vld [vmem:[%s1811 + $0x92] sm:$0xff]
        %v2348 = vld [vmem:[%s1811 + $0x9a] sm:$0xff]
        %v2349 = vld [vmem:[%s1811 + $0xaa] sm:$0xff]
        %v2350 = vld [vmem:[%s1811 + $0xb2] sm:$0xff]
        %v2351 = vld [vmem:[%s1811 + $0xc2] sm:$0xff]
        %v2352 = vld [vmem:[%s1811 + $0xca] sm:$0xff]
        %v2353 = vld [vmem:[%s1811 + $0xda] sm:$0xff]
        %v2354 = vld [vmem:[%s1811 + $0xe2] sm:$0xff]
        %v2355 = vld [vmem:[%s1811 + $0xf2] sm:$0xff]
        %v2356 = vld [vmem:[%s1811 + $0xfa] sm:$0xff]
        %v2357 = vld [vmem:[%s1811 + $0x10a] sm:$0xff]
        %v2358 = vld [vmem:[%s1811 + $0x112] sm:$0xff]
        %v2359 = vld [vmem:[%s1811 + $0x122] sm:$0xff]
        %v2360 = vld [vmem:[%s1811 + $0x12a] sm:$0xff]
        %v2361 = vld [vmem:[%s1811 + $0x13a] sm:$0xff]
        %v2362 = vld [vmem:[%s1811 + $0x142] sm:$0xff]
        %v2363 = vld [vmem:[%s1811 + $0x152] sm:$0xff]
        %v2364 = vld [vmem:[%s1811 + $0x15a] sm:$0xff]
        %v2365 = vld [vmem:[%s1811 + $0x16a] sm:$0xff]
        %v2366 = vld [vmem:[%s1811 + $0x172] sm:$0xff]
        %v2367 = vperm.slane %v2334, 0
        %v2368 = vmul.f32 %v2335, %v2367
        %v2369 = vmul.f32 %v2336, %v2367
        %v2370 = vmul.f32 %v2337, %v2367
        %v2371 = vmul.f32 %v2338, %v2367
        %v2372 = vmul.f32 %v2339, %v2367
        %v2373 = vmul.f32 %v2340, %v2367
        %v2374 = vmul.f32 %v2341, %v2367
        %v2375 = vmul.f32 %v2342, %v2367
        %v2376 = vmul.f32 %v2343, %v2367
        %v2377 = vmul.f32 %v2344, %v2367
        %v2378 = vmul.f32 %v2345, %v2367
        %v2379 = vmul.f32 %v2346, %v2367
        %v2380 = vmul.f32 %v2347, %v2367
        %v2381 = vmul.f32 %v2348, %v2367
        %v2382 = vmul.f32 %v2349, %v2367
        %v2383 = vmul.f32 %v2350, %v2367
        %v2384 = vmul.f32 %v2351, %v2367
        %v2385 = vmul.f32 %v2352, %v2367
        %v2386 = vmul.f32 %v2353, %v2367
        %v2387 = vmul.f32 %v2354, %v2367
        %v2388 = vmul.f32 %v2355, %v2367
        %v2389 = vmul.f32 %v2356, %v2367
        %v2390 = vmul.f32 %v2357, %v2367
        %v2391 = vmul.f32 %v2358, %v2367
        %v2392 = vmul.f32 %v2359, %v2367
        %v2393 = vmul.f32 %v2360, %v2367
        %v2394 = vmul.f32 %v2361, %v2367
        %v2395 = vmul.f32 %v2362, %v2367
        %v2396 = vmul.f32 %v2363, %v2367
        %v2397 = vmul.f32 %v2364, %v2367
        %v2398 = vmul.f32 %v2365, %v2367
        %v2399 = vmul.f32 %v2366, %v2367
        %v2400 = vadd.f32 %v2302, %v2368
        %v2401 = vadd.f32 %v2303, %v2369
        %v2402 = vadd.f32 %v2304, %v2370
        %v2403 = vadd.f32 %v2305, %v2371
        %v2404 = vadd.f32 %v2306, %v2372
        %v2405 = vadd.f32 %v2307, %v2373
        %v2406 = vadd.f32 %v2308, %v2374
        %v2407 = vadd.f32 %v2309, %v2375
        %v2408 = vadd.f32 %v2310, %v2376
        %v2409 = vadd.f32 %v2311, %v2377
        %v2410 = vadd.f32 %v2312, %v2378
        %v2411 = vadd.f32 %v2313, %v2379
        %v2412 = vadd.f32 %v2314, %v2380
        %v2413 = vadd.f32 %v2315, %v2381
        %v2414 = vadd.f32 %v2316, %v2382
        %v2415 = vadd.f32 %v2317, %v2383
        %v2416 = vadd.f32 %v2318, %v2384
        %v2417 = vadd.f32 %v2319, %v2385
        %v2418 = vadd.f32 %v2320, %v2386
        %v2419 = vadd.f32 %v2321, %v2387
        %v2420 = vadd.f32 %v2322, %v2388
        %v2421 = vadd.f32 %v2323, %v2389
        %v2422 = vadd.f32 %v2324, %v2390
        %v2423 = vadd.f32 %v2325, %v2391
        %v2424 = vadd.f32 %v2326, %v2392
        %v2425 = vadd.f32 %v2327, %v2393
        %v2426 = vadd.f32 %v2328, %v2394
        %v2427 = vadd.f32 %v2329, %v2395
        %v2428 = vadd.f32 %v2330, %v2396
        %v2429 = vadd.f32 %v2331, %v2397
        %v2430 = vadd.f32 %v2332, %v2398
        %v2431 = vadd.f32 %v2333, %v2399
        %v2432 = vld [vmem:[#allocation12 + $0x6] sm:$0x1]
        %s2433 = scalar_lea.vmem [#allocation2], 48
        %v2434 = vld [vmem:[%s2433] sm:$0xff]
        %v2435 = vld [vmem:[%s2433 + $0x8] sm:$0xff]
        %v2436 = vld [vmem:[%s2433 + $0x18] sm:$0xff]
        %v2437 = vld [vmem:[%s2433 + $0x20] sm:$0xff]
        %v2438 = vld [vmem:[%s2433 + $0x30] sm:$0xff]
        %v2439 = vld [vmem:[%s2433 + $0x38] sm:$0xff]
        %v2440 = vld [vmem:[%s2433 + $0x48] sm:$0xff]
        %v2441 = vld [vmem:[%s2433 + $0x50] sm:$0xff]
        %v2442 = vld [vmem:[%s2433 + $0x60] sm:$0xff]
        %v2443 = vld [vmem:[%s2433 + $0x68] sm:$0xff]
        %v2444 = vld [vmem:[%s2433 + $0x78] sm:$0xff]
        %v2445 = vld [vmem:[%s2433 + $0x80] sm:$0xff]
        %v2446 = vld [vmem:[%s2433 + $0x90] sm:$0xff]
        %v2447 = vld [vmem:[%s2433 + $0x98] sm:$0xff]
        %v2448 = vld [vmem:[%s2433 + $0xa8] sm:$0xff]
        %v2449 = vld [vmem:[%s2433 + $0xb0] sm:$0xff]
        %v2450 = vld [vmem:[%s2433 + $0xc0] sm:$0xff]
        %v2451 = vld [vmem:[%s2433 + $0xc8] sm:$0xff]
        %v2452 = vld [vmem:[%s2433 + $0xd8] sm:$0xff]
        %v2453 = vld [vmem:[%s2433 + $0xe0] sm:$0xff]
        %v2454 = vld [vmem:[%s2433 + $0xf0] sm:$0xff]
        %v2455 = vld [vmem:[%s2433 + $0xf8] sm:$0xff]
        %v2456 = vld [vmem:[%s2433 + $0x108] sm:$0xff]
        %v2457 = vld [vmem:[%s2433 + $0x110] sm:$0xff]
        %v2458 = vld [vmem:[%s2433 + $0x120] sm:$0xff]
        %v2459 = vld [vmem:[%s2433 + $0x128] sm:$0xff]
        %v2460 = vld [vmem:[%s2433 + $0x138] sm:$0xff]
        %v2461 = vld [vmem:[%s2433 + $0x140] sm:$0xff]
        %v2462 = vld [vmem:[%s2433 + $0x150] sm:$0xff]
        %v2463 = vld [vmem:[%s2433 + $0x158] sm:$0xff]
        %v2464 = vld [vmem:[%s2433 + $0x168] sm:$0xff]
        %v2465 = vld [vmem:[%s2433 + $0x170] sm:$0xff]
        %v2466 = vperm.slane %v2432, 0
        %v2467 = vmul.f32 %v2434, %v2466
        %v2468 = vmul.f32 %v2435, %v2466
        %v2469 = vmul.f32 %v2436, %v2466
        %v2470 = vmul.f32 %v2437, %v2466
        %v2471 = vmul.f32 %v2438, %v2466
        %v2472 = vmul.f32 %v2439, %v2466
        %v2473 = vmul.f32 %v2440, %v2466
        %v2474 = vmul.f32 %v2441, %v2466
        %v2475 = vmul.f32 %v2442, %v2466
        %v2476 = vmul.f32 %v2443, %v2466
        %v2477 = vmul.f32 %v2444, %v2466
        %v2478 = vmul.f32 %v2445, %v2466
        %v2479 = vmul.f32 %v2446, %v2466
        %v2480 = vmul.f32 %v2447, %v2466
        %v2481 = vmul.f32 %v2448, %v2466
        %v2482 = vmul.f32 %v2449, %v2466
        %v2483 = vmul.f32 %v2450, %v2466
        %v2484 = vmul.f32 %v2451, %v2466
        %v2485 = vmul.f32 %v2452, %v2466
        %v2486 = vmul.f32 %v2453, %v2466
        %v2487 = vmul.f32 %v2454, %v2466
        %v2488 = vmul.f32 %v2455, %v2466
        %v2489 = vmul.f32 %v2456, %v2466
        %v2490 = vmul.f32 %v2457, %v2466
        %v2491 = vmul.f32 %v2458, %v2466
        %v2492 = vmul.f32 %v2459, %v2466
        %v2493 = vmul.f32 %v2460, %v2466
        %v2494 = vmul.f32 %v2461, %v2466
        %v2495 = vmul.f32 %v2462, %v2466
        %v2496 = vmul.f32 %v2463, %v2466
        %v2497 = vmul.f32 %v2464, %v2466
        %v2498 = vmul.f32 %v2465, %v2466
        %v2499 = vadd.f32 %v2400, %v2467
        %v2500 = vadd.f32 %v2401, %v2468
        %v2501 = vadd.f32 %v2402, %v2469
        %v2502 = vadd.f32 %v2403, %v2470
        %v2503 = vadd.f32 %v2404, %v2471
        %v2504 = vadd.f32 %v2405, %v2472
        %v2505 = vadd.f32 %v2406, %v2473
        %v2506 = vadd.f32 %v2407, %v2474
        %v2507 = vadd.f32 %v2408, %v2475
        %v2508 = vadd.f32 %v2409, %v2476
        %v2509 = vadd.f32 %v2410, %v2477
        %v2510 = vadd.f32 %v2411, %v2478
        %v2511 = vadd.f32 %v2412, %v2479
        %v2512 = vadd.f32 %v2413, %v2480
        %v2513 = vadd.f32 %v2414, %v2481
        %v2514 = vadd.f32 %v2415, %v2482
        %v2515 = vadd.f32 %v2416, %v2483
        %v2516 = vadd.f32 %v2417, %v2484
        %v2517 = vadd.f32 %v2418, %v2485
        %v2518 = vadd.f32 %v2419, %v2486
        %v2519 = vadd.f32 %v2420, %v2487
        %v2520 = vadd.f32 %v2421, %v2488
        %v2521 = vadd.f32 %v2422, %v2489
        %v2522 = vadd.f32 %v2423, %v2490
        %v2523 = vadd.f32 %v2424, %v2491
        %v2524 = vadd.f32 %v2425, %v2492
        %v2525 = vadd.f32 %v2426, %v2493
        %v2526 = vadd.f32 %v2427, %v2494
        %v2527 = vadd.f32 %v2428, %v2495
        %v2528 = vadd.f32 %v2429, %v2496
        %v2529 = vadd.f32 %v2430, %v2497
        %v2530 = vadd.f32 %v2431, %v2498
        %v2531 = vld [vmem:[#allocation12 + $0x7] sm:$0x1]
        %v2532 = vld [vmem:[%s2433 + $0x1] sm:$0xff]
        %v2533 = vld [vmem:[%s2433 + $0x9] sm:$0xff]
        %v2534 = vld [vmem:[%s2433 + $0x19] sm:$0xff]
        %v2535 = vld [vmem:[%s2433 + $0x21] sm:$0xff]
        %v2536 = vld [vmem:[%s2433 + $0x31] sm:$0xff]
        %v2537 = vld [vmem:[%s2433 + $0x39] sm:$0xff]
        %v2538 = vld [vmem:[%s2433 + $0x49] sm:$0xff]
        %v2539 = vld [vmem:[%s2433 + $0x51] sm:$0xff]
        %v2540 = vld [vmem:[%s2433 + $0x61] sm:$0xff]
        %v2541 = vld [vmem:[%s2433 + $0x69] sm:$0xff]
        %v2542 = vld [vmem:[%s2433 + $0x79] sm:$0xff]
        %v2543 = vld [vmem:[%s2433 + $0x81] sm:$0xff]
        %v2544 = vld [vmem:[%s2433 + $0x91] sm:$0xff]
        %v2545 = vld [vmem:[%s2433 + $0x99] sm:$0xff]
        %v2546 = vld [vmem:[%s2433 + $0xa9] sm:$0xff]
        %v2547 = vld [vmem:[%s2433 + $0xb1] sm:$0xff]
        %v2548 = vld [vmem:[%s2433 + $0xc1] sm:$0xff]
        %v2549 = vld [vmem:[%s2433 + $0xc9] sm:$0xff]
        %v2550 = vld [vmem:[%s2433 + $0xd9] sm:$0xff]
        %v2551 = vld [vmem:[%s2433 + $0xe1] sm:$0xff]
        %v2552 = vld [vmem:[%s2433 + $0xf1] sm:$0xff]
        %v2553 = vld [vmem:[%s2433 + $0xf9] sm:$0xff]
        %v2554 = vld [vmem:[%s2433 + $0x109] sm:$0xff]
        %v2555 = vld [vmem:[%s2433 + $0x111] sm:$0xff]
        %v2556 = vld [vmem:[%s2433 + $0x121] sm:$0xff]
        %v2557 = vld [vmem:[%s2433 + $0x129] sm:$0xff]
        %v2558 = vld [vmem:[%s2433 + $0x139] sm:$0xff]
        %v2559 = vld [vmem:[%s2433 + $0x141] sm:$0xff]
        %v2560 = vld [vmem:[%s2433 + $0x151] sm:$0xff]
        %v2561 = vld [vmem:[%s2433 + $0x159] sm:$0xff]
        %v2562 = vld [vmem:[%s2433 + $0x169] sm:$0xff]
        %v2563 = vld [vmem:[%s2433 + $0x171] sm:$0xff]
        %v2564 = vperm.slane %v2531, 0
        %v2565 = vmul.f32 %v2532, %v2564
        %v2566 = vmul.f32 %v2533, %v2564
        %v2567 = vmul.f32 %v2534, %v2564
        %v2568 = vmul.f32 %v2535, %v2564
        %v2569 = vmul.f32 %v2536, %v2564
        %v2570 = vmul.f32 %v2537, %v2564
        %v2571 = vmul.f32 %v2538, %v2564
        %v2572 = vmul.f32 %v2539, %v2564
        %v2573 = vmul.f32 %v2540, %v2564
        %v2574 = vmul.f32 %v2541, %v2564
        %v2575 = vmul.f32 %v2542, %v2564
        %v2576 = vmul.f32 %v2543, %v2564
        %v2577 = vmul.f32 %v2544, %v2564
        %v2578 = vmul.f32 %v2545, %v2564
        %v2579 = vmul.f32 %v2546, %v2564
        %v2580 = vmul.f32 %v2547, %v2564
        %v2581 = vmul.f32 %v2548, %v2564
        %v2582 = vmul.f32 %v2549, %v2564
        %v2583 = vmul.f32 %v2550, %v2564
        %v2584 = vmul.f32 %v2551, %v2564
        %v2585 = vmul.f32 %v2552, %v2564
        %v2586 = vmul.f32 %v2553, %v2564
        %v2587 = vmul.f32 %v2554, %v2564
        %v2588 = vmul.f32 %v2555, %v2564
        %v2589 = vmul.f32 %v2556, %v2564
        %v2590 = vmul.f32 %v2557, %v2564
        %v2591 = vmul.f32 %v2558, %v2564
        %v2592 = vmul.f32 %v2559, %v2564
        %v2593 = vmul.f32 %v2560, %v2564
        %v2594 = vmul.f32 %v2561, %v2564
        %v2595 = vmul.f32 %v2562, %v2564
        %v2596 = vmul.f32 %v2563, %v2564
        %v2597 = vadd.f32 %v2499, %v2565
        %v2598 = vadd.f32 %v2500, %v2566
        %v2599 = vadd.f32 %v2501, %v2567
        %v2600 = vadd.f32 %v2502, %v2568
        %v2601 = vadd.f32 %v2503, %v2569
        %v2602 = vadd.f32 %v2504, %v2570
        %v2603 = vadd.f32 %v2505, %v2571
        %v2604 = vadd.f32 %v2506, %v2572
        %v2605 = vadd.f32 %v2507, %v2573
        %v2606 = vadd.f32 %v2508, %v2574
        %v2607 = vadd.f32 %v2509, %v2575
        %v2608 = vadd.f32 %v2510, %v2576
        %v2609 = vadd.f32 %v2511, %v2577
        %v2610 = vadd.f32 %v2512, %v2578
        %v2611 = vadd.f32 %v2513, %v2579
        %v2612 = vadd.f32 %v2514, %v2580
        %v2613 = vadd.f32 %v2515, %v2581
        %v2614 = vadd.f32 %v2516, %v2582
        %v2615 = vadd.f32 %v2517, %v2583
        %v2616 = vadd.f32 %v2518, %v2584
        %v2617 = vadd.f32 %v2519, %v2585
        %v2618 = vadd.f32 %v2520, %v2586
        %v2619 = vadd.f32 %v2521, %v2587
        %v2620 = vadd.f32 %v2522, %v2588
        %v2621 = vadd.f32 %v2523, %v2589
        %v2622 = vadd.f32 %v2524, %v2590
        %v2623 = vadd.f32 %v2525, %v2591
        %v2624 = vadd.f32 %v2526, %v2592
        %v2625 = vadd.f32 %v2527, %v2593
        %v2626 = vadd.f32 %v2528, %v2594
        %v2627 = vadd.f32 %v2529, %v2595
        %v2628 = vadd.f32 %v2530, %v2596
        %v2629 = vld [vmem:[#allocation12 + $0x8] sm:$0x1]
        %v2630 = vld [vmem:[%s2433 + $0x2] sm:$0xff]
        %v2631 = vld [vmem:[%s2433 + $0xa] sm:$0xff]
        %v2632 = vld [vmem:[%s2433 + $0x1a] sm:$0xff]
        %v2633 = vld [vmem:[%s2433 + $0x22] sm:$0xff]
        %v2634 = vld [vmem:[%s2433 + $0x32] sm:$0xff]
        %v2635 = vld [vmem:[%s2433 + $0x3a] sm:$0xff]
        %v2636 = vld [vmem:[%s2433 + $0x4a] sm:$0xff]
        %v2637 = vld [vmem:[%s2433 + $0x52] sm:$0xff]
        %v2638 = vld [vmem:[%s2433 + $0x62] sm:$0xff]
        %v2639 = vld [vmem:[%s2433 + $0x6a] sm:$0xff]
        %v2640 = vld [vmem:[%s2433 + $0x7a] sm:$0xff]
        %v2641 = vld [vmem:[%s2433 + $0x82] sm:$0xff]
        %v2642 = vld [vmem:[%s2433 + $0x92] sm:$0xff]
        %v2643 = vld [vmem:[%s2433 + $0x9a] sm:$0xff]
        %v2644 = vld [vmem:[%s2433 + $0xaa] sm:$0xff]
        %v2645 = vld [vmem:[%s2433 + $0xb2] sm:$0xff]
        %v2646 = vld [vmem:[%s2433 + $0xc2] sm:$0xff]
        %v2647 = vld [vmem:[%s2433 + $0xca] sm:$0xff]
        %v2648 = vld [vmem:[%s2433 + $0xda] sm:$0xff]
        %v2649 = vld [vmem:[%s2433 + $0xe2] sm:$0xff]
        %v2650 = vld [vmem:[%s2433 + $0xf2] sm:$0xff]
        %v2651 = vld [vmem:[%s2433 + $0xfa] sm:$0xff]
        %v2652 = vld [vmem:[%s2433 + $0x10a] sm:$0xff]
        %v2653 = vld [vmem:[%s2433 + $0x112] sm:$0xff]
        %v2654 = vld [vmem:[%s2433 + $0x122] sm:$0xff]
        %v2655 = vld [vmem:[%s2433 + $0x12a] sm:$0xff]
        %v2656 = vld [vmem:[%s2433 + $0x13a] sm:$0xff]
        %v2657 = vld [vmem:[%s2433 + $0x142] sm:$0xff]
        %v2658 = vld [vmem:[%s2433 + $0x152] sm:$0xff]
        %v2659 = vld [vmem:[%s2433 + $0x15a] sm:$0xff]
        %v2660 = vld [vmem:[%s2433 + $0x16a] sm:$0xff]
        %v2661 = vld [vmem:[%s2433 + $0x172] sm:$0xff]
        %v2662 = vperm.slane %v2629, 0
        %v2663 = vmul.f32 %v2630, %v2662
        %v2664 = vmul.f32 %v2631, %v2662
        %v2665 = vmul.f32 %v2632, %v2662
        %v2666 = vmul.f32 %v2633, %v2662
        %v2667 = vmul.f32 %v2634, %v2662
        %v2668 = vmul.f32 %v2635, %v2662
        %v2669 = vmul.f32 %v2636, %v2662
        %v2670 = vmul.f32 %v2637, %v2662
        %v2671 = vmul.f32 %v2638, %v2662
        %v2672 = vmul.f32 %v2639, %v2662
        %v2673 = vmul.f32 %v2640, %v2662
        %v2674 = vmul.f32 %v2641, %v2662
        %v2675 = vmul.f32 %v2642, %v2662
        %v2676 = vmul.f32 %v2643, %v2662
        %v2677 = vmul.f32 %v2644, %v2662
        %v2678 = vmul.f32 %v2645, %v2662
        %v2679 = vmul.f32 %v2646, %v2662
        %v2680 = vmul.f32 %v2647, %v2662
        %v2681 = vmul.f32 %v2648, %v2662
        %v2682 = vmul.f32 %v2649, %v2662
        %v2683 = vmul.f32 %v2650, %v2662
        %v2684 = vmul.f32 %v2651, %v2662
        %v2685 = vmul.f32 %v2652, %v2662
        %v2686 = vmul.f32 %v2653, %v2662
        %v2687 = vmul.f32 %v2654, %v2662
        %v2688 = vmul.f32 %v2655, %v2662
        %v2689 = vmul.f32 %v2656, %v2662
        %v2690 = vmul.f32 %v2657, %v2662
        %v2691 = vmul.f32 %v2658, %v2662
        %v2692 = vmul.f32 %v2659, %v2662
        %v2693 = vmul.f32 %v2660, %v2662
        %v2694 = vmul.f32 %v2661, %v2662
        %v2695 = vadd.f32 %v2597, %v2663
        %v2696 = vadd.f32 %v2598, %v2664
        %v2697 = vadd.f32 %v2599, %v2665
        %v2698 = vadd.f32 %v2600, %v2666
        %v2699 = vadd.f32 %v2601, %v2667
        %v2700 = vadd.f32 %v2602, %v2668
        %v2701 = vadd.f32 %v2603, %v2669
        %v2702 = vadd.f32 %v2604, %v2670
        %v2703 = vadd.f32 %v2605, %v2671
        %v2704 = vadd.f32 %v2606, %v2672
        %v2705 = vadd.f32 %v2607, %v2673
        %v2706 = vadd.f32 %v2608, %v2674
        %v2707 = vadd.f32 %v2609, %v2675
        %v2708 = vadd.f32 %v2610, %v2676
        %v2709 = vadd.f32 %v2611, %v2677
        %v2710 = vadd.f32 %v2612, %v2678
        %v2711 = vadd.f32 %v2613, %v2679
        %v2712 = vadd.f32 %v2614, %v2680
        %v2713 = vadd.f32 %v2615, %v2681
        %v2714 = vadd.f32 %v2616, %v2682
        %v2715 = vadd.f32 %v2617, %v2683
        %v2716 = vadd.f32 %v2618, %v2684
        %v2717 = vadd.f32 %v2619, %v2685
        %v2718 = vadd.f32 %v2620, %v2686
        %v2719 = vadd.f32 %v2621, %v2687
        %v2720 = vadd.f32 %v2622, %v2688
        %v2721 = vadd.f32 %v2623, %v2689
        %v2722 = vadd.f32 %v2624, %v2690
        %v2723 = vadd.f32 %v2625, %v2691
        %v2724 = vadd.f32 %v2626, %v2692
        %v2725 = vadd.f32 %v2627, %v2693
        %v2726 = vadd.f32 %v2628, %v2694
        %2727 = vst.msk [vmem:[#allocation3] sm:$0xff] %vm634, 0.0
        %2728 = vst.msk [vmem:[#allocation3 + $0x8] sm:$0xff] %vm634, 0.0
        %2729 = vst.msk [vmem:[#allocation3 + $0x10] sm:$0xff] %vm634, 0.0
        %vm2730 = vcmask 521216
        %2731 = vst.msk [vmem:[#allocation3 + $0x18] sm:$0x3f] %vm2730, 0.0
        %2732 = vst.msk [vmem:[#allocation3 + $0x20] sm:$0xff] %vm634, 0.0
        %2733 = vst.msk [vmem:[#allocation3 + $0x28] sm:$0xff] %vm634, 0.0
        %2734 = vst.msk [vmem:[#allocation3 + $0x30] sm:$0xff] %vm634, 0.0
        %2735 = vst.msk [vmem:[#allocation3 + $0x38] sm:$0x3f] %vm2730, 0.0
        %2736 = vst.msk [vmem:[#allocation3 + $0x40] sm:$0xff] %vm634, 0.0
        %2737 = vst.msk [vmem:[#allocation3 + $0x48] sm:$0xff] %vm634, 0.0
        %2738 = vst.msk [vmem:[#allocation3 + $0x50] sm:$0xff] %vm634, 0.0
        %2739 = vst.msk [vmem:[#allocation3 + $0x58] sm:$0x3f] %vm2730, 0.0
        %2740 = vst.msk [vmem:[#allocation3 + $0x60] sm:$0xff] %vm634, 0.0
        %2741 = vst.msk [vmem:[#allocation3 + $0x68] sm:$0xff] %vm634, 0.0
        %2742 = vst.msk [vmem:[#allocation3 + $0x70] sm:$0xff] %vm634, 0.0
        %2743 = vst.msk [vmem:[#allocation3 + $0x78] sm:$0x3f] %vm2730, 0.0
        %2744 = vst.msk [vmem:[#allocation3 + $0x80] sm:$0xff] %vm634, 0.0
        %2745 = vst.msk [vmem:[#allocation3 + $0x88] sm:$0xff] %vm634, 0.0
        %2746 = vst.msk [vmem:[#allocation3 + $0x90] sm:$0xff] %vm634, 0.0
        %2747 = vst.msk [vmem:[#allocation3 + $0x98] sm:$0x3f] %vm2730, 0.0
        %2748 = vst.msk [vmem:[#allocation3 + $0xa0] sm:$0xff] %vm634, 0.0
        %2749 = vst.msk [vmem:[#allocation3 + $0xa8] sm:$0xff] %vm634, 0.0
        %2750 = vst.msk [vmem:[#allocation3 + $0xb0] sm:$0xff] %vm634, 0.0
        %2751 = vst.msk [vmem:[#allocation3 + $0xb8] sm:$0x3f] %vm2730, 0.0
        %2752 = vst.msk [vmem:[#allocation3 + $0xc0] sm:$0xff] %vm634, 0.0
        %2753 = vst.msk [vmem:[#allocation3 + $0xc8] sm:$0xff] %vm634, 0.0
        %2754 = vst.msk [vmem:[#allocation3 + $0xd0] sm:$0xff] %vm634, 0.0
        %2755 = vst.msk [vmem:[#allocation3 + $0xd8] sm:$0x3f] %vm2730, 0.0
        %2756 = vst.msk [vmem:[#allocation3 + $0xe0] sm:$0xff] %vm634, 0.0
        %2757 = vst.msk [vmem:[#allocation3 + $0xe8] sm:$0xff] %vm634, 0.0
        %2758 = vst.msk [vmem:[#allocation3 + $0xf0] sm:$0xff] %vm634, 0.0
        %2759 = vst.msk [vmem:[#allocation3 + $0xf8] sm:$0x3f] %vm2730, 0.0
        %2760 = vst.msk [vmem:[#allocation3 + $0x100] sm:$0xff] %vm634, 0.0
        %2761 = vst.msk [vmem:[#allocation3 + $0x108] sm:$0xff] %vm634, 0.0
        %2762 = vst.msk [vmem:[#allocation3 + $0x110] sm:$0xff] %vm634, 0.0
        %2763 = vst.msk [vmem:[#allocation3 + $0x118] sm:$0x3f] %vm2730, 0.0
        %2764 = vst.msk [vmem:[#allocation3 + $0x120] sm:$0xff] %vm634, 0.0
        %2765 = vst.msk [vmem:[#allocation3 + $0x128] sm:$0xff] %vm634, 0.0
        %2766 = vst.msk [vmem:[#allocation3 + $0x130] sm:$0xff] %vm634, 0.0
        %2767 = vst.msk [vmem:[#allocation3 + $0x138] sm:$0x3f] %vm2730, 0.0
        %2768 = vst.msk [vmem:[#allocation3 + $0x140] sm:$0xff] %vm634, 0.0
        %2769 = vst.msk [vmem:[#allocation3 + $0x148] sm:$0xff] %vm634, 0.0
        %2770 = vst.msk [vmem:[#allocation3 + $0x150] sm:$0xff] %vm634, 0.0
        %2771 = vst.msk [vmem:[#allocation3 + $0x158] sm:$0x3f] %vm2730, 0.0
        %2772 = vst.msk [vmem:[#allocation3 + $0x160] sm:$0xff] %vm634, 0.0
        %2773 = vst.msk [vmem:[#allocation3 + $0x168] sm:$0xff] %vm634, 0.0
        %2774 = vst.msk [vmem:[#allocation3 + $0x170] sm:$0xff] %vm634, 0.0
        %2775 = vst.msk [vmem:[#allocation3 + $0x178] sm:$0x3f] %vm2730, 0.0
        %2776 = vst.msk [vmem:[#allocation3 + $0x180] sm:$0xff] %vm634, 0.0
        %2777 = vst.msk [vmem:[#allocation3 + $0x188] sm:$0xff] %vm634, 0.0
        %2778 = vst.msk [vmem:[#allocation3 + $0x190] sm:$0xff] %vm634, 0.0
        %2779 = vst.msk [vmem:[#allocation3 + $0x198] sm:$0x3f] %vm2730, 0.0
        %2780 = vst.msk [vmem:[#allocation3 + $0x1a0] sm:$0xff] %vm634, 0.0
        %2781 = vst.msk [vmem:[#allocation3 + $0x1a8] sm:$0xff] %vm634, 0.0
        %2782 = vst.msk [vmem:[#allocation3 + $0x1b0] sm:$0xff] %vm634, 0.0
        %2783 = vst.msk [vmem:[#allocation3 + $0x1b8] sm:$0x3f] %vm2730, 0.0
        %2784 = vst.msk [vmem:[#allocation3 + $0x1c0] sm:$0xff] %vm634, 0.0
        %2785 = vst.msk [vmem:[#allocation3 + $0x1c8] sm:$0xff] %vm634, 0.0
        %2786 = vst.msk [vmem:[#allocation3 + $0x1d0] sm:$0xff] %vm634, 0.0
        %2787 = vst.msk [vmem:[#allocation3 + $0x1d8] sm:$0x3f] %vm2730, 0.0
        %2788 = vst.msk [vmem:[#allocation3 + $0x1e0] sm:$0xff] %vm634, 0.0
        %2789 = vst.msk [vmem:[#allocation3 + $0x1e8] sm:$0xff] %vm634, 0.0
        %2790 = vst.msk [vmem:[#allocation3 + $0x1f0] sm:$0xff] %vm634, 0.0
        %2791 = vst.msk [vmem:[#allocation3 + $0x1f8] sm:$0x3f] %vm2730, 0.0
        %2792 = vst.msk [vmem:[#allocation3 + $0x200] sm:$0xff] %vm634, 0.0
        %2793 = vst.msk [vmem:[#allocation3 + $0x208] sm:$0xff] %vm634, 0.0
        %2794 = vst.msk [vmem:[#allocation3 + $0x210] sm:$0xff] %vm634, 0.0
        %2795 = vst.msk [vmem:[#allocation3 + $0x218] sm:$0x3f] %vm2730, 0.0
        %2796 = vst.msk [vmem:[#allocation3 + $0x220] sm:$0xff] %vm634, 0.0
        %2797 = vst.msk [vmem:[#allocation3 + $0x228] sm:$0xff] %vm634, 0.0
        %2798 = vst.msk [vmem:[#allocation3 + $0x230] sm:$0xff] %vm634, 0.0
        %2799 = vst.msk [vmem:[#allocation3 + $0x238] sm:$0x3f] %vm2730, 0.0
        %2800 = vst.msk [vmem:[#allocation3 + $0x240] sm:$0xff] %vm634, 0.0
        %2801 = vst.msk [vmem:[#allocation3 + $0x248] sm:$0xff] %vm634, 0.0
        %2802 = vst.msk [vmem:[#allocation3 + $0x250] sm:$0xff] %vm634, 0.0
        %2803 = vst.msk [vmem:[#allocation3 + $0x258] sm:$0x3f] %vm2730, 0.0
        %2804 = vst.msk [vmem:[#allocation3 + $0x260] sm:$0xff] %vm634, 0.0
        %2805 = vst.msk [vmem:[#allocation3 + $0x268] sm:$0xff] %vm634, 0.0
        %2806 = vst.msk [vmem:[#allocation3 + $0x270] sm:$0xff] %vm634, 0.0
        %2807 = vst.msk [vmem:[#allocation3 + $0x278] sm:$0x3f] %vm2730, 0.0
        %2808 = vst.msk [vmem:[#allocation3 + $0x280] sm:$0xff] %vm634, 0.0
        %2809 = vst.msk [vmem:[#allocation3 + $0x288] sm:$0xff] %vm634, 0.0
        %2810 = vst.msk [vmem:[#allocation3 + $0x290] sm:$0xff] %vm634, 0.0
        %2811 = vst.msk [vmem:[#allocation3 + $0x298] sm:$0x3f] %vm2730, 0.0
        %2812 = vst.msk [vmem:[#allocation3 + $0x2a0] sm:$0xff] %vm634, 0.0
        %2813 = vst.msk [vmem:[#allocation3 + $0x2a8] sm:$0xff] %vm634, 0.0
        %2814 = vst.msk [vmem:[#allocation3 + $0x2b0] sm:$0xff] %vm634, 0.0
        %2815 = vst.msk [vmem:[#allocation3 + $0x2b8] sm:$0x3f] %vm2730, 0.0
        %2816 = vst.msk [vmem:[#allocation3 + $0x2c0] sm:$0xff] %vm634, 0.0
        %2817 = vst.msk [vmem:[#allocation3 + $0x2c8] sm:$0xff] %vm634, 0.0
        %2818 = vst.msk [vmem:[#allocation3 + $0x2d0] sm:$0xff] %vm634, 0.0
        %2819 = vst.msk [vmem:[#allocation3 + $0x2d8] sm:$0x3f] %vm2730, 0.0
        %2820 = vst.msk [vmem:[#allocation3 + $0x2e0] sm:$0xff] %vm634, 0.0
        %2821 = vst.msk [vmem:[#allocation3 + $0x2e8] sm:$0xff] %vm634, 0.0
        %2822 = vst.msk [vmem:[#allocation3 + $0x2f0] sm:$0xff] %vm634, 0.0
        %2823 = vst.msk [vmem:[#allocation3 + $0x2f8] sm:$0x3f] %vm2730, 0.0
        %2824 = vst.msk [vmem:[#allocation3 + $0x300] sm:$0xff] %vm634, 0.0
        %2825 = vst.msk [vmem:[#allocation3 + $0x308] sm:$0xff] %vm634, 0.0
        %2826 = vst.msk [vmem:[#allocation3 + $0x310] sm:$0xff] %vm634, 0.0
        %2827 = vst.msk [vmem:[#allocation3 + $0x318] sm:$0x3f] %vm2730, 0.0
        %2828 = vst.msk [vmem:[#allocation3 + $0x320] sm:$0xff] %vm634, 0.0
        %2829 = vst.msk [vmem:[#allocation3 + $0x328] sm:$0xff] %vm634, 0.0
        %2830 = vst.msk [vmem:[#allocation3 + $0x330] sm:$0xff] %vm634, 0.0
        %2831 = vst.msk [vmem:[#allocation3 + $0x338] sm:$0x3f] %vm2730, 0.0
        %2832 = vst.msk [vmem:[#allocation3 + $0x340] sm:$0xff] %vm634, 0.0
        %2833 = vst.msk [vmem:[#allocation3 + $0x348] sm:$0xff] %vm634, 0.0
        %2834 = vst.msk [vmem:[#allocation3 + $0x350] sm:$0xff] %vm634, 0.0
        %2835 = vst.msk [vmem:[#allocation3 + $0x358] sm:$0x3f] %vm2730, 0.0
        %2836 = vst.msk [vmem:[#allocation3 + $0x360] sm:$0xff] %vm634, 0.0
        %2837 = vst.msk [vmem:[#allocation3 + $0x368] sm:$0xff] %vm634, 0.0
        %2838 = vst.msk [vmem:[#allocation3 + $0x370] sm:$0xff] %vm634, 0.0
        %2839 = vst.msk [vmem:[#allocation3 + $0x378] sm:$0x3f] %vm2730, 0.0
        %2840 = vst.msk [vmem:[#allocation3 + $0x380] sm:$0xff] %vm634, 0.0
        %2841 = vst.msk [vmem:[#allocation3 + $0x388] sm:$0xff] %vm634, 0.0
        %2842 = vst.msk [vmem:[#allocation3 + $0x390] sm:$0xff] %vm634, 0.0
        %2843 = vst.msk [vmem:[#allocation3 + $0x398] sm:$0x3f] %vm2730, 0.0
        %2844 = vst.msk [vmem:[#allocation3 + $0x3a0] sm:$0xff] %vm634, 0.0
        %2845 = vst.msk [vmem:[#allocation3 + $0x3a8] sm:$0xff] %vm634, 0.0
        %2846 = vst.msk [vmem:[#allocation3 + $0x3b0] sm:$0xff] %vm634, 0.0
        %2847 = vst.msk [vmem:[#allocation3 + $0x3b8] sm:$0x3f] %vm2730, 0.0
        %s2848 = scalar_lea.vmem [#allocation3], 224
        %2849 = vst.msk [vmem:[%s2848 + $0x7] sm:$0xff] %vm634, %v2695
        %2850 = vst.msk [vmem:[%s2848 + $0xf] sm:$0xff] %vm634, %v2696
        %2851 = vst.msk [vmem:[%s2848 + $0x27] sm:$0xff] %vm634, %v2697
        %2852 = vst.msk [vmem:[%s2848 + $0x2f] sm:$0xff] %vm634, %v2698
        %2853 = vst.msk [vmem:[%s2848 + $0x47] sm:$0xff] %vm634, %v2699
        %2854 = vst.msk [vmem:[%s2848 + $0x4f] sm:$0xff] %vm634, %v2700
        %2855 = vst.msk [vmem:[%s2848 + $0x67] sm:$0xff] %vm634, %v2701
        %2856 = vst.msk [vmem:[%s2848 + $0x6f] sm:$0xff] %vm634, %v2702
        %2857 = vst.msk [vmem:[%s2848 + $0x87] sm:$0xff] %vm634, %v2703
        %2858 = vst.msk [vmem:[%s2848 + $0x8f] sm:$0xff] %vm634, %v2704
        %2859 = vst.msk [vmem:[%s2848 + $0xa7] sm:$0xff] %vm634, %v2705
        %2860 = vst.msk [vmem:[%s2848 + $0xaf] sm:$0xff] %vm634, %v2706
        %2861 = vst.msk [vmem:[%s2848 + $0xc7] sm:$0xff] %vm634, %v2707
        %2862 = vst.msk [vmem:[%s2848 + $0xcf] sm:$0xff] %vm634, %v2708
        %2863 = vst.msk [vmem:[%s2848 + $0xe7] sm:$0xff] %vm634, %v2709
        %2864 = vst.msk [vmem:[%s2848 + $0xef] sm:$0xff] %vm634, %v2710
        %2865 = vst.msk [vmem:[%s2848 + $0x107] sm:$0xff] %vm634, %v2711
        %2866 = vst.msk [vmem:[%s2848 + $0x10f] sm:$0xff] %vm634, %v2712
        %2867 = vst.msk [vmem:[%s2848 + $0x127] sm:$0xff] %vm634, %v2713
        %2868 = vst.msk [vmem:[%s2848 + $0x12f] sm:$0xff] %vm634, %v2714
        %2869 = vst.msk [vmem:[%s2848 + $0x147] sm:$0xff] %vm634, %v2715
        %2870 = vst.msk [vmem:[%s2848 + $0x14f] sm:$0xff] %vm634, %v2716
        %2871 = vst.msk [vmem:[%s2848 + $0x167] sm:$0xff] %vm634, %v2717
        %2872 = vst.msk [vmem:[%s2848 + $0x16f] sm:$0xff] %vm634, %v2718
        %2873 = vst.msk [vmem:[%s2848 + $0x187] sm:$0xff] %vm634, %v2719
        %2874 = vst.msk [vmem:[%s2848 + $0x18f] sm:$0xff] %vm634, %v2720
        %2875 = vst.msk [vmem:[%s2848 + $0x1a7] sm:$0xff] %vm634, %v2721
        %2876 = vst.msk [vmem:[%s2848 + $0x1af] sm:$0xff] %vm634, %v2722
        %2877 = vst.msk [vmem:[%s2848 + $0x1c7] sm:$0xff] %vm634, %v2723
        %2878 = vst.msk [vmem:[%s2848 + $0x1cf] sm:$0xff] %vm634, %v2724
        %2879 = vst.msk [vmem:[%s2848 + $0x1e7] sm:$0xff] %vm634, %v2725
        %2880 = vst.msk [vmem:[%s2848 + $0x1ef] sm:$0xff] %vm634, %v2726
        %v2881 = vld [vmem:[#allocation13] sm:$0x1]
        %v2882 = vld [vmem:[#allocation3] sm:$0xff]
        %v2883 = vld [vmem:[#allocation3 + $0x8] sm:$0xff]
        %v2884 = vld [vmem:[#allocation3 + $0x20] sm:$0xff]
        %v2885 = vld [vmem:[#allocation3 + $0x28] sm:$0xff]
        %v2886 = vld [vmem:[#allocation3 + $0x40] sm:$0xff]
        %v2887 = vld [vmem:[#allocation3 + $0x48] sm:$0xff]
        %v2888 = vld [vmem:[#allocation3 + $0x60] sm:$0xff]
        %v2889 = vld [vmem:[#allocation3 + $0x68] sm:$0xff]
        %v2890 = vld [vmem:[#allocation3 + $0x80] sm:$0xff]
        %v2891 = vld [vmem:[#allocation3 + $0x88] sm:$0xff]
        %v2892 = vld [vmem:[#allocation3 + $0xa0] sm:$0xff]
        %v2893 = vld [vmem:[#allocation3 + $0xa8] sm:$0xff]
        %v2894 = vld [vmem:[#allocation3 + $0xc0] sm:$0xff]
        %v2895 = vld [vmem:[#allocation3 + $0xc8] sm:$0xff]
        %v2896 = vld [vmem:[#allocation3 + $0xe0] sm:$0xff]
        %v2897 = vld [vmem:[#allocation3 + $0xe8] sm:$0xff]
        %v2898 = vld [vmem:[#allocation3 + $0x100] sm:$0xff]
        %v2899 = vld [vmem:[#allocation3 + $0x108] sm:$0xff]
        %v2900 = vld [vmem:[#allocation3 + $0x120] sm:$0xff]
        %v2901 = vld [vmem:[#allocation3 + $0x128] sm:$0xff]
        %v2902 = vld [vmem:[#allocation3 + $0x140] sm:$0xff]
        %v2903 = vld [vmem:[#allocation3 + $0x148] sm:$0xff]
        %v2904 = vld [vmem:[#allocation3 + $0x160] sm:$0xff]
        %v2905 = vld [vmem:[#allocation3 + $0x168] sm:$0xff]
        %v2906 = vld [vmem:[#allocation3 + $0x180] sm:$0xff]
        %v2907 = vld [vmem:[#allocation3 + $0x188] sm:$0xff]
        %v2908 = vld [vmem:[#allocation3 + $0x1a0] sm:$0xff]
        %v2909 = vld [vmem:[#allocation3 + $0x1a8] sm:$0xff]
        %v2910 = vld [vmem:[#allocation3 + $0x1c0] sm:$0xff]
        %v2911 = vld [vmem:[#allocation3 + $0x1c8] sm:$0xff]
        %v2912 = vld [vmem:[#allocation3 + $0x1e0] sm:$0xff]
        %v2913 = vld [vmem:[#allocation3 + $0x1e8] sm:$0xff]
        %v2914 = vperm.slane %v2881, 0
        %v2915 = vmul.f32 %v2882, %v2914
        %v2916 = vmul.f32 %v2883, %v2914
        %v2917 = vmul.f32 %v2884, %v2914
        %v2918 = vmul.f32 %v2885, %v2914
        %v2919 = vmul.f32 %v2886, %v2914
        %v2920 = vmul.f32 %v2887, %v2914
        %v2921 = vmul.f32 %v2888, %v2914
        %v2922 = vmul.f32 %v2889, %v2914
        %v2923 = vmul.f32 %v2890, %v2914
        %v2924 = vmul.f32 %v2891, %v2914
        %v2925 = vmul.f32 %v2892, %v2914
        %v2926 = vmul.f32 %v2893, %v2914
        %v2927 = vmul.f32 %v2894, %v2914
        %v2928 = vmul.f32 %v2895, %v2914
        %v2929 = vmul.f32 %v2896, %v2914
        %v2930 = vmul.f32 %v2897, %v2914
        %v2931 = vmul.f32 %v2898, %v2914
        %v2932 = vmul.f32 %v2899, %v2914
        %v2933 = vmul.f32 %v2900, %v2914
        %v2934 = vmul.f32 %v2901, %v2914
        %v2935 = vmul.f32 %v2902, %v2914
        %v2936 = vmul.f32 %v2903, %v2914
        %v2937 = vmul.f32 %v2904, %v2914
        %v2938 = vmul.f32 %v2905, %v2914
        %v2939 = vmul.f32 %v2906, %v2914
        %v2940 = vmul.f32 %v2907, %v2914
        %v2941 = vmul.f32 %v2908, %v2914
        %v2942 = vmul.f32 %v2909, %v2914
        %v2943 = vmul.f32 %v2910, %v2914
        %v2944 = vmul.f32 %v2911, %v2914
        %v2945 = vmul.f32 %v2912, %v2914
        %v2946 = vmul.f32 %v2913, %v2914
        %v2947 = vadd.f32 %v2915, 0.0
        %v2948 = vadd.f32 %v2916, 0.0
        %v2949 = vadd.f32 %v2917, 0.0
        %v2950 = vadd.f32 %v2918, 0.0
        %v2951 = vadd.f32 %v2919, 0.0
        %v2952 = vadd.f32 %v2920, 0.0
        %v2953 = vadd.f32 %v2921, 0.0
        %v2954 = vadd.f32 %v2922, 0.0
        %v2955 = vadd.f32 %v2923, 0.0
        %v2956 = vadd.f32 %v2924, 0.0
        %v2957 = vadd.f32 %v2925, 0.0
        %v2958 = vadd.f32 %v2926, 0.0
        %v2959 = vadd.f32 %v2927, 0.0
        %v2960 = vadd.f32 %v2928, 0.0
        %v2961 = vadd.f32 %v2929, 0.0
        %v2962 = vadd.f32 %v2930, 0.0
        %v2963 = vadd.f32 %v2931, 0.0
        %v2964 = vadd.f32 %v2932, 0.0
        %v2965 = vadd.f32 %v2933, 0.0
        %v2966 = vadd.f32 %v2934, 0.0
        %v2967 = vadd.f32 %v2935, 0.0
        %v2968 = vadd.f32 %v2936, 0.0
        %v2969 = vadd.f32 %v2937, 0.0
        %v2970 = vadd.f32 %v2938, 0.0
        %v2971 = vadd.f32 %v2939, 0.0
        %v2972 = vadd.f32 %v2940, 0.0
        %v2973 = vadd.f32 %v2941, 0.0
        %v2974 = vadd.f32 %v2942, 0.0
        %v2975 = vadd.f32 %v2943, 0.0
        %v2976 = vadd.f32 %v2944, 0.0
        %v2977 = vadd.f32 %v2945, 0.0
        %v2978 = vadd.f32 %v2946, 0.0
        %v2979 = vld [vmem:[#allocation13 + $0x1] sm:$0x1]
        %v2980 = vld [vmem:[#allocation3 + $0x7] sm:$0xff]
        %v2981 = vld [vmem:[#allocation3 + $0xf] sm:$0xff]
        %v2982 = vld [vmem:[#allocation3 + $0x27] sm:$0xff]
        %v2983 = vld [vmem:[#allocation3 + $0x2f] sm:$0xff]
        %v2984 = vld [vmem:[#allocation3 + $0x47] sm:$0xff]
        %v2985 = vld [vmem:[#allocation3 + $0x4f] sm:$0xff]
        %v2986 = vld [vmem:[#allocation3 + $0x67] sm:$0xff]
        %v2987 = vld [vmem:[#allocation3 + $0x6f] sm:$0xff]
        %v2988 = vld [vmem:[#allocation3 + $0x87] sm:$0xff]
        %v2989 = vld [vmem:[#allocation3 + $0x8f] sm:$0xff]
        %v2990 = vld [vmem:[#allocation3 + $0xa7] sm:$0xff]
        %v2991 = vld [vmem:[#allocation3 + $0xaf] sm:$0xff]
        %v2992 = vld [vmem:[#allocation3 + $0xc7] sm:$0xff]
        %v2993 = vld [vmem:[#allocation3 + $0xcf] sm:$0xff]
        %v2994 = vld [vmem:[#allocation3 + $0xe7] sm:$0xff]
        %v2995 = vld [vmem:[#allocation3 + $0xef] sm:$0xff]
        %v2996 = vld [vmem:[#allocation3 + $0x107] sm:$0xff]
        %v2997 = vld [vmem:[#allocation3 + $0x10f] sm:$0xff]
        %v2998 = vld [vmem:[#allocation3 + $0x127] sm:$0xff]
        %v2999 = vld [vmem:[#allocation3 + $0x12f] sm:$0xff]
        %v3000 = vld [vmem:[#allocation3 + $0x147] sm:$0xff]
        %v3001 = vld [vmem:[#allocation3 + $0x14f] sm:$0xff]
        %v3002 = vld [vmem:[#allocation3 + $0x167] sm:$0xff]
        %v3003 = vld [vmem:[#allocation3 + $0x16f] sm:$0xff]
        %v3004 = vld [vmem:[#allocation3 + $0x187] sm:$0xff]
        %v3005 = vld [vmem:[#allocation3 + $0x18f] sm:$0xff]
        %v3006 = vld [vmem:[#allocation3 + $0x1a7] sm:$0xff]
        %v3007 = vld [vmem:[#allocation3 + $0x1af] sm:$0xff]
        %v3008 = vld [vmem:[#allocation3 + $0x1c7] sm:$0xff]
        %v3009 = vld [vmem:[#allocation3 + $0x1cf] sm:$0xff]
        %v3010 = vld [vmem:[#allocation3 + $0x1e7] sm:$0xff]
        %v3011 = vld [vmem:[#allocation3 + $0x1ef] sm:$0xff]
        %v3012 = vperm.slane %v2979, 0
        %v3013 = vmul.f32 %v2980, %v3012
        %v3014 = vmul.f32 %v2981, %v3012
        %v3015 = vmul.f32 %v2982, %v3012
        %v3016 = vmul.f32 %v2983, %v3012
        %v3017 = vmul.f32 %v2984, %v3012
        %v3018 = vmul.f32 %v2985, %v3012
        %v3019 = vmul.f32 %v2986, %v3012
        %v3020 = vmul.f32 %v2987, %v3012
        %v3021 = vmul.f32 %v2988, %v3012
        %v3022 = vmul.f32 %v2989, %v3012
        %v3023 = vmul.f32 %v2990, %v3012
        %v3024 = vmul.f32 %v2991, %v3012
        %v3025 = vmul.f32 %v2992, %v3012
        %v3026 = vmul.f32 %v2993, %v3012
        %v3027 = vmul.f32 %v2994, %v3012
        %v3028 = vmul.f32 %v2995, %v3012
        %v3029 = vmul.f32 %v2996, %v3012
        %v3030 = vmul.f32 %v2997, %v3012
        %v3031 = vmul.f32 %v2998, %v3012
        %v3032 = vmul.f32 %v2999, %v3012
        %v3033 = vmul.f32 %v3000, %v3012
        %v3034 = vmul.f32 %v3001, %v3012
        %v3035 = vmul.f32 %v3002, %v3012
        %v3036 = vmul.f32 %v3003, %v3012
        %v3037 = vmul.f32 %v3004, %v3012
        %v3038 = vmul.f32 %v3005, %v3012
        %v3039 = vmul.f32 %v3006, %v3012
        %v3040 = vmul.f32 %v3007, %v3012
        %v3041 = vmul.f32 %v3008, %v3012
        %v3042 = vmul.f32 %v3009, %v3012
        %v3043 = vmul.f32 %v3010, %v3012
        %v3044 = vmul.f32 %v3011, %v3012
        %v3045 = vadd.f32 %v2947, %v3013
        %v3046 = vadd.f32 %v2948, %v3014
        %v3047 = vadd.f32 %v2949, %v3015
        %v3048 = vadd.f32 %v2950, %v3016
        %v3049 = vadd.f32 %v2951, %v3017
        %v3050 = vadd.f32 %v2952, %v3018
        %v3051 = vadd.f32 %v2953, %v3019
        %v3052 = vadd.f32 %v2954, %v3020
        %v3053 = vadd.f32 %v2955, %v3021
        %v3054 = vadd.f32 %v2956, %v3022
        %v3055 = vadd.f32 %v2957, %v3023
        %v3056 = vadd.f32 %v2958, %v3024
        %v3057 = vadd.f32 %v2959, %v3025
        %v3058 = vadd.f32 %v2960, %v3026
        %v3059 = vadd.f32 %v2961, %v3027
        %v3060 = vadd.f32 %v2962, %v3028
        %v3061 = vadd.f32 %v2963, %v3029
        %v3062 = vadd.f32 %v2964, %v3030
        %v3063 = vadd.f32 %v2965, %v3031
        %v3064 = vadd.f32 %v2966, %v3032
        %v3065 = vadd.f32 %v2967, %v3033
        %v3066 = vadd.f32 %v2968, %v3034
        %v3067 = vadd.f32 %v2969, %v3035
        %v3068 = vadd.f32 %v2970, %v3036
        %v3069 = vadd.f32 %v2971, %v3037
        %v3070 = vadd.f32 %v2972, %v3038
        %v3071 = vadd.f32 %v2973, %v3039
        %v3072 = vadd.f32 %v2974, %v3040
        %v3073 = vadd.f32 %v2975, %v3041
        %v3074 = vadd.f32 %v2976, %v3042
        %v3075 = vadd.f32 %v2977, %v3043
        %v3076 = vadd.f32 %v2978, %v3044
        %v3077 = vld [vmem:[#allocation13 + $0x2] sm:$0x1]
        %v3078 = vld [vmem:[#allocation3 + $0xe] sm:$0xff]
        %v3079 = vld [vmem:[#allocation3 + $0x16] sm:$0xff]
        %v3080 = vld [vmem:[#allocation3 + $0x2e] sm:$0xff]
        %v3081 = vld [vmem:[#allocation3 + $0x36] sm:$0xff]
        %v3082 = vld [vmem:[#allocation3 + $0x4e] sm:$0xff]
        %v3083 = vld [vmem:[#allocation3 + $0x56] sm:$0xff]
        %v3084 = vld [vmem:[#allocation3 + $0x6e] sm:$0xff]
        %v3085 = vld [vmem:[#allocation3 + $0x76] sm:$0xff]
        %v3086 = vld [vmem:[#allocation3 + $0x8e] sm:$0xff]
        %v3087 = vld [vmem:[#allocation3 + $0x96] sm:$0xff]
        %v3088 = vld [vmem:[#allocation3 + $0xae] sm:$0xff]
        %v3089 = vld [vmem:[#allocation3 + $0xb6] sm:$0xff]
        %v3090 = vld [vmem:[#allocation3 + $0xce] sm:$0xff]
        %v3091 = vld [vmem:[#allocation3 + $0xd6] sm:$0xff]
        %v3092 = vld [vmem:[#allocation3 + $0xee] sm:$0xff]
        %v3093 = vld [vmem:[#allocation3 + $0xf6] sm:$0xff]
        %v3094 = vld [vmem:[#allocation3 + $0x10e] sm:$0xff]
        %v3095 = vld [vmem:[#allocation3 + $0x116] sm:$0xff]
        %v3096 = vld [vmem:[#allocation3 + $0x12e] sm:$0xff]
        %v3097 = vld [vmem:[#allocation3 + $0x136] sm:$0xff]
        %v3098 = vld [vmem:[#allocation3 + $0x14e] sm:$0xff]
        %v3099 = vld [vmem:[#allocation3 + $0x156] sm:$0xff]
        %v3100 = vld [vmem:[#allocation3 + $0x16e] sm:$0xff]
        %v3101 = vld [vmem:[#allocation3 + $0x176] sm:$0xff]
        %v3102 = vld [vmem:[#allocation3 + $0x18e] sm:$0xff]
        %v3103 = vld [vmem:[#allocation3 + $0x196] sm:$0xff]
        %v3104 = vld [vmem:[#allocation3 + $0x1ae] sm:$0xff]
        %v3105 = vld [vmem:[#allocation3 + $0x1b6] sm:$0xff]
        %v3106 = vld [vmem:[#allocation3 + $0x1ce] sm:$0xff]
        %v3107 = vld [vmem:[#allocation3 + $0x1d6] sm:$0xff]
        %v3108 = vld [vmem:[#allocation3 + $0x1ee] sm:$0xff]
        %v3109 = vld [vmem:[#allocation3 + $0x1f6] sm:$0xff]
        %v3110 = vperm.slane %v3077, 0
        %v3111 = vmul.f32 %v3078, %v3110
        %v3112 = vmul.f32 %v3079, %v3110
        %v3113 = vmul.f32 %v3080, %v3110
        %v3114 = vmul.f32 %v3081, %v3110
        %v3115 = vmul.f32 %v3082, %v3110
        %v3116 = vmul.f32 %v3083, %v3110
        %v3117 = vmul.f32 %v3084, %v3110
        %v3118 = vmul.f32 %v3085, %v3110
        %v3119 = vmul.f32 %v3086, %v3110
        %v3120 = vmul.f32 %v3087, %v3110
        %v3121 = vmul.f32 %v3088, %v3110
        %v3122 = vmul.f32 %v3089, %v3110
        %v3123 = vmul.f32 %v3090, %v3110
        %v3124 = vmul.f32 %v3091, %v3110
        %v3125 = vmul.f32 %v3092, %v3110
        %v3126 = vmul.f32 %v3093, %v3110
        %v3127 = vmul.f32 %v3094, %v3110
        %v3128 = vmul.f32 %v3095, %v3110
        %v3129 = vmul.f32 %v3096, %v3110
        %v3130 = vmul.f32 %v3097, %v3110
        %v3131 = vmul.f32 %v3098, %v3110
        %v3132 = vmul.f32 %v3099, %v3110
        %v3133 = vmul.f32 %v3100, %v3110
        %v3134 = vmul.f32 %v3101, %v3110
        %v3135 = vmul.f32 %v3102, %v3110
        %v3136 = vmul.f32 %v3103, %v3110
        %v3137 = vmul.f32 %v3104, %v3110
        %v3138 = vmul.f32 %v3105, %v3110
        %v3139 = vmul.f32 %v3106, %v3110
        %v3140 = vmul.f32 %v3107, %v3110
        %v3141 = vmul.f32 %v3108, %v3110
        %v3142 = vmul.f32 %v3109, %v3110
        %v3143 = vadd.f32 %v3045, %v3111
        %v3144 = vadd.f32 %v3046, %v3112
        %v3145 = vadd.f32 %v3047, %v3113
        %v3146 = vadd.f32 %v3048, %v3114
        %v3147 = vadd.f32 %v3049, %v3115
        %v3148 = vadd.f32 %v3050, %v3116
        %v3149 = vadd.f32 %v3051, %v3117
        %v3150 = vadd.f32 %v3052, %v3118
        %v3151 = vadd.f32 %v3053, %v3119
        %v3152 = vadd.f32 %v3054, %v3120
        %v3153 = vadd.f32 %v3055, %v3121
        %v3154 = vadd.f32 %v3056, %v3122
        %v3155 = vadd.f32 %v3057, %v3123
        %v3156 = vadd.f32 %v3058, %v3124
        %v3157 = vadd.f32 %v3059, %v3125
        %v3158 = vadd.f32 %v3060, %v3126
        %v3159 = vadd.f32 %v3061, %v3127
        %v3160 = vadd.f32 %v3062, %v3128
        %v3161 = vadd.f32 %v3063, %v3129
        %v3162 = vadd.f32 %v3064, %v3130
        %v3163 = vadd.f32 %v3065, %v3131
        %v3164 = vadd.f32 %v3066, %v3132
        %v3165 = vadd.f32 %v3067, %v3133
        %v3166 = vadd.f32 %v3068, %v3134
        %v3167 = vadd.f32 %v3069, %v3135
        %v3168 = vadd.f32 %v3070, %v3136
        %v3169 = vadd.f32 %v3071, %v3137
        %v3170 = vadd.f32 %v3072, %v3138
        %v3171 = vadd.f32 %v3073, %v3139
        %v3172 = vadd.f32 %v3074, %v3140
        %v3173 = vadd.f32 %v3075, %v3141
        %v3174 = vadd.f32 %v3076, %v3142
        %v3175 = vld [vmem:[#allocation13 + $0x3] sm:$0x1]
        %v3176 = vld [vmem:[%s2848] sm:$0xff]
        %v3177 = vld [vmem:[%s2848 + $0x8] sm:$0xff]
        %v3178 = vld [vmem:[%s2848 + $0x20] sm:$0xff]
        %v3179 = vld [vmem:[%s2848 + $0x28] sm:$0xff]
        %v3180 = vld [vmem:[%s2848 + $0x40] sm:$0xff]
        %v3181 = vld [vmem:[%s2848 + $0x48] sm:$0xff]
        %v3182 = vld [vmem:[%s2848 + $0x60] sm:$0xff]
        %v3183 = vld [vmem:[%s2848 + $0x68] sm:$0xff]
        %v3184 = vld [vmem:[%s2848 + $0x80] sm:$0xff]
        %v3185 = vld [vmem:[%s2848 + $0x88] sm:$0xff]
        %v3186 = vld [vmem:[%s2848 + $0xa0] sm:$0xff]
        %v3187 = vld [vmem:[%s2848 + $0xa8] sm:$0xff]
        %v3188 = vld [vmem:[%s2848 + $0xc0] sm:$0xff]
        %v3189 = vld [vmem:[%s2848 + $0xc8] sm:$0xff]
        %v3190 = vld [vmem:[%s2848 + $0xe0] sm:$0xff]
        %v3191 = vld [vmem:[%s2848 + $0xe8] sm:$0xff]
        %v3192 = vld [vmem:[%s2848 + $0x100] sm:$0xff]
        %v3193 = vld [vmem:[%s2848 + $0x108] sm:$0xff]
        %v3194 = vld [vmem:[%s2848 + $0x120] sm:$0xff]
        %v3195 = vld [vmem:[%s2848 + $0x128] sm:$0xff]
        %v3196 = vld [vmem:[%s2848 + $0x140] sm:$0xff]
        %v3197 = vld [vmem:[%s2848 + $0x148] sm:$0xff]
        %v3198 = vld [vmem:[%s2848 + $0x160] sm:$0xff]
        %v3199 = vld [vmem:[%s2848 + $0x168] sm:$0xff]
        %v3200 = vld [vmem:[%s2848 + $0x180] sm:$0xff]
        %v3201 = vld [vmem:[%s2848 + $0x188] sm:$0xff]
        %v3202 = vld [vmem:[%s2848 + $0x1a0] sm:$0xff]
        %v3203 = vld [vmem:[%s2848 + $0x1a8] sm:$0xff]
        %v3204 = vld [vmem:[%s2848 + $0x1c0] sm:$0xff]
        %v3205 = vld [vmem:[%s2848 + $0x1c8] sm:$0xff]
        %v3206 = vld [vmem:[%s2848 + $0x1e0] sm:$0xff]
        %v3207 = vld [vmem:[%s2848 + $0x1e8] sm:$0xff]
        %v3208 = vperm.slane %v3175, 0
        %v3209 = vmul.f32 %v3176, %v3208
        %v3210 = vmul.f32 %v3177, %v3208
        %v3211 = vmul.f32 %v3178, %v3208
        %v3212 = vmul.f32 %v3179, %v3208
        %v3213 = vmul.f32 %v3180, %v3208
        %v3214 = vmul.f32 %v3181, %v3208
        %v3215 = vmul.f32 %v3182, %v3208
        %v3216 = vmul.f32 %v3183, %v3208
        %v3217 = vmul.f32 %v3184, %v3208
        %v3218 = vmul.f32 %v3185, %v3208
        %v3219 = vmul.f32 %v3186, %v3208
        %v3220 = vmul.f32 %v3187, %v3208
        %v3221 = vmul.f32 %v3188, %v3208
        %v3222 = vmul.f32 %v3189, %v3208
        %v3223 = vmul.f32 %v3190, %v3208
        %v3224 = vmul.f32 %v3191, %v3208
        %v3225 = vmul.f32 %v3192, %v3208
        %v3226 = vmul.f32 %v3193, %v3208
        %v3227 = vmul.f32 %v3194, %v3208
        %v3228 = vmul.f32 %v3195, %v3208
        %v3229 = vmul.f32 %v3196, %v3208
        %v3230 = vmul.f32 %v3197, %v3208
        %v3231 = vmul.f32 %v3198, %v3208
        %v3232 = vmul.f32 %v3199, %v3208
        %v3233 = vmul.f32 %v3200, %v3208
        %v3234 = vmul.f32 %v3201, %v3208
        %v3235 = vmul.f32 %v3202, %v3208
        %v3236 = vmul.f32 %v3203, %v3208
        %v3237 = vmul.f32 %v3204, %v3208
        %v3238 = vmul.f32 %v3205, %v3208
        %v3239 = vmul.f32 %v3206, %v3208
        %v3240 = vmul.f32 %v3207, %v3208
        %v3241 = vadd.f32 %v3143, %v3209
        %v3242 = vadd.f32 %v3144, %v3210
        %v3243 = vadd.f32 %v3145, %v3211
        %v3244 = vadd.f32 %v3146, %v3212
        %v3245 = vadd.f32 %v3147, %v3213
        %v3246 = vadd.f32 %v3148, %v3214
        %v3247 = vadd.f32 %v3149, %v3215
        %v3248 = vadd.f32 %v3150, %v3216
        %v3249 = vadd.f32 %v3151, %v3217
        %v3250 = vadd.f32 %v3152, %v3218
        %v3251 = vadd.f32 %v3153, %v3219
        %v3252 = vadd.f32 %v3154, %v3220
        %v3253 = vadd.f32 %v3155, %v3221
        %v3254 = vadd.f32 %v3156, %v3222
        %v3255 = vadd.f32 %v3157, %v3223
        %v3256 = vadd.f32 %v3158, %v3224
        %v3257 = vadd.f32 %v3159, %v3225
        %v3258 = vadd.f32 %v3160, %v3226
        %v3259 = vadd.f32 %v3161, %v3227
        %v3260 = vadd.f32 %v3162, %v3228
        %v3261 = vadd.f32 %v3163, %v3229
        %v3262 = vadd.f32 %v3164, %v3230
        %v3263 = vadd.f32 %v3165, %v3231
        %v3264 = vadd.f32 %v3166, %v3232
        %v3265 = vadd.f32 %v3167, %v3233
        %v3266 = vadd.f32 %v3168, %v3234
        %v3267 = vadd.f32 %v3169, %v3235
        %v3268 = vadd.f32 %v3170, %v3236
        %v3269 = vadd.f32 %v3171, %v3237
        %v3270 = vadd.f32 %v3172, %v3238
        %v3271 = vadd.f32 %v3173, %v3239
        %v3272 = vadd.f32 %v3174, %v3240
        %v3273 = vld [vmem:[#allocation13 + $0x4] sm:$0x1]
        %v3274 = vld [vmem:[%s2848 + $0x7] sm:$0xff]
        %v3275 = vld [vmem:[%s2848 + $0xf] sm:$0xff]
        %v3276 = vld [vmem:[%s2848 + $0x27] sm:$0xff]
        %v3277 = vld [vmem:[%s2848 + $0x2f] sm:$0xff]
        %v3278 = vld [vmem:[%s2848 + $0x47] sm:$0xff]
        %v3279 = vld [vmem:[%s2848 + $0x4f] sm:$0xff]
        %v3280 = vld [vmem:[%s2848 + $0x67] sm:$0xff]
        %v3281 = vld [vmem:[%s2848 + $0x6f] sm:$0xff]
        %v3282 = vld [vmem:[%s2848 + $0x87] sm:$0xff]
        %v3283 = vld [vmem:[%s2848 + $0x8f] sm:$0xff]
        %v3284 = vld [vmem:[%s2848 + $0xa7] sm:$0xff]
        %v3285 = vld [vmem:[%s2848 + $0xaf] sm:$0xff]
        %v3286 = vld [vmem:[%s2848 + $0xc7] sm:$0xff]
        %v3287 = vld [vmem:[%s2848 + $0xcf] sm:$0xff]
        %v3288 = vld [vmem:[%s2848 + $0xe7] sm:$0xff]
        %v3289 = vld [vmem:[%s2848 + $0xef] sm:$0xff]
        %v3290 = vld [vmem:[%s2848 + $0x107] sm:$0xff]
        %v3291 = vld [vmem:[%s2848 + $0x10f] sm:$0xff]
        %v3292 = vld [vmem:[%s2848 + $0x127] sm:$0xff]
        %v3293 = vld [vmem:[%s2848 + $0x12f] sm:$0xff]
        %v3294 = vld [vmem:[%s2848 + $0x147] sm:$0xff]
        %v3295 = vld [vmem:[%s2848 + $0x14f] sm:$0xff]
        %v3296 = vld [vmem:[%s2848 + $0x167] sm:$0xff]
        %v3297 = vld [vmem:[%s2848 + $0x16f] sm:$0xff]
        %v3298 = vld [vmem:[%s2848 + $0x187] sm:$0xff]
        %v3299 = vld [vmem:[%s2848 + $0x18f] sm:$0xff]
        %v3300 = vld [vmem:[%s2848 + $0x1a7] sm:$0xff]
        %v3301 = vld [vmem:[%s2848 + $0x1af] sm:$0xff]
        %v3302 = vld [vmem:[%s2848 + $0x1c7] sm:$0xff]
        %v3303 = vld [vmem:[%s2848 + $0x1cf] sm:$0xff]
        %v3304 = vld [vmem:[%s2848 + $0x1e7] sm:$0xff]
        %v3305 = vld [vmem:[%s2848 + $0x1ef] sm:$0xff]
        %v3306 = vperm.slane %v3273, 0
        %v3307 = vmul.f32 %v3274, %v3306
        %v3308 = vmul.f32 %v3275, %v3306
        %v3309 = vmul.f32 %v3276, %v3306
        %v3310 = vmul.f32 %v3277, %v3306
        %v3311 = vmul.f32 %v3278, %v3306
        %v3312 = vmul.f32 %v3279, %v3306
        %v3313 = vmul.f32 %v3280, %v3306
        %v3314 = vmul.f32 %v3281, %v3306
        %v3315 = vmul.f32 %v3282, %v3306
        %v3316 = vmul.f32 %v3283, %v3306
        %v3317 = vmul.f32 %v3284, %v3306
        %v3318 = vmul.f32 %v3285, %v3306
        %v3319 = vmul.f32 %v3286, %v3306
        %v3320 = vmul.f32 %v3287, %v3306
        %v3321 = vmul.f32 %v3288, %v3306
        %v3322 = vmul.f32 %v3289, %v3306
        %v3323 = vmul.f32 %v3290, %v3306
        %v3324 = vmul.f32 %v3291, %v3306
        %v3325 = vmul.f32 %v3292, %v3306
        %v3326 = vmul.f32 %v3293, %v3306
        %v3327 = vmul.f32 %v3294, %v3306
        %v3328 = vmul.f32 %v3295, %v3306
        %v3329 = vmul.f32 %v3296, %v3306
        %v3330 = vmul.f32 %v3297, %v3306
        %v3331 = vmul.f32 %v3298, %v3306
        %v3332 = vmul.f32 %v3299, %v3306
        %v3333 = vmul.f32 %v3300, %v3306
        %v3334 = vmul.f32 %v3301, %v3306
        %v3335 = vmul.f32 %v3302, %v3306
        %v3336 = vmul.f32 %v3303, %v3306
        %v3337 = vmul.f32 %v3304, %v3306
        %v3338 = vmul.f32 %v3305, %v3306
        %v3339 = vadd.f32 %v3241, %v3307
        %v3340 = vadd.f32 %v3242, %v3308
        %v3341 = vadd.f32 %v3243, %v3309
        %v3342 = vadd.f32 %v3244, %v3310
        %v3343 = vadd.f32 %v3245, %v3311
        %v3344 = vadd.f32 %v3246, %v3312
        %v3345 = vadd.f32 %v3247, %v3313
        %v3346 = vadd.f32 %v3248, %v3314
        %v3347 = vadd.f32 %v3249, %v3315
        %v3348 = vadd.f32 %v3250, %v3316
        %v3349 = vadd.f32 %v3251, %v3317
        %v3350 = vadd.f32 %v3252, %v3318
        %v3351 = vadd.f32 %v3253, %v3319
        %v3352 = vadd.f32 %v3254, %v3320
        %v3353 = vadd.f32 %v3255, %v3321
        %v3354 = vadd.f32 %v3256, %v3322
        %v3355 = vadd.f32 %v3257, %v3323
        %v3356 = vadd.f32 %v3258, %v3324
        %v3357 = vadd.f32 %v3259, %v3325
        %v3358 = vadd.f32 %v3260, %v3326
        %v3359 = vadd.f32 %v3261, %v3327
        %v3360 = vadd.f32 %v3262, %v3328
        %v3361 = vadd.f32 %v3263, %v3329
        %v3362 = vadd.f32 %v3264, %v3330
        %v3363 = vadd.f32 %v3265, %v3331
        %v3364 = vadd.f32 %v3266, %v3332
        %v3365 = vadd.f32 %v3267, %v3333
        %v3366 = vadd.f32 %v3268, %v3334
        %v3367 = vadd.f32 %v3269, %v3335
        %v3368 = vadd.f32 %v3270, %v3336
        %v3369 = vadd.f32 %v3271, %v3337
        %v3370 = vadd.f32 %v3272, %v3338
        %v3371 = vld [vmem:[#allocation13 + $0x5] sm:$0x1]
        %v3372 = vld [vmem:[%s2848 + $0xe] sm:$0xff]
        %v3373 = vld [vmem:[%s2848 + $0x16] sm:$0xff]
        %v3374 = vld [vmem:[%s2848 + $0x2e] sm:$0xff]
        %v3375 = vld [vmem:[%s2848 + $0x36] sm:$0xff]
        %v3376 = vld [vmem:[%s2848 + $0x4e] sm:$0xff]
        %v3377 = vld [vmem:[%s2848 + $0x56] sm:$0xff]
        %v3378 = vld [vmem:[%s2848 + $0x6e] sm:$0xff]
        %v3379 = vld [vmem:[%s2848 + $0x76] sm:$0xff]
        %v3380 = vld [vmem:[%s2848 + $0x8e] sm:$0xff]
        %v3381 = vld [vmem:[%s2848 + $0x96] sm:$0xff]
        %v3382 = vld [vmem:[%s2848 + $0xae] sm:$0xff]
        %v3383 = vld [vmem:[%s2848 + $0xb6] sm:$0xff]
        %v3384 = vld [vmem:[%s2848 + $0xce] sm:$0xff]
        %v3385 = vld [vmem:[%s2848 + $0xd6] sm:$0xff]
        %v3386 = vld [vmem:[%s2848 + $0xee] sm:$0xff]
        %v3387 = vld [vmem:[%s2848 + $0xf6] sm:$0xff]
        %v3388 = vld [vmem:[%s2848 + $0x10e] sm:$0xff]
        %v3389 = vld [vmem:[%s2848 + $0x116] sm:$0xff]
        %v3390 = vld [vmem:[%s2848 + $0x12e] sm:$0xff]
        %v3391 = vld [vmem:[%s2848 + $0x136] sm:$0xff]
        %v3392 = vld [vmem:[%s2848 + $0x14e] sm:$0xff]
        %v3393 = vld [vmem:[%s2848 + $0x156] sm:$0xff]
        %v3394 = vld [vmem:[%s2848 + $0x16e] sm:$0xff]
        %v3395 = vld [vmem:[%s2848 + $0x176] sm:$0xff]
        %v3396 = vld [vmem:[%s2848 + $0x18e] sm:$0xff]
        %v3397 = vld [vmem:[%s2848 + $0x196] sm:$0xff]
        %v3398 = vld [vmem:[%s2848 + $0x1ae] sm:$0xff]
        %v3399 = vld [vmem:[%s2848 + $0x1b6] sm:$0xff]
        %v3400 = vld [vmem:[%s2848 + $0x1ce] sm:$0xff]
        %v3401 = vld [vmem:[%s2848 + $0x1d6] sm:$0xff]
        %v3402 = vld [vmem:[%s2848 + $0x1ee] sm:$0xff]
        %v3403 = vld [vmem:[%s2848 + $0x1f6] sm:$0xff]
        %v3404 = vperm.slane %v3371, 0
        %v3405 = vmul.f32 %v3372, %v3404
        %v3406 = vmul.f32 %v3373, %v3404
        %v3407 = vmul.f32 %v3374, %v3404
        %v3408 = vmul.f32 %v3375, %v3404
        %v3409 = vmul.f32 %v3376, %v3404
        %v3410 = vmul.f32 %v3377, %v3404
        %v3411 = vmul.f32 %v3378, %v3404
        %v3412 = vmul.f32 %v3379, %v3404
        %v3413 = vmul.f32 %v3380, %v3404
        %v3414 = vmul.f32 %v3381, %v3404
        %v3415 = vmul.f32 %v3382, %v3404
        %v3416 = vmul.f32 %v3383, %v3404
        %v3417 = vmul.f32 %v3384, %v3404
        %v3418 = vmul.f32 %v3385, %v3404
        %v3419 = vmul.f32 %v3386, %v3404
        %v3420 = vmul.f32 %v3387, %v3404
        %v3421 = vmul.f32 %v3388, %v3404
        %v3422 = vmul.f32 %v3389, %v3404
        %v3423 = vmul.f32 %v3390, %v3404
        %v3424 = vmul.f32 %v3391, %v3404
        %v3425 = vmul.f32 %v3392, %v3404
        %v3426 = vmul.f32 %v3393, %v3404
        %v3427 = vmul.f32 %v3394, %v3404
        %v3428 = vmul.f32 %v3395, %v3404
        %v3429 = vmul.f32 %v3396, %v3404
        %v3430 = vmul.f32 %v3397, %v3404
        %v3431 = vmul.f32 %v3398, %v3404
        %v3432 = vmul.f32 %v3399, %v3404
        %v3433 = vmul.f32 %v3400, %v3404
        %v3434 = vmul.f32 %v3401, %v3404
        %v3435 = vmul.f32 %v3402, %v3404
        %v3436 = vmul.f32 %v3403, %v3404
        %v3437 = vadd.f32 %v3339, %v3405
        %v3438 = vadd.f32 %v3340, %v3406
        %v3439 = vadd.f32 %v3341, %v3407
        %v3440 = vadd.f32 %v3342, %v3408
        %v3441 = vadd.f32 %v3343, %v3409
        %v3442 = vadd.f32 %v3344, %v3410
        %v3443 = vadd.f32 %v3345, %v3411
        %v3444 = vadd.f32 %v3346, %v3412
        %v3445 = vadd.f32 %v3347, %v3413
        %v3446 = vadd.f32 %v3348, %v3414
        %v3447 = vadd.f32 %v3349, %v3415
        %v3448 = vadd.f32 %v3350, %v3416
        %v3449 = vadd.f32 %v3351, %v3417
        %v3450 = vadd.f32 %v3352, %v3418
        %v3451 = vadd.f32 %v3353, %v3419
        %v3452 = vadd.f32 %v3354, %v3420
        %v3453 = vadd.f32 %v3355, %v3421
        %v3454 = vadd.f32 %v3356, %v3422
        %v3455 = vadd.f32 %v3357, %v3423
        %v3456 = vadd.f32 %v3358, %v3424
        %v3457 = vadd.f32 %v3359, %v3425
        %v3458 = vadd.f32 %v3360, %v3426
        %v3459 = vadd.f32 %v3361, %v3427
        %v3460 = vadd.f32 %v3362, %v3428
        %v3461 = vadd.f32 %v3363, %v3429
        %v3462 = vadd.f32 %v3364, %v3430
        %v3463 = vadd.f32 %v3365, %v3431
        %v3464 = vadd.f32 %v3366, %v3432
        %v3465 = vadd.f32 %v3367, %v3433
        %v3466 = vadd.f32 %v3368, %v3434
        %v3467 = vadd.f32 %v3369, %v3435
        %v3468 = vadd.f32 %v3370, %v3436
        %v3469 = vld [vmem:[#allocation13 + $0x6] sm:$0x1]
        %s3470 = scalar_lea.vmem [#allocation3], 448
        %v3471 = vld [vmem:[%s3470] sm:$0xff]
        %v3472 = vld [vmem:[%s3470 + $0x8] sm:$0xff]
        %v3473 = vld [vmem:[%s3470 + $0x20] sm:$0xff]
        %v3474 = vld [vmem:[%s3470 + $0x28] sm:$0xff]
        %v3475 = vld [vmem:[%s3470 + $0x40] sm:$0xff]
        %v3476 = vld [vmem:[%s3470 + $0x48] sm:$0xff]
        %v3477 = vld [vmem:[%s3470 + $0x60] sm:$0xff]
        %v3478 = vld [vmem:[%s3470 + $0x68] sm:$0xff]
        %v3479 = vld [vmem:[%s3470 + $0x80] sm:$0xff]
        %v3480 = vld [vmem:[%s3470 + $0x88] sm:$0xff]
        %v3481 = vld [vmem:[%s3470 + $0xa0] sm:$0xff]
        %v3482 = vld [vmem:[%s3470 + $0xa8] sm:$0xff]
        %v3483 = vld [vmem:[%s3470 + $0xc0] sm:$0xff]
        %v3484 = vld [vmem:[%s3470 + $0xc8] sm:$0xff]
        %v3485 = vld [vmem:[%s3470 + $0xe0] sm:$0xff]
        %v3486 = vld [vmem:[%s3470 + $0xe8] sm:$0xff]
        %v3487 = vld [vmem:[%s3470 + $0x100] sm:$0xff]
        %v3488 = vld [vmem:[%s3470 + $0x108] sm:$0xff]
        %v3489 = vld [vmem:[%s3470 + $0x120] sm:$0xff]
        %v3490 = vld [vmem:[%s3470 + $0x128] sm:$0xff]
        %v3491 = vld [vmem:[%s3470 + $0x140] sm:$0xff]
        %v3492 = vld [vmem:[%s3470 + $0x148] sm:$0xff]
        %v3493 = vld [vmem:[%s3470 + $0x160] sm:$0xff]
        %v3494 = vld [vmem:[%s3470 + $0x168] sm:$0xff]
        %v3495 = vld [vmem:[%s3470 + $0x180] sm:$0xff]
        %v3496 = vld [vmem:[%s3470 + $0x188] sm:$0xff]
        %v3497 = vld [vmem:[%s3470 + $0x1a0] sm:$0xff]
        %v3498 = vld [vmem:[%s3470 + $0x1a8] sm:$0xff]
        %v3499 = vld [vmem:[%s3470 + $0x1c0] sm:$0xff]
        %v3500 = vld [vmem:[%s3470 + $0x1c8] sm:$0xff]
        %v3501 = vld [vmem:[%s3470 + $0x1e0] sm:$0xff]
        %v3502 = vld [vmem:[%s3470 + $0x1e8] sm:$0xff]
        %v3503 = vperm.slane %v3469, 0
        %v3504 = vmul.f32 %v3471, %v3503
        %v3505 = vmul.f32 %v3472, %v3503
        %v3506 = vmul.f32 %v3473, %v3503
        %v3507 = vmul.f32 %v3474, %v3503
        %v3508 = vmul.f32 %v3475, %v3503
        %v3509 = vmul.f32 %v3476, %v3503
        %v3510 = vmul.f32 %v3477, %v3503
        %v3511 = vmul.f32 %v3478, %v3503
        %v3512 = vmul.f32 %v3479, %v3503
        %v3513 = vmul.f32 %v3480, %v3503
        %v3514 = vmul.f32 %v3481, %v3503
        %v3515 = vmul.f32 %v3482, %v3503
        %v3516 = vmul.f32 %v3483, %v3503
        %v3517 = vmul.f32 %v3484, %v3503
        %v3518 = vmul.f32 %v3485, %v3503
        %v3519 = vmul.f32 %v3486, %v3503
        %v3520 = vmul.f32 %v3487, %v3503
        %v3521 = vmul.f32 %v3488, %v3503
        %v3522 = vmul.f32 %v3489, %v3503
        %v3523 = vmul.f32 %v3490, %v3503
        %v3524 = vmul.f32 %v3491, %v3503
        %v3525 = vmul.f32 %v3492, %v3503
        %v3526 = vmul.f32 %v3493, %v3503
        %v3527 = vmul.f32 %v3494, %v3503
        %v3528 = vmul.f32 %v3495, %v3503
        %v3529 = vmul.f32 %v3496, %v3503
        %v3530 = vmul.f32 %v3497, %v3503
        %v3531 = vmul.f32 %v3498, %v3503
        %v3532 = vmul.f32 %v3499, %v3503
        %v3533 = vmul.f32 %v3500, %v3503
        %v3534 = vmul.f32 %v3501, %v3503
        %v3535 = vmul.f32 %v3502, %v3503
        %v3536 = vadd.f32 %v3437, %v3504
        %v3537 = vadd.f32 %v3438, %v3505
        %v3538 = vadd.f32 %v3439, %v3506
        %v3539 = vadd.f32 %v3440, %v3507
        %v3540 = vadd.f32 %v3441, %v3508
        %v3541 = vadd.f32 %v3442, %v3509
        %v3542 = vadd.f32 %v3443, %v3510
        %v3543 = vadd.f32 %v3444, %v3511
        %v3544 = vadd.f32 %v3445, %v3512
        %v3545 = vadd.f32 %v3446, %v3513
        %v3546 = vadd.f32 %v3447, %v3514
        %v3547 = vadd.f32 %v3448, %v3515
        %v3548 = vadd.f32 %v3449, %v3516
        %v3549 = vadd.f32 %v3450, %v3517
        %v3550 = vadd.f32 %v3451, %v3518
        %v3551 = vadd.f32 %v3452, %v3519
        %v3552 = vadd.f32 %v3453, %v3520
        %v3553 = vadd.f32 %v3454, %v3521
        %v3554 = vadd.f32 %v3455, %v3522
        %v3555 = vadd.f32 %v3456, %v3523
        %v3556 = vadd.f32 %v3457, %v3524
        %v3557 = vadd.f32 %v3458, %v3525
        %v3558 = vadd.f32 %v3459, %v3526
        %v3559 = vadd.f32 %v3460, %v3527
        %v3560 = vadd.f32 %v3461, %v3528
        %v3561 = vadd.f32 %v3462, %v3529
        %v3562 = vadd.f32 %v3463, %v3530
        %v3563 = vadd.f32 %v3464, %v3531
        %v3564 = vadd.f32 %v3465, %v3532
        %v3565 = vadd.f32 %v3466, %v3533
        %v3566 = vadd.f32 %v3467, %v3534
        %v3567 = vadd.f32 %v3468, %v3535
        %v3568 = vld [vmem:[#allocation13 + $0x7] sm:$0x1]
        %v3569 = vld [vmem:[%s3470 + $0x7] sm:$0xff]
        %v3570 = vld [vmem:[%s3470 + $0xf] sm:$0xff]
        %v3571 = vld [vmem:[%s3470 + $0x27] sm:$0xff]
        %v3572 = vld [vmem:[%s3470 + $0x2f] sm:$0xff]
        %v3573 = vld [vmem:[%s3470 + $0x47] sm:$0xff]
        %v3574 = vld [vmem:[%s3470 + $0x4f] sm:$0xff]
        %v3575 = vld [vmem:[%s3470 + $0x67] sm:$0xff]
        %v3576 = vld [vmem:[%s3470 + $0x6f] sm:$0xff]
        %v3577 = vld [vmem:[%s3470 + $0x87] sm:$0xff]
        %v3578 = vld [vmem:[%s3470 + $0x8f] sm:$0xff]
        %v3579 = vld [vmem:[%s3470 + $0xa7] sm:$0xff]
        %v3580 = vld [vmem:[%s3470 + $0xaf] sm:$0xff]
        %v3581 = vld [vmem:[%s3470 + $0xc7] sm:$0xff]
        %v3582 = vld [vmem:[%s3470 + $0xcf] sm:$0xff]
        %v3583 = vld [vmem:[%s3470 + $0xe7] sm:$0xff]
        %v3584 = vld [vmem:[%s3470 + $0xef] sm:$0xff]
        %v3585 = vld [vmem:[%s3470 + $0x107] sm:$0xff]
        %v3586 = vld [vmem:[%s3470 + $0x10f] sm:$0xff]
        %v3587 = vld [vmem:[%s3470 + $0x127] sm:$0xff]
        %v3588 = vld [vmem:[%s3470 + $0x12f] sm:$0xff]
        %v3589 = vld [vmem:[%s3470 + $0x147] sm:$0xff]
        %v3590 = vld [vmem:[%s3470 + $0x14f] sm:$0xff]
        %v3591 = vld [vmem:[%s3470 + $0x167] sm:$0xff]
        %v3592 = vld [vmem:[%s3470 + $0x16f] sm:$0xff]
        %v3593 = vld [vmem:[%s3470 + $0x187] sm:$0xff]
        %v3594 = vld [vmem:[%s3470 + $0x18f] sm:$0xff]
        %v3595 = vld [vmem:[%s3470 + $0x1a7] sm:$0xff]
        %v3596 = vld [vmem:[%s3470 + $0x1af] sm:$0xff]
        %v3597 = vld [vmem:[%s3470 + $0x1c7] sm:$0xff]
        %v3598 = vld [vmem:[%s3470 + $0x1cf] sm:$0xff]
        %v3599 = vld [vmem:[%s3470 + $0x1e7] sm:$0xff]
        %v3600 = vld [vmem:[%s3470 + $0x1ef] sm:$0xff]
        %v3601 = vperm.slane %v3568, 0
        %v3602 = vmul.f32 %v3569, %v3601
        %v3603 = vmul.f32 %v3570, %v3601
        %v3604 = vmul.f32 %v3571, %v3601
        %v3605 = vmul.f32 %v3572, %v3601
        %v3606 = vmul.f32 %v3573, %v3601
        %v3607 = vmul.f32 %v3574, %v3601
        %v3608 = vmul.f32 %v3575, %v3601
        %v3609 = vmul.f32 %v3576, %v3601
        %v3610 = vmul.f32 %v3577, %v3601
        %v3611 = vmul.f32 %v3578, %v3601
        %v3612 = vmul.f32 %v3579, %v3601
        %v3613 = vmul.f32 %v3580, %v3601
        %v3614 = vmul.f32 %v3581, %v3601
        %v3615 = vmul.f32 %v3582, %v3601
        %v3616 = vmul.f32 %v3583, %v3601
        %v3617 = vmul.f32 %v3584, %v3601
        %v3618 = vmul.f32 %v3585, %v3601
        %v3619 = vmul.f32 %v3586, %v3601
        %v3620 = vmul.f32 %v3587, %v3601
        %v3621 = vmul.f32 %v3588, %v3601
        %v3622 = vmul.f32 %v3589, %v3601
        %v3623 = vmul.f32 %v3590, %v3601
        %v3624 = vmul.f32 %v3591, %v3601
        %v3625 = vmul.f32 %v3592, %v3601
        %v3626 = vmul.f32 %v3593, %v3601
        %v3627 = vmul.f32 %v3594, %v3601
        %v3628 = vmul.f32 %v3595, %v3601
        %v3629 = vmul.f32 %v3596, %v3601
        %v3630 = vmul.f32 %v3597, %v3601
        %v3631 = vmul.f32 %v3598, %v3601
        %v3632 = vmul.f32 %v3599, %v3601
        %v3633 = vmul.f32 %v3600, %v3601
        %v3634 = vadd.f32 %v3536, %v3602
        %v3635 = vadd.f32 %v3537, %v3603
        %v3636 = vadd.f32 %v3538, %v3604
        %v3637 = vadd.f32 %v3539, %v3605
        %v3638 = vadd.f32 %v3540, %v3606
        %v3639 = vadd.f32 %v3541, %v3607
        %v3640 = vadd.f32 %v3542, %v3608
        %v3641 = vadd.f32 %v3543, %v3609
        %v3642 = vadd.f32 %v3544, %v3610
        %v3643 = vadd.f32 %v3545, %v3611
        %v3644 = vadd.f32 %v3546, %v3612
        %v3645 = vadd.f32 %v3547, %v3613
        %v3646 = vadd.f32 %v3548, %v3614
        %v3647 = vadd.f32 %v3549, %v3615
        %v3648 = vadd.f32 %v3550, %v3616
        %v3649 = vadd.f32 %v3551, %v3617
        %v3650 = vadd.f32 %v3552, %v3618
        %v3651 = vadd.f32 %v3553, %v3619
        %v3652 = vadd.f32 %v3554, %v3620
        %v3653 = vadd.f32 %v3555, %v3621
        %v3654 = vadd.f32 %v3556, %v3622
        %v3655 = vadd.f32 %v3557, %v3623
        %v3656 = vadd.f32 %v3558, %v3624
        %v3657 = vadd.f32 %v3559, %v3625
        %v3658 = vadd.f32 %v3560, %v3626
        %v3659 = vadd.f32 %v3561, %v3627
        %v3660 = vadd.f32 %v3562, %v3628
        %v3661 = vadd.f32 %v3563, %v3629
        %v3662 = vadd.f32 %v3564, %v3630
        %v3663 = vadd.f32 %v3565, %v3631
        %v3664 = vadd.f32 %v3566, %v3632
        %v3665 = vadd.f32 %v3567, %v3633
        %v3666 = vld [vmem:[#allocation13 + $0x8] sm:$0x1]
        %v3667 = vld [vmem:[%s3470 + $0xe] sm:$0xff]
        %v3668 = vld [vmem:[%s3470 + $0x16] sm:$0xff]
        %v3669 = vld [vmem:[%s3470 + $0x2e] sm:$0xff]
        %v3670 = vld [vmem:[%s3470 + $0x36] sm:$0xff]
        %v3671 = vld [vmem:[%s3470 + $0x4e] sm:$0xff]
        %v3672 = vld [vmem:[%s3470 + $0x56] sm:$0xff]
        %v3673 = vld [vmem:[%s3470 + $0x6e] sm:$0xff]
        %v3674 = vld [vmem:[%s3470 + $0x76] sm:$0xff]
        %v3675 = vld [vmem:[%s3470 + $0x8e] sm:$0xff]
        %v3676 = vld [vmem:[%s3470 + $0x96] sm:$0xff]
        %v3677 = vld [vmem:[%s3470 + $0xae] sm:$0xff]
        %v3678 = vld [vmem:[%s3470 + $0xb6] sm:$0xff]
        %v3679 = vld [vmem:[%s3470 + $0xce] sm:$0xff]
        %v3680 = vld [vmem:[%s3470 + $0xd6] sm:$0xff]
        %v3681 = vld [vmem:[%s3470 + $0xee] sm:$0xff]
        %v3682 = vld [vmem:[%s3470 + $0xf6] sm:$0xff]
        %v3683 = vld [vmem:[%s3470 + $0x10e] sm:$0xff]
        %v3684 = vld [vmem:[%s3470 + $0x116] sm:$0xff]
        %v3685 = vld [vmem:[%s3470 + $0x12e] sm:$0xff]
        %v3686 = vld [vmem:[%s3470 + $0x136] sm:$0xff]
        %v3687 = vld [vmem:[%s3470 + $0x14e] sm:$0xff]
        %v3688 = vld [vmem:[%s3470 + $0x156] sm:$0xff]
        %v3689 = vld [vmem:[%s3470 + $0x16e] sm:$0xff]
        %v3690 = vld [vmem:[%s3470 + $0x176] sm:$0xff]
        %v3691 = vld [vmem:[%s3470 + $0x18e] sm:$0xff]
        %v3692 = vld [vmem:[%s3470 + $0x196] sm:$0xff]
        %v3693 = vld [vmem:[%s3470 + $0x1ae] sm:$0xff]
        %v3694 = vld [vmem:[%s3470 + $0x1b6] sm:$0xff]
        %v3695 = vld [vmem:[%s3470 + $0x1ce] sm:$0xff]
        %v3696 = vld [vmem:[%s3470 + $0x1d6] sm:$0xff]
        %v3697 = vld [vmem:[%s3470 + $0x1ee] sm:$0xff]
        %v3698 = vld [vmem:[%s3470 + $0x1f6] sm:$0xff]
        %v3699 = vperm.slane %v3666, 0
        %v3700 = vmul.f32 %v3667, %v3699
        %v3701 = vmul.f32 %v3668, %v3699
        %v3702 = vmul.f32 %v3669, %v3699
        %v3703 = vmul.f32 %v3670, %v3699
        %v3704 = vmul.f32 %v3671, %v3699
        %v3705 = vmul.f32 %v3672, %v3699
        %v3706 = vmul.f32 %v3673, %v3699
        %v3707 = vmul.f32 %v3674, %v3699
        %v3708 = vmul.f32 %v3675, %v3699
        %v3709 = vmul.f32 %v3676, %v3699
        %v3710 = vmul.f32 %v3677, %v3699
        %v3711 = vmul.f32 %v3678, %v3699
        %v3712 = vmul.f32 %v3679, %v3699
        %v3713 = vmul.f32 %v3680, %v3699
        %v3714 = vmul.f32 %v3681, %v3699
        %v3715 = vmul.f32 %v3682, %v3699
        %v3716 = vmul.f32 %v3683, %v3699
        %v3717 = vmul.f32 %v3684, %v3699
        %v3718 = vmul.f32 %v3685, %v3699
        %v3719 = vmul.f32 %v3686, %v3699
        %v3720 = vmul.f32 %v3687, %v3699
        %v3721 = vmul.f32 %v3688, %v3699
        %v3722 = vmul.f32 %v3689, %v3699
        %v3723 = vmul.f32 %v3690, %v3699
        %v3724 = vmul.f32 %v3691, %v3699
        %v3725 = vmul.f32 %v3692, %v3699
        %v3726 = vmul.f32 %v3693, %v3699
        %v3727 = vmul.f32 %v3694, %v3699
        %v3728 = vmul.f32 %v3695, %v3699
        %v3729 = vmul.f32 %v3696, %v3699
        %v3730 = vmul.f32 %v3697, %v3699
        %v3731 = vmul.f32 %v3698, %v3699
        %v3732 = vadd.f32 %v3634, %v3700
        %v3733 = vadd.f32 %v3635, %v3701
        %v3734 = vadd.f32 %v3636, %v3702
        %v3735 = vadd.f32 %v3637, %v3703
        %v3736 = vadd.f32 %v3638, %v3704
        %v3737 = vadd.f32 %v3639, %v3705
        %v3738 = vadd.f32 %v3640, %v3706
        %v3739 = vadd.f32 %v3641, %v3707
        %v3740 = vadd.f32 %v3642, %v3708
        %v3741 = vadd.f32 %v3643, %v3709
        %v3742 = vadd.f32 %v3644, %v3710
        %v3743 = vadd.f32 %v3645, %v3711
        %v3744 = vadd.f32 %v3646, %v3712
        %v3745 = vadd.f32 %v3647, %v3713
        %v3746 = vadd.f32 %v3648, %v3714
        %v3747 = vadd.f32 %v3649, %v3715
        %v3748 = vadd.f32 %v3650, %v3716
        %v3749 = vadd.f32 %v3651, %v3717
        %v3750 = vadd.f32 %v3652, %v3718
        %v3751 = vadd.f32 %v3653, %v3719
        %v3752 = vadd.f32 %v3654, %v3720
        %v3753 = vadd.f32 %v3655, %v3721
        %v3754 = vadd.f32 %v3656, %v3722
        %v3755 = vadd.f32 %v3657, %v3723
        %v3756 = vadd.f32 %v3658, %v3724
        %v3757 = vadd.f32 %v3659, %v3725
        %v3758 = vadd.f32 %v3660, %v3726
        %v3759 = vadd.f32 %v3661, %v3727
        %v3760 = vadd.f32 %v3662, %v3728
        %v3761 = vadd.f32 %v3663, %v3729
        %v3762 = vadd.f32 %v3664, %v3730
        %v3763 = vadd.f32 %v3665, %v3731
        %v3764 = vld [vmem:[#allocation15] sm:$0xff]
        %v3765 = vld [vmem:[#allocation15 + $0x8] sm:$0xff]
        %v3766 = vld [vmem:[#allocation15 + $0x10] sm:$0xff]
        %v3767 = vld [vmem:[#allocation15 + $0x18] sm:$0xff]
        %v3768 = vld [vmem:[#allocation15 + $0x20] sm:$0xff]
        %v3769 = vld [vmem:[#allocation15 + $0x28] sm:$0xff]
        %v3770 = vld [vmem:[#allocation15 + $0x30] sm:$0xff]
        %v3771 = vld [vmem:[#allocation15 + $0x38] sm:$0xff]
        %v3773 = vsel %vm634, %v3732, 0
        %v3776 = vsel %vm634, %v3733, 0
        %v3779 = vsel %vm634, %v3734, 0
        %v3782 = vsel %vm634, %v3735, 0
        %v3785 = vsel %vm634, %v3736, 0
        %v3788 = vsel %vm634, %v3737, 0
        %v3791 = vsel %vm634, %v3738, 0
        %v3794 = vsel %vm634, %v3739, 0
        %v3797 = vsel %vm634, %v3740, 0
        %v3800 = vsel %vm634, %v3741, 0
        %v3803 = vsel %vm634, %v3742, 0
        %v3806 = vsel %vm634, %v3743, 0
        %v3809 = vsel %vm634, %v3744, 0
        %v3812 = vsel %vm634, %v3745, 0
        %v3815 = vsel %vm634, %v3746, 0
        %v3818 = vsel %vm634, %v3747, 0
        %v3821 = vsel %vm634, %v3748, 0
        %v3824 = vsel %vm634, %v3749, 0
        %v3827 = vsel %vm634, %v3750, 0
        %v3830 = vsel %vm634, %v3751, 0
        %v3833 = vsel %vm634, %v3752, 0
        %v3836 = vsel %vm634, %v3753, 0
        %v3839 = vsel %vm634, %v3754, 0
        %v3842 = vsel %vm634, %v3755, 0
        %v3845 = vsel %vm634, %v3756, 0
        %v3848 = vsel %vm634, %v3757, 0
        %v3851 = vsel %vm634, %v3758, 0
        %v3854 = vsel %vm634, %v3759, 0
        %v3857 = vsel %vm634, %v3760, 0
        %v3860 = vsel %vm634, %v3761, 0
        %v3863 = vsel %vm634, %v3762, 0
        %v3866 = vsel %vm634, %v3763, 0
        %3868 = vmatpush.msra.mxu0 0.0
        %3869 = vmatpush.msra.mxu0 0.0
        %3870 = vmatpush.msra.mxu0 0.0
        %3871 = vmatpush.msra.mxu0 0.0
        %3872 = vmatpush.msra.mxu0 0.0
        %3873 = vmatpush.msra.mxu0 0.0
        %3874 = vmatpush.msra.mxu0 0.0
        %3875 = vmatpush.msra.mxu0 0.0
        %3876 = vmatpush.msra.mxu0 %v3771
        %3877 = vmatpush.msra.mxu0 %v3770
        %3878 = vmatpush.msra.mxu0 %v3769
        %3879 = vmatpush.msra.mxu0 %v3768
        %3880 = vmatpush.msra.mxu0 %v3767
        %3881 = vmatpush.msra.mxu0 %v3766
        %3882 = vmatpush.msra.mxu0 %v3765
        %3883 = vmatpush.msra.mxu0 %v3764
        %3884 = vmatmul.f32.gmra.mxu0 %v3773
        %v3885 = vpop.f32.mrf.mxu0
        %v3886 = vadd.f32 0.0, %v3885
        %3887 = vmatmul.f32.gmra.mxu0 %v3776
        %v3888 = vpop.f32.mrf.mxu0
        %v3889 = vadd.f32 0.0, %v3888
        %3890 = vmatmul.f32.gmra.mxu0 %v3779
        %v3891 = vpop.f32.mrf.mxu0
        %v3892 = vadd.f32 0.0, %v3891
        %3893 = vmatmul.f32.gmra.mxu0 %v3782
        %v3894 = vpop.f32.mrf.mxu0
        %v3895 = vadd.f32 0.0, %v3894
        %3896 = vmatmul.f32.gmra.mxu0 %v3785
        %v3897 = vpop.f32.mrf.mxu0
        %v3898 = vadd.f32 0.0, %v3897
        %3899 = vmatmul.f32.gmra.mxu0 %v3788
        %v3900 = vpop.f32.mrf.mxu0
        %v3901 = vadd.f32 0.0, %v3900
        %3902 = vmatmul.f32.gmra.mxu0 %v3791
        %v3903 = vpop.f32.mrf.mxu0
        %v3904 = vadd.f32 0.0, %v3903
        %3905 = vmatmul.f32.gmra.mxu0 %v3794
        %v3906 = vpop.f32.mrf.mxu0
        %v3907 = vadd.f32 0.0, %v3906
        %3908 = vmatmul.f32.gmra.mxu0 %v3797
        %v3909 = vpop.f32.mrf.mxu0
        %v3910 = vadd.f32 0.0, %v3909
        %3911 = vmatmul.f32.gmra.mxu0 %v3800
        %v3912 = vpop.f32.mrf.mxu0
        %v3913 = vadd.f32 0.0, %v3912
        %3914 = vmatmul.f32.gmra.mxu0 %v3803
        %v3915 = vpop.f32.mrf.mxu0
        %v3916 = vadd.f32 0.0, %v3915
        %3917 = vmatmul.f32.gmra.mxu0 %v3806
        %v3918 = vpop.f32.mrf.mxu0
        %v3919 = vadd.f32 0.0, %v3918
        %3920 = vmatmul.f32.gmra.mxu0 %v3809
        %v3921 = vpop.f32.mrf.mxu0
        %v3922 = vadd.f32 0.0, %v3921
        %3923 = vmatmul.f32.gmra.mxu0 %v3812
        %v3924 = vpop.f32.mrf.mxu0
        %v3925 = vadd.f32 0.0, %v3924
        %3926 = vmatmul.f32.gmra.mxu0 %v3815
        %v3927 = vpop.f32.mrf.mxu0
        %v3928 = vadd.f32 0.0, %v3927
        %3929 = vmatmul.f32.gmra.mxu0 %v3818
        %v3930 = vpop.f32.mrf.mxu0
        %v3931 = vadd.f32 0.0, %v3930
        %3932 = vmatmul.f32.gmra.mxu0 %v3821
        %v3933 = vpop.f32.mrf.mxu0
        %v3934 = vadd.f32 0.0, %v3933
        %3935 = vmatmul.f32.gmra.mxu0 %v3824
        %v3936 = vpop.f32.mrf.mxu0
        %v3937 = vadd.f32 0.0, %v3936
        %3938 = vmatmul.f32.gmra.mxu0 %v3827
        %v3939 = vpop.f32.mrf.mxu0
        %v3940 = vadd.f32 0.0, %v3939
        %3941 = vmatmul.f32.gmra.mxu0 %v3830
        %v3942 = vpop.f32.mrf.mxu0
        %v3943 = vadd.f32 0.0, %v3942
        %3944 = vmatmul.f32.gmra.mxu0 %v3833
        %v3945 = vpop.f32.mrf.mxu0
        %v3946 = vadd.f32 0.0, %v3945
        %3947 = vmatmul.f32.gmra.mxu0 %v3836
        %v3948 = vpop.f32.mrf.mxu0
        %v3949 = vadd.f32 0.0, %v3948
        %3950 = vmatmul.f32.gmra.mxu0 %v3839
        %v3951 = vpop.f32.mrf.mxu0
        %v3952 = vadd.f32 0.0, %v3951
        %3953 = vmatmul.f32.gmra.mxu0 %v3842
        %v3954 = vpop.f32.mrf.mxu0
        %v3955 = vadd.f32 0.0, %v3954
        %3956 = vmatmul.f32.gmra.mxu0 %v3845
        %v3957 = vpop.f32.mrf.mxu0
        %v3958 = vadd.f32 0.0, %v3957
        %3959 = vmatmul.f32.gmra.mxu0 %v3848
        %v3960 = vpop.f32.mrf.mxu0
        %v3961 = vadd.f32 0.0, %v3960
        %3962 = vmatmul.f32.gmra.mxu0 %v3851
        %v3963 = vpop.f32.mrf.mxu0
        %v3964 = vadd.f32 0.0, %v3963
        %3965 = vmatmul.f32.gmra.mxu0 %v3854
        %v3966 = vpop.f32.mrf.mxu0
        %v3967 = vadd.f32 0.0, %v3966
        %3968 = vmatmul.f32.gmra.mxu0 %v3857
        %v3969 = vpop.f32.mrf.mxu0
        %v3970 = vadd.f32 0.0, %v3969
        %3971 = vmatmul.f32.gmra.mxu0 %v3860
        %v3972 = vpop.f32.mrf.mxu0
        %v3973 = vadd.f32 0.0, %v3972
        %3974 = vmatmul.f32.gmra.mxu0 %v3863
        %v3975 = vpop.f32.mrf.mxu0
        %v3976 = vadd.f32 0.0, %v3975
        %3977 = vmatmul.f32.gmra.mxu0 %v3866
        %v3978 = vpop.f32.mrf.mxu0
        %v3979 = vadd.f32 0.0, %v3978
        %3980 = vdwg.mxu0
        %v3981 = vmul.f32 %v3886, %v1540
        %v3982 = vmul.f32 %v3889, %v1543
        %v3983 = vmul.f32 %v3892, %v1546
        %v3984 = vmul.f32 %v3895, %v1549
        %v3985 = vmul.f32 %v3898, %v1552
        %v3986 = vmul.f32 %v3901, %v1555
        %v3987 = vmul.f32 %v3904, %v1558
        %v3988 = vmul.f32 %v3907, %v1561
        %v3989 = vmul.f32 %v3910, %v1564
        %v3990 = vmul.f32 %v3913, %v1567
        %v3991 = vmul.f32 %v3916, %v1570
        %v3992 = vmul.f32 %v3919, %v1573
        %v3993 = vmul.f32 %v3922, %v1576
        %v3994 = vmul.f32 %v3925, %v1579
        %v3995 = vmul.f32 %v3928, %v1582
        %v3996 = vmul.f32 %v3931, %v1585
        %v3997 = vmul.f32 %v3934, %v1588
        %v3998 = vmul.f32 %v3937, %v1591
        %v3999 = vmul.f32 %v3940, %v1594
        %v4000 = vmul.f32 %v3943, %v1597
        %v4001 = vmul.f32 %v3946, %v1600
        %v4002 = vmul.f32 %v3949, %v1603
        %v4003 = vmul.f32 %v3952, %v1606
        %v4004 = vmul.f32 %v3955, %v1609
        %v4005 = vmul.f32 %v3958, %v1612
        %v4006 = vmul.f32 %v3961, %v1615
        %v4007 = vmul.f32 %v3964, %v1618
        %v4008 = vmul.f32 %v3967, %v1621
        %v4009 = vmul.f32 %v3970, %v1624
        %v4010 = vmul.f32 %v3973, %v1627
        %v4011 = vmul.f32 %v3976, %v1630
        %v4012 = vmul.f32 %v3979, %v1633
        %v4013 = vsel %vm634, %v1661, 0.0
        %v4014 = vsel %vm634, %v1664, 0.0
        %v4015 = vadd.f32 %v4013, %v4014
        %v4016 = vsel %vm634, %v1667, 0.0
        %v4017 = vadd.f32 %v4015, %v4016
        %v4018 = vsel %vm634, %v1670, 0.0
        %v4019 = vadd.f32 %v4017, %v4018
        %v4020 = vsel %vm634, %v1673, 0.0
        %v4021 = vadd.f32 %v4019, %v4020
        %v4022 = vsel %vm634, %v1676, 0.0
        %v4023 = vadd.f32 %v4021, %v4022
        %v4024 = vsel %vm634, %v1679, 0.0
        %v4025 = vadd.f32 %v4023, %v4024
        %v4026 = vsel %vm634, %v1682, 0.0
        %v4027 = vadd.f32 %v4025, %v4026
        %v4028 = vsel %vm634, %v1685, 0.0
        %v4029 = vadd.f32 %v4027, %v4028
        %v4030 = vsel %vm634, %v1688, 0.0
        %v4031 = vadd.f32 %v4029, %v4030
        %v4032 = vsel %vm634, %v1691, 0.0
        %v4033 = vadd.f32 %v4031, %v4032
        %v4034 = vsel %vm634, %v1694, 0.0
        %v4035 = vadd.f32 %v4033, %v4034
        %v4036 = vsel %vm634, %v1697, 0.0
        %v4037 = vadd.f32 %v4035, %v4036
        %v4038 = vsel %vm634, %v1700, 0.0
        %v4039 = vadd.f32 %v4037, %v4038
        %v4040 = vsel %vm634, %v1703, 0.0
        %v4041 = vadd.f32 %v4039, %v4040
        %v4042 = vsel %vm634, %v1706, 0.0
        %v4043 = vadd.f32 %v4041, %v4042
        %v4044 = vsel %vm634, %v1709, 0.0
        %v4045 = vadd.f32 %v4043, %v4044
        %v4046 = vsel %vm634, %v1712, 0.0
        %v4047 = vadd.f32 %v4045, %v4046
        %v4048 = vsel %vm634, %v1715, 0.0
        %v4049 = vadd.f32 %v4047, %v4048
        %v4050 = vsel %vm634, %v1718, 0.0
        %v4051 = vadd.f32 %v4049, %v4050
        %v4052 = vsel %vm634, %v1721, 0.0
        %v4053 = vadd.f32 %v4051, %v4052
        %v4054 = vsel %vm634, %v1724, 0.0
        %v4055 = vadd.f32 %v4053, %v4054
        %v4056 = vsel %vm634, %v1727, 0.0
        %v4057 = vadd.f32 %v4055, %v4056
        %v4058 = vsel %vm634, %v1730, 0.0
        %v4059 = vadd.f32 %v4057, %v4058
        %v4060 = vsel %vm634, %v1733, 0.0
        %v4061 = vadd.f32 %v4059, %v4060
        %v4062 = vsel %vm634, %v1736, 0.0
        %v4063 = vadd.f32 %v4061, %v4062
        %v4064 = vsel %vm634, %v1739, 0.0
        %v4065 = vadd.f32 %v4063, %v4064
        %v4066 = vsel %vm634, %v1742, 0.0
        %v4067 = vadd.f32 %v4065, %v4066
        %v4068 = vsel %vm634, %v1745, 0.0
        %v4069 = vadd.f32 %v4067, %v4068
        %v4070 = vsel %vm634, %v1748, 0.0
        %v4071 = vadd.f32 %v4069, %v4070
        %v4072 = vsel %vm634, %v1751, 0.0
        %v4073 = vadd.f32 %v4071, %v4072
        %v4074 = vsel %vm634, %v1754, 0.0
        %v4075 = vadd.f32 %v4073, %v4074
        %v4076 = vrot.slane %v4075, 4
        %v4077 = vadd.f32 %v4075, %v4076
        %v4078 = vrot.slane %v4077, 2
        %v4079 = vadd.f32 %v4077, %v4078
        %v4080 = vrot.slane %v4079, 1
        %v4081 = vadd.f32 %v4079, %v4080
        %v4082 = vrcp.pop 256.0
        %v4083 = vmul.f32 256.0, %v4082
        %v4084 = vsub.f32 1.0, %v4083
        %v4085 = vmul.f32 %v4082, %v4084
        %v4086 = vadd.f32 %v4082, %v4085
        %vm4087 = vweird.f32 %v4082
        %v4088 = vsel %vm4087, %v4082, %v4086
        %v4089 = vmul.f32 %v4081, %v4088
        %v4090 = vld [vmem:[#allocation16] sm:$0xff]
        %v4091 = vld [vmem:[#allocation16 + $0x8] sm:$0xff]
        %v4092 = vld [vmem:[#allocation16 + $0x10] sm:$0xff]
        %v4093 = vld [vmem:[#allocation16 + $0x18] sm:$0xff]
        %v4094 = vld [vmem:[#allocation16 + $0x20] sm:$0xff]
        %v4095 = vld [vmem:[#allocation16 + $0x28] sm:$0xff]
        %v4096 = vld [vmem:[#allocation16 + $0x30] sm:$0xff]
        %v4097 = vld [vmem:[#allocation16 + $0x38] sm:$0xff]
        %v4099 = vsel %vm634, %v4089, 0
        %4101 = vmatpush.msra.mxu0 0.0
        %4102 = vmatpush.msra.mxu0 0.0
        %4103 = vmatpush.msra.mxu0 0.0
        %4104 = vmatpush.msra.mxu0 0.0
        %4105 = vmatpush.msra.mxu0 0.0
        %4106 = vmatpush.msra.mxu0 0.0
        %4107 = vmatpush.msra.mxu0 0.0
        %4108 = vmatpush.msra.mxu0 0.0
        %4109 = vmatpush.msra.mxu0 %v4097
        %4110 = vmatpush.msra.mxu0 %v4096
        %4111 = vmatpush.msra.mxu0 %v4095
        %4112 = vmatpush.msra.mxu0 %v4094
        %4113 = vmatpush.msra.mxu0 %v4093
        %4114 = vmatpush.msra.mxu0 %v4092
        %4115 = vmatpush.msra.mxu0 %v4091
        %4116 = vmatpush.msra.mxu0 %v4090
        %4117 = vmatmul.f32.gmra.mxu0 %v4099
        %v4118 = vpop.f32.mrf.mxu0
        %v4119 = vadd.f32 0.0, %v4118
        %4120 = vdwg.mxu0
        %v4121 = vperm.slane %v4119, 0
        %v4122 = vmul.f32 %v1661, %v4121
        %v4123 = vmul.f32 %v1664, %v4121
        %v4124 = vmul.f32 %v1667, %v4121
        %v4125 = vmul.f32 %v1670, %v4121
        %v4126 = vmul.f32 %v1673, %v4121
        %v4127 = vmul.f32 %v1676, %v4121
        %v4128 = vmul.f32 %v1679, %v4121
        %v4129 = vmul.f32 %v1682, %v4121
        %v4130 = vmul.f32 %v1685, %v4121
        %v4131 = vmul.f32 %v1688, %v4121
        %v4132 = vmul.f32 %v1691, %v4121
        %v4133 = vmul.f32 %v1694, %v4121
        %v4134 = vmul.f32 %v1697, %v4121
        %v4135 = vmul.f32 %v1700, %v4121
        %v4136 = vmul.f32 %v1703, %v4121
        %v4137 = vmul.f32 %v1706, %v4121
        %v4138 = vmul.f32 %v1709, %v4121
        %v4139 = vmul.f32 %v1712, %v4121
        %v4140 = vmul.f32 %v1715, %v4121
        %v4141 = vmul.f32 %v1718, %v4121
        %v4142 = vmul.f32 %v1721, %v4121
        %v4143 = vmul.f32 %v1724, %v4121
        %v4144 = vmul.f32 %v1727, %v4121
        %v4145 = vmul.f32 %v1730, %v4121
        %v4146 = vmul.f32 %v1733, %v4121
        %v4147 = vmul.f32 %v1736, %v4121
        %v4148 = vmul.f32 %v1739, %v4121
        %v4149 = vmul.f32 %v1742, %v4121
        %v4150 = vmul.f32 %v1745, %v4121
        %v4151 = vmul.f32 %v1748, %v4121
        %v4152 = vmul.f32 %v1751, %v4121
        %v4153 = vmul.f32 %v1754, %v4121
        %v4154 = vld [vmem:[#allocation18] sm:$0xff]
        %v4155 = vld [vmem:[#allocation18 + $0x8] sm:$0xff]
        %v4156 = vld [vmem:[#allocation18 + $0x10] sm:$0xff]
        %v4157 = vld [vmem:[#allocation18 + $0x18] sm:$0xff]
        %v4158 = vld [vmem:[#allocation18 + $0x20] sm:$0xff]
        %v4159 = vld [vmem:[#allocation18 + $0x28] sm:$0xff]
        %v4160 = vld [vmem:[#allocation18 + $0x30] sm:$0xff]
        %v4161 = vld [vmem:[#allocation18 + $0x38] sm:$0xff]
        %v4162 = vld [vmem:[#allocation19] sm:$0xff]
        %v4163 = vld [vmem:[#allocation19 + $0x8] sm:$0xff]
        %v4164 = vld [vmem:[#allocation19 + $0x10] sm:$0xff]
        %v4165 = vld [vmem:[#allocation19 + $0x18] sm:$0xff]
        %v4166 = vld [vmem:[#allocation19 + $0x20] sm:$0xff]
        %v4167 = vld [vmem:[#allocation19 + $0x28] sm:$0xff]
        %v4168 = vld [vmem:[#allocation19 + $0x30] sm:$0xff]
        %v4169 = vld [vmem:[#allocation19 + $0x38] sm:$0xff]
        %v4171 = vsel %vm634, %v4122, 0
        %v4174 = vsel %vm634, %v4123, 0
        %v4177 = vsel %vm634, %v4124, 0
        %v4180 = vsel %vm634, %v4125, 0
        %v4183 = vsel %vm634, %v4126, 0
        %v4186 = vsel %vm634, %v4127, 0
        %v4189 = vsel %vm634, %v4128, 0
        %v4192 = vsel %vm634, %v4129, 0
        %v4195 = vsel %vm634, %v4130, 0
        %v4198 = vsel %vm634, %v4131, 0
        %v4201 = vsel %vm634, %v4132, 0
        %v4204 = vsel %vm634, %v4133, 0
        %v4207 = vsel %vm634, %v4134, 0
        %v4210 = vsel %vm634, %v4135, 0
        %v4213 = vsel %vm634, %v4136, 0
        %v4216 = vsel %vm634, %v4137, 0
        %v4219 = vsel %vm634, %v4138, 0
        %v4222 = vsel %vm634, %v4139, 0
        %v4225 = vsel %vm634, %v4140, 0
        %v4228 = vsel %vm634, %v4141, 0
        %v4231 = vsel %vm634, %v4142, 0
        %v4234 = vsel %vm634, %v4143, 0
        %v4237 = vsel %vm634, %v4144, 0
        %v4240 = vsel %vm634, %v4145, 0
        %v4243 = vsel %vm634, %v4146, 0
        %v4246 = vsel %vm634, %v4147, 0
        %v4249 = vsel %vm634, %v4148, 0
        %v4252 = vsel %vm634, %v4149, 0
        %v4255 = vsel %vm634, %v4150, 0
        %v4258 = vsel %vm634, %v4151, 0
        %v4261 = vsel %vm634, %v4152, 0
        %v4264 = vsel %vm634, %v4153, 0
        %4266 = vmatpush.msra.mxu0 0.0
        %4267 = vmatpush.msra.mxu0 0.0
        %4268 = vmatpush.msra.mxu0 0.0
        %4269 = vmatpush.msra.mxu0 0.0
        %4270 = vmatpush.msra.mxu0 0.0
        %4271 = vmatpush.msra.mxu0 0.0
        %4272 = vmatpush.msra.mxu0 0.0
        %4273 = vmatpush.msra.mxu0 0.0
        %4274 = vmatpush.msra.mxu0 %v4169
        %4275 = vmatpush.msra.mxu0 %v4168
        %4276 = vmatpush.msra.mxu0 %v4167
        %4277 = vmatpush.msra.mxu0 %v4166
        %4278 = vmatpush.msra.mxu0 %v4165
        %4279 = vmatpush.msra.mxu0 %v4164
        %4280 = vmatpush.msra.mxu0 %v4163
        %4281 = vmatpush.msra.mxu0 %v4162
        %4282 = vmatmul.f32.gmra.mxu0 %v4171
        %v4283 = vpop.f32.mrf.mxu0
        %v4284 = vadd.f32 0.0, %v4283
        %4285 = vmatmul.f32.gmra.mxu0 %v4174
        %v4286 = vpop.f32.mrf.mxu0
        %v4287 = vadd.f32 0.0, %v4286
        %4288 = vmatmul.f32.gmra.mxu0 %v4177
        %v4289 = vpop.f32.mrf.mxu0
        %v4290 = vadd.f32 0.0, %v4289
        %4291 = vmatmul.f32.gmra.mxu0 %v4180
        %v4292 = vpop.f32.mrf.mxu0
        %v4293 = vadd.f32 0.0, %v4292
        %4294 = vmatmul.f32.gmra.mxu0 %v4183
        %v4295 = vpop.f32.mrf.mxu0
        %v4296 = vadd.f32 0.0, %v4295
        %4297 = vmatmul.f32.gmra.mxu0 %v4186
        %v4298 = vpop.f32.mrf.mxu0
        %v4299 = vadd.f32 0.0, %v4298
        %4300 = vmatmul.f32.gmra.mxu0 %v4189
        %v4301 = vpop.f32.mrf.mxu0
        %v4302 = vadd.f32 0.0, %v4301
        %4303 = vmatmul.f32.gmra.mxu0 %v4192
        %v4304 = vpop.f32.mrf.mxu0
        %v4305 = vadd.f32 0.0, %v4304
        %4306 = vmatmul.f32.gmra.mxu0 %v4195
        %v4307 = vpop.f32.mrf.mxu0
        %v4308 = vadd.f32 0.0, %v4307
        %4309 = vmatmul.f32.gmra.mxu0 %v4198
        %v4310 = vpop.f32.mrf.mxu0
        %v4311 = vadd.f32 0.0, %v4310
        %4312 = vmatmul.f32.gmra.mxu0 %v4201
        %v4313 = vpop.f32.mrf.mxu0
        %v4314 = vadd.f32 0.0, %v4313
        %4315 = vmatmul.f32.gmra.mxu0 %v4204
        %v4316 = vpop.f32.mrf.mxu0
        %v4317 = vadd.f32 0.0, %v4316
        %4318 = vmatmul.f32.gmra.mxu0 %v4207
        %v4319 = vpop.f32.mrf.mxu0
        %v4320 = vadd.f32 0.0, %v4319
        %4321 = vmatmul.f32.gmra.mxu0 %v4210
        %v4322 = vpop.f32.mrf.mxu0
        %v4323 = vadd.f32 0.0, %v4322
        %4324 = vmatmul.f32.gmra.mxu0 %v4213
        %v4325 = vpop.f32.mrf.mxu0
        %v4326 = vadd.f32 0.0, %v4325
        %4327 = vmatmul.f32.gmra.mxu0 %v4216
        %v4328 = vpop.f32.mrf.mxu0
        %v4329 = vadd.f32 0.0, %v4328
        %4330 = vmatmul.f32.gmra.mxu0 %v4219
        %v4331 = vpop.f32.mrf.mxu0
        %v4332 = vadd.f32 0.0, %v4331
        %4333 = vmatmul.f32.gmra.mxu0 %v4222
        %v4334 = vpop.f32.mrf.mxu0
        %v4335 = vadd.f32 0.0, %v4334
        %4336 = vmatmul.f32.gmra.mxu0 %v4225
        %v4337 = vpop.f32.mrf.mxu0
        %v4338 = vadd.f32 0.0, %v4337
        %4339 = vmatmul.f32.gmra.mxu0 %v4228
        %v4340 = vpop.f32.mrf.mxu0
        %v4341 = vadd.f32 0.0, %v4340
        %4342 = vmatmul.f32.gmra.mxu0 %v4231
        %v4343 = vpop.f32.mrf.mxu0
        %v4344 = vadd.f32 0.0, %v4343
        %4345 = vmatmul.f32.gmra.mxu0 %v4234
        %v4346 = vpop.f32.mrf.mxu0
        %v4347 = vadd.f32 0.0, %v4346
        %4348 = vmatmul.f32.gmra.mxu0 %v4237
        %v4349 = vpop.f32.mrf.mxu0
        %v4350 = vadd.f32 0.0, %v4349
        %4351 = vmatmul.f32.gmra.mxu0 %v4240
        %v4352 = vpop.f32.mrf.mxu0
        %v4353 = vadd.f32 0.0, %v4352
        %4354 = vmatmul.f32.gmra.mxu0 %v4243
        %v4355 = vpop.f32.mrf.mxu0
        %v4356 = vadd.f32 0.0, %v4355
        %4357 = vmatmul.f32.gmra.mxu0 %v4246
        %v4358 = vpop.f32.mrf.mxu0
        %v4359 = vadd.f32 0.0, %v4358
        %4360 = vmatmul.f32.gmra.mxu0 %v4249
        %v4361 = vpop.f32.mrf.mxu0
        %v4362 = vadd.f32 0.0, %v4361
        %4363 = vmatmul.f32.gmra.mxu0 %v4252
        %v4364 = vpop.f32.mrf.mxu0
        %v4365 = vadd.f32 0.0, %v4364
        %4366 = vmatmul.f32.gmra.mxu0 %v4255
        %v4367 = vpop.f32.mrf.mxu0
        %v4368 = vadd.f32 0.0, %v4367
        %4369 = vmatmul.f32.gmra.mxu0 %v4258
        %v4370 = vpop.f32.mrf.mxu0
        %v4371 = vadd.f32 0.0, %v4370
        %4372 = vmatmul.f32.gmra.mxu0 %v4261
        %v4373 = vpop.f32.mrf.mxu0
        %v4374 = vadd.f32 0.0, %v4373
        %4375 = vmatmul.f32.gmra.mxu0 %v4264
        %v4376 = vpop.f32.mrf.mxu0
        %v4377 = vadd.f32 0.0, %v4376
        %4378 = vdwg.mxu0
        %v4380 = vsel %vm634, %v3981, 0
        %v4383 = vsel %vm634, %v3982, 0
        %v4386 = vsel %vm634, %v3983, 0
        %v4389 = vsel %vm634, %v3984, 0
        %v4392 = vsel %vm634, %v3985, 0
        %v4395 = vsel %vm634, %v3986, 0
        %v4398 = vsel %vm634, %v3987, 0
        %v4401 = vsel %vm634, %v3988, 0
        %v4404 = vsel %vm634, %v3989, 0
        %v4407 = vsel %vm634, %v3990, 0
        %v4410 = vsel %vm634, %v3991, 0
        %v4413 = vsel %vm634, %v3992, 0
        %v4416 = vsel %vm634, %v3993, 0
        %v4419 = vsel %vm634, %v3994, 0
        %v4422 = vsel %vm634, %v3995, 0
        %v4425 = vsel %vm634, %v3996, 0
        %v4428 = vsel %vm634, %v3997, 0
        %v4431 = vsel %vm634, %v3998, 0
        %v4434 = vsel %vm634, %v3999, 0
        %v4437 = vsel %vm634, %v4000, 0
        %v4440 = vsel %vm634, %v4001, 0
        %v4443 = vsel %vm634, %v4002, 0
        %v4446 = vsel %vm634, %v4003, 0
        %v4449 = vsel %vm634, %v4004, 0
        %v4452 = vsel %vm634, %v4005, 0
        %v4455 = vsel %vm634, %v4006, 0
        %v4458 = vsel %vm634, %v4007, 0
        %v4461 = vsel %vm634, %v4008, 0
        %v4464 = vsel %vm634, %v4009, 0
        %v4467 = vsel %vm634, %v4010, 0
        %v4470 = vsel %vm634, %v4011, 0
        %v4473 = vsel %vm634, %v4012, 0
        %4475 = vmatpush.msra.mxu0 0.0
        %4476 = vmatpush.msra.mxu0 0.0
        %4477 = vmatpush.msra.mxu0 0.0
        %4478 = vmatpush.msra.mxu0 0.0
        %4479 = vmatpush.msra.mxu0 0.0
        %4480 = vmatpush.msra.mxu0 0.0
        %4481 = vmatpush.msra.mxu0 0.0
        %4482 = vmatpush.msra.mxu0 0.0
        %4483 = vmatpush.msra.mxu0 %v4161
        %4484 = vmatpush.msra.mxu0 %v4160
        %4485 = vmatpush.msra.mxu0 %v4159
        %4486 = vmatpush.msra.mxu0 %v4158
        %4487 = vmatpush.msra.mxu0 %v4157
        %4488 = vmatpush.msra.mxu0 %v4156
        %4489 = vmatpush.msra.mxu0 %v4155
        %4490 = vmatpush.msra.mxu0 %v4154
        %4491 = vmatmul.f32.gmra.mxu0 %v4380
        %v4492 = vpop.f32.mrf.mxu0
        %v4493 = vadd.f32 %v4284, %v4492
        %4494 = vmatmul.f32.gmra.mxu0 %v4383
        %v4495 = vpop.f32.mrf.mxu0
        %v4496 = vadd.f32 %v4287, %v4495
        %4497 = vmatmul.f32.gmra.mxu0 %v4386
        %v4498 = vpop.f32.mrf.mxu0
        %v4499 = vadd.f32 %v4290, %v4498
        %4500 = vmatmul.f32.gmra.mxu0 %v4389
        %v4501 = vpop.f32.mrf.mxu0
        %v4502 = vadd.f32 %v4293, %v4501
        %4503 = vmatmul.f32.gmra.mxu0 %v4392
        %v4504 = vpop.f32.mrf.mxu0
        %v4505 = vadd.f32 %v4296, %v4504
        %4506 = vmatmul.f32.gmra.mxu0 %v4395
        %v4507 = vpop.f32.mrf.mxu0
        %v4508 = vadd.f32 %v4299, %v4507
        %4509 = vmatmul.f32.gmra.mxu0 %v4398
        %v4510 = vpop.f32.mrf.mxu0
        %v4511 = vadd.f32 %v4302, %v4510
        %4512 = vmatmul.f32.gmra.mxu0 %v4401
        %v4513 = vpop.f32.mrf.mxu0
        %v4514 = vadd.f32 %v4305, %v4513
        %4515 = vmatmul.f32.gmra.mxu0 %v4404
        %v4516 = vpop.f32.mrf.mxu0
        %v4517 = vadd.f32 %v4308, %v4516
        %4518 = vmatmul.f32.gmra.mxu0 %v4407
        %v4519 = vpop.f32.mrf.mxu0
        %v4520 = vadd.f32 %v4311, %v4519
        %4521 = vmatmul.f32.gmra.mxu0 %v4410
        %v4522 = vpop.f32.mrf.mxu0
        %v4523 = vadd.f32 %v4314, %v4522
        %4524 = vmatmul.f32.gmra.mxu0 %v4413
        %v4525 = vpop.f32.mrf.mxu0
        %v4526 = vadd.f32 %v4317, %v4525
        %4527 = vmatmul.f32.gmra.mxu0 %v4416
        %v4528 = vpop.f32.mrf.mxu0
        %v4529 = vadd.f32 %v4320, %v4528
        %4530 = vmatmul.f32.gmra.mxu0 %v4419
        %v4531 = vpop.f32.mrf.mxu0
        %v4532 = vadd.f32 %v4323, %v4531
        %4533 = vmatmul.f32.gmra.mxu0 %v4422
        %v4534 = vpop.f32.mrf.mxu0
        %v4535 = vadd.f32 %v4326, %v4534
        %4536 = vmatmul.f32.gmra.mxu0 %v4425
        %v4537 = vpop.f32.mrf.mxu0
        %v4538 = vadd.f32 %v4329, %v4537
        %4539 = vmatmul.f32.gmra.mxu0 %v4428
        %v4540 = vpop.f32.mrf.mxu0
        %v4541 = vadd.f32 %v4332, %v4540
        %4542 = vmatmul.f32.gmra.mxu0 %v4431
        %v4543 = vpop.f32.mrf.mxu0
        %v4544 = vadd.f32 %v4335, %v4543
        %4545 = vmatmul.f32.gmra.mxu0 %v4434
        %v4546 = vpop.f32.mrf.mxu0
        %v4547 = vadd.f32 %v4338, %v4546
        %4548 = vmatmul.f32.gmra.mxu0 %v4437
        %v4549 = vpop.f32.mrf.mxu0
        %v4550 = vadd.f32 %v4341, %v4549
        %4551 = vmatmul.f32.gmra.mxu0 %v4440
        %v4552 = vpop.f32.mrf.mxu0
        %v4553 = vadd.f32 %v4344, %v4552
        %4554 = vmatmul.f32.gmra.mxu0 %v4443
        %v4555 = vpop.f32.mrf.mxu0
        %v4556 = vadd.f32 %v4347, %v4555
        %4557 = vmatmul.f32.gmra.mxu0 %v4446
        %v4558 = vpop.f32.mrf.mxu0
        %v4559 = vadd.f32 %v4350, %v4558
        %4560 = vmatmul.f32.gmra.mxu0 %v4449
        %v4561 = vpop.f32.mrf.mxu0
        %v4562 = vadd.f32 %v4353, %v4561
        %4563 = vmatmul.f32.gmra.mxu0 %v4452
        %v4564 = vpop.f32.mrf.mxu0
        %v4565 = vadd.f32 %v4356, %v4564
        %4566 = vmatmul.f32.gmra.mxu0 %v4455
        %v4567 = vpop.f32.mrf.mxu0
        %v4568 = vadd.f32 %v4359, %v4567
        %4569 = vmatmul.f32.gmra.mxu0 %v4458
        %v4570 = vpop.f32.mrf.mxu0
        %v4571 = vadd.f32 %v4362, %v4570
        %4572 = vmatmul.f32.gmra.mxu0 %v4461
        %v4573 = vpop.f32.mrf.mxu0
        %v4574 = vadd.f32 %v4365, %v4573
        %4575 = vmatmul.f32.gmra.mxu0 %v4464
        %v4576 = vpop.f32.mrf.mxu0
        %v4577 = vadd.f32 %v4368, %v4576
        %4578 = vmatmul.f32.gmra.mxu0 %v4467
        %v4579 = vpop.f32.mrf.mxu0
        %v4580 = vadd.f32 %v4371, %v4579
        %4581 = vmatmul.f32.gmra.mxu0 %v4470
        %v4582 = vpop.f32.mrf.mxu0
        %v4583 = vadd.f32 %v4374, %v4582
        %4584 = vmatmul.f32.gmra.mxu0 %v4473
        %v4585 = vpop.f32.mrf.mxu0
        %v4586 = vadd.f32 %v4377, %v4585
        %4587 = vdwg.mxu0
        %4588 = vxpose.xlu0.b32.start [1/16] %v4493, 128
        %4589 = vxpose.xlu0.b32.cont [2/16] %v4496, 128
        %4590 = vxpose.xlu0.b32.cont [3/16] %v4499, 128
        %4591 = vxpose.xlu0.b32.cont [4/16] %v4502, 128
        %4592 = vxpose.xlu0.b32.cont [5/16] %v4505, 128
        %4593 = vxpose.xlu0.b32.cont [6/16] %v4508, 128
        %4594 = vxpose.xlu0.b32.cont [7/16] %v4511, 128
        %4595 = vxpose.xlu0.b32.cont [8/16] %v4514, 128
        %4596 = vxpose.xlu0.b32.cont [9/16] %v4517, 128
        %4597 = vxpose.xlu0.b32.cont [10/16] %v4520, 128
        %4598 = vxpose.xlu0.b32.cont [11/16] %v4523, 128
        %4599 = vxpose.xlu0.b32.cont [12/16] %v4526, 128
        %4600 = vxpose.xlu0.b32.cont [13/16] %v4529, 128
        %4601 = vxpose.xlu0.b32.cont [14/16] %v4532, 128
        %4602 = vxpose.xlu0.b32.cont [15/16] %v4535, 128
        %4603 = vxpose.xlu0.b32.end [16/16] %v4538, 128
        %v4604 = vpop.trf.xlu0
        %v4605 = vpop.trf.xlu0
        %v4606 = vpop.trf.xlu0
        %v4607 = vpop.trf.xlu0
        %v4608 = vpop.trf.xlu0
        %v4609 = vpop.trf.xlu0
        %v4610 = vpop.trf.xlu0
        %v4611 = vpop.trf.xlu0
        %v4612 = vpop.trf.xlu0
        %v4613 = vpop.trf.xlu0
        %v4614 = vpop.trf.xlu0
        %v4615 = vpop.trf.xlu0
        %v4616 = vpop.trf.xlu0
        %v4617 = vpop.trf.xlu0
        %v4618 = vpop.trf.xlu0
        %v4619 = vpop.trf.xlu0
        %4620 = vxpose.xlu0.b32.start [1/16] %v4541, 128
        %4621 = vxpose.xlu0.b32.cont [2/16] %v4544, 128
        %4622 = vxpose.xlu0.b32.cont [3/16] %v4547, 128
        %4623 = vxpose.xlu0.b32.cont [4/16] %v4550, 128
        %4624 = vxpose.xlu0.b32.cont [5/16] %v4553, 128
        %4625 = vxpose.xlu0.b32.cont [6/16] %v4556, 128
        %4626 = vxpose.xlu0.b32.cont [7/16] %v4559, 128
        %4627 = vxpose.xlu0.b32.cont [8/16] %v4562, 128
        %4628 = vxpose.xlu0.b32.cont [9/16] %v4565, 128
        %4629 = vxpose.xlu0.b32.cont [10/16] %v4568, 128
        %4630 = vxpose.xlu0.b32.cont [11/16] %v4571, 128
        %4631 = vxpose.xlu0.b32.cont [12/16] %v4574, 128
        %4632 = vxpose.xlu0.b32.cont [13/16] %v4577, 128
        %4633 = vxpose.xlu0.b32.cont [14/16] %v4580, 128
        %4634 = vxpose.xlu0.b32.cont [15/16] %v4583, 128
        %4635 = vxpose.xlu0.b32.end [16/16] %v4586, 128
        %v4636 = vpop.trf.xlu0
        %v4637 = vpop.trf.xlu0
        %v4638 = vpop.trf.xlu0
        %v4639 = vpop.trf.xlu0
        %v4640 = vpop.trf.xlu0
        %v4641 = vpop.trf.xlu0
        %v4642 = vpop.trf.xlu0
        %v4643 = vpop.trf.xlu0
        %v4644 = vpop.trf.xlu0
        %v4645 = vpop.trf.xlu0
        %v4646 = vpop.trf.xlu0
        %v4647 = vpop.trf.xlu0
        %v4648 = vpop.trf.xlu0
        %v4649 = vpop.trf.xlu0
        %v4650 = vpop.trf.xlu0
        %v4651 = vpop.trf.xlu0
        %4652 = vst [vmem:[%s553] sm:$0xff] %v4604
        %4653 = vst [vmem:[%s553 + $0x8] sm:$0xff] %v4636
        %4654 = vst [vmem:[%s553 + $0x10] sm:$0xff] %v4605
        %4655 = vst [vmem:[%s553 + $0x18] sm:$0xff] %v4637
        %4656 = vst [vmem:[%s553 + $0x20] sm:$0xff] %v4606
        %4657 = vst [vmem:[%s553 + $0x28] sm:$0xff] %v4638
        %4658 = vst [vmem:[%s553 + $0x30] sm:$0xff] %v4607
        %4659 = vst [vmem:[%s553 + $0x38] sm:$0xff] %v4639
        %4660 = vst [vmem:[%s553 + $0x40] sm:$0xff] %v4608
        %4661 = vst [vmem:[%s553 + $0x48] sm:$0xff] %v4640
        %4662 = vst [vmem:[%s553 + $0x50] sm:$0xff] %v4609
        %4663 = vst [vmem:[%s553 + $0x58] sm:$0xff] %v4641
        %4664 = vst [vmem:[%s553 + $0x60] sm:$0xff] %v4610
        %4665 = vst [vmem:[%s553 + $0x68] sm:$0xff] %v4642
        %4666 = vst [vmem:[%s553 + $0x70] sm:$0xff] %v4611
        %4667 = vst [vmem:[%s553 + $0x78] sm:$0xff] %v4643
        %s4668 = sand.u32 %s277, 1
        %s4669 = scalar_lea.sflag [#allocation6], %s4668
        %s4670 = sand.u32 %s277, 1
        %s4671 = smul.addr %s4670, 128
        %s4672 = scalar_lea.vmem [#allocation21], %s4671
        // Predicated region
        $region105: #{tpu_custom_call.1} parent=63 // pred_check
          %p4673 = pneg %p287
        $region106: #{tpu_custom_call.1} parent=63 // pred_check_branch
          %4675 = sbr.rel (%p4673) target = $region108
        $region107: #{tpu_custom_call.1} parent=63 // pred_region
          %4677 = vsyncadd %s4669, 0
          %s4678 = smul.addr %s33, 16
          %s4679 = smul.addr %s4678, 8
          %s4680 = scalar_lea.hbm %s11, %s4679
          %s4681 = sshll.u32 %s4672, 4
          %s4682 = int_to_ptr.vmem [resolvable:$true] %s4681
          %s4683 = sshll.u32 %s4680, 4
          %s4684 = int_to_ptr.hbm [resolvable:$true] %s4683
          %4689 = dma.vmem_to_hbm [thread:$0]  %s4682, 2048, %s4684, %s4669, 256, 256, 16
        $region108: #{tpu_custom_call.1} parent=63 // pred_fallthru
          _
      $region64: #{tpu_custom_call.1} parent=5 // pred_fallthru
        _
      %p4690 = scmp.le.s32.totalorder 2, %s28
      // Predicated region
      $region109: #{tpu_custom_call.1} parent=5 // pred_check
        %p4691 = pneg %p4690
      $region110: #{tpu_custom_call.1} parent=5 // pred_check_branch
        %4693 = sbr.rel (%p4691) target = $region112
      $region111: #{tpu_custom_call.1} parent=5 // pred_region
        %s4694 = ssub.s32 %s28, 2
        // Predicated region
        $region113: #{tpu_custom_call.1} parent=111 // pred_check
          %p4695 = pneg %p293
        $region114: #{tpu_custom_call.1} parent=111 // pred_check_branch
          %4697 = sbr.rel (%p4695) target = $region116
        $region115: #{tpu_custom_call.1} parent=111 // pred_region
          %s4698 = sand.u32 %s278, 1
          %s4699 = scalar_lea.sflag [#allocation6], %s4698
          %s4700 = sand.u32 %s278, 1
          %s4701 = smul.addr %s4700, 128
          %s4702 = scalar_lea.vmem [#allocation21], %s4701
          %4704 = dma.done %s4699, 2048
        $region116: #{tpu_custom_call.1} parent=111 // pred_fallthru
          _
      $region112: #{tpu_custom_call.1} parent=5 // pred_fallthru
        _
    $region6: #{tpu_custom_call.1} parent=1 // loop_footer
      %s32 = sadd.s32 1, %s28
    $region7: #{tpu_custom_call.1} parent=1 // loop_footer_branch
      %27 = sbr.rel target = $region3
    $region8: #{tpu_custom_call.1} parent=1 // loop_exit
      _
    %4705 = vsyncpa [#allocation5], 1
    %s4706 = scalar_lea.sflag [#allocation5], 1
    %4707 = vsyncpa %s4706, 1
    %4708 = vsyncpa [#allocation8], 1
    %4709 = vsyncpa [#allocation11], 1
    %4710 = vsyncpa [#allocation14], 1
    %4711 = vsyncpa [#allocation17], 1
    %4712 = vsyncpa [#allocation20], 1
    %4713 = vsyncpa [#allocation6], 1
    %s4714 = scalar_lea.sflag [#allocation6], 1
    %4715 = vsyncpa %s4714, 1

</llo_original>
